<compile_context>
chip_gen: v6e
topology: v6e:2x2x1
jax: 0.10.0
libtpu: 0.0.40
codegen_flags: <defaults>
</compile_context>

<pallas_src>
import functools

import jax
import jax.numpy as jnp
from jax import lax
from jax.experimental import pallas as pl
from jax.experimental.pallas import tpu as pltpu


def _round_up(a, b):
    return (a + b - 1) // b * b


def _pick_padded_width(H, W):
    """Smallest row pitch >= W+2 making H*pitch a multiple of 128 (lane-dense)."""
    for wr in range(W + 2, W + 2 + 129):
        if (H * wr) % 128 == 0:
            return wr
    return W + 2  # fall back: still correct, stores just get a masked tail


def _default_num_blocks(N):
    """Grid length: fold the whole batch into one step on single-TC chips
    (v5e/v6e, where a grid axis is pure per-step overhead); split into 2
    parallel blocks (one per TensorCore) on v7x-class 2-TC chips."""
    try:
        kind = jax.devices()[0].device_kind.lower()
    except Exception:
        kind = ""
    if "v7" in kind and N >= 2 and N % 2 == 0:
        return 2
    return 1


# ------------------------------- fused kernel ------------------------------ #
def _unit_kernel(xp_ref, w1_ref, sh1_ref, w2_ref, sh2_ref, mask_ref, o_ref,
                 y1_ref, y2_ref, s1_ref, p2_ref, s1pad_ref, v1_ref, v2_ref,
                 *, T, Nb, Cm, Wr, HWr, Lbuf, base):
    Wt = Nb * HWr            # lanes per time step (all Nb samples of one t)
    NI = T * Nb              # number of (t, sample) images handled per step

    # One grid step == one block of samples over all T steps: reset all state.
    # NOTE: the Wr-W padding columns of v1/v2 carry unmasked garbage membrane
    # state; this is harmless (never read for valid outputs, s1 is masked
    # before conv2, the wrapper slices the output columns).
    v1_ref[...] = jnp.zeros_like(v1_ref)
    v2_ref[...] = jnp.zeros_like(v2_ref)
    s1pad_ref[...] = jnp.zeros_like(s1pad_ref)   # zero halos stay zero

    mask = mask_ref[...]                          # hoisted: loaded once

    taps = [(dy, dx) for dy in range(3) for dx in range(3)]

    # ---- phase 1: conv1 + BN-shift for ALL T*Nb images in ONE MXU matmul ----
    # (im2col patches precomputed by the wrapper; bf16 operands, f32 accum.)
    y1_ref[...] = (jnp.dot(w1_ref[...], xp_ref[...],
                           preferred_element_type=jnp.float32) + sh1_ref[...])

    # ---- phase 2: sequential PLIF1 (tau=2 -> decay 0.5, v_th=1, hard reset) -
    # T is small; Python unroll (switch to lax.fori_loop(unroll=True) if T
    # grows past ~8 to bound vreg live ranges).
    for t in range(T):
        y = y1_ref[:, t * Wt:(t + 1) * Wt]
        v = v1_ref[...]
        v = v + (y - v) * 0.5
        s1 = (v >= 1.0).astype(jnp.float32)
        v1_ref[...] = v * (1.0 - s1)
        s1_ref[:, t * Wt:(t + 1) * Wt] = s1              # kept for SEW combine
        # Masked spikes into the zero-padded halo buffer at a 128-aligned base
        # (the (row+1,col+1) shift is folded into conv2's tap-read offsets).
        s1m = (s1 * mask).astype(jnp.bfloat16)
        for n in range(Nb):
            img = t * Nb + n
            s1pad_ref[:, img * Lbuf + base: img * Lbuf + base + HWr] = \
                s1m[:, n * HWr:(n + 1) * HWr]

    # ---- phase 3: conv2 im2col from halo buffer + ONE MXU matmul ------------
    for k, (dy, dx) in enumerate(taps):
        roff = base - (Wr + 1) + dy * Wr + dx            # folded halo shift
        for img in range(NI):
            p2_ref[k * Cm:(k + 1) * Cm, img * HWr:(img + 1) * HWr] = \
                s1pad_ref[:, img * Lbuf + roff: img * Lbuf + roff + HWr]
    y2_ref[...] = (jnp.dot(w2_ref[...], p2_ref[...],
                           preferred_element_type=jnp.float32) + sh2_ref[...])

    # ---- phase 4: sequential PLIF2 + SEW combine, lane-dense stores ---------
    for t in range(T):
        y = y2_ref[:, t * Wt:(t + 1) * Wt]
        v = v2_ref[...]
        v = v + (y - v) * 0.5
        s2 = (v >= 1.0).astype(jnp.float32)
        v2_ref[...] = v * (1.0 - s2)
        s1 = s1_ref[:, t * Wt:(t + 1) * Wt]
        o_ref[t] = 1.0 - (1.0 - s1) * (1.0 - s2)


# ------------------------------ Unit.forward ------------------------------- #
def unit_forward(x_tnchw, params, num_blocks=None):
    T, N, Cin, H, W = x_tnchw.shape
    Cm = params["w1f"].shape[0]

    if num_blocks is None:
        num_blocks = _default_num_blocks(N)
    assert N % num_blocks == 0
    Nb = N // num_blocks                         # samples folded per grid step

    Wr = _pick_padded_width(H, W)                # padded row pitch (24 for W=16)
    HWr = H * Wr                                 # per-image lane width (384)
    Wt = Nb * HWr                                # lanes per time step
    Lb = T * Wt                                  # matmul lane dim (batched T, Nb)
    base = 128                                   # 128-aligned halo store base
    Lbuf = _round_up(base + HWr + Wr + 2, 128)   # per-image halo-buffer length
    NI = T * Nb

    # ---- conv1 im2col done by XLA in the wrapper (kernel is copy-bound, not
    # MXU-bound): zero-halo pad with row pitch Wr, take the 9 tap slabs,
    # lay rows as (tap, Cin) and lanes as (t, n_local, pixel), cast to bf16.
    Hx = H + 3
    Lx = Hx * Wr
    xw = jnp.pad(x_tnchw, ((0, 0), (0, 0), (0, 0),
                           (1, Hx - H - 1), (1, Wr - W - 1)))
    xw = xw.reshape(T, N, Cin, Lx)
    pats = [xw[..., dy * Wr + dx: dy * Wr + dx + HWr]
            for dy in range(3) for dx in range(3)]       # 9 x (T, N, Cin, HWr)
    xp = jnp.stack(pats, axis=0)                         # (9, T, N, Cin, HWr)
    xp = xp.reshape(9, T, num_blocks, Nb, Cin, HWr)
    xp = xp.transpose(2, 0, 4, 1, 3, 5)                  # (nb, 9, Cin, T, Nb, HWr)
    xp = xp.reshape(num_blocks, 9 * Cin, Lb).astype(jnp.bfloat16)

    # Lane mask killing the (Wr - W) padding columns of each spatial row.
    colmask = (jnp.arange(Wt) % Wr < W).astype(jnp.float32).reshape(1, Wt)

    kern = functools.partial(_unit_kernel, T=T, Nb=Nb, Cm=Cm, Wr=Wr, HWr=HWr,
                             Lbuf=Lbuf, base=base)
    out = pl.pallas_call(
        kern,
        out_shape=jax.ShapeDtypeStruct((T, num_blocks, Cm, Wt), jnp.float32),
        grid_spec=pltpu.PrefetchScalarGridSpec(
            num_scalar_prefetch=0,
            grid=(num_blocks,),
            in_specs=[
                pl.BlockSpec((None, 9 * Cin, Lb), lambda b: (b, 0, 0)),
                pl.BlockSpec((Cm, 9 * Cin), lambda b: (0, 0)),
                pl.BlockSpec((Cm, 1), lambda b: (0, 0)),
                pl.BlockSpec((Cm, 9 * Cm), lambda b: (0, 0)),
                pl.BlockSpec((Cm, 1), lambda b: (0, 0)),
                pl.BlockSpec((1, Wt), lambda b: (0, 0)),
            ],
            out_specs=pl.BlockSpec((T, None, Cm, Wt), lambda b: (0, b, 0, 0)),
            scratch_shapes=[
                pltpu.VMEM((Cm, Lb), jnp.float32),         # conv1 pre-activations
                pltpu.VMEM((Cm, Lb), jnp.float32),         # conv2 pre-activations
                pltpu.VMEM((Cm, Lb), jnp.float32),         # s1 spikes (for SEW)
                pltpu.VMEM((9 * Cm, Lb), jnp.bfloat16),    # conv2 im2col patches
                pltpu.VMEM((Cm, NI * Lbuf), jnp.bfloat16),  # s1 halo buffer
                pltpu.VMEM((Cm, Wt), jnp.float32),         # PLIF1 membrane
                pltpu.VMEM((Cm, Wt), jnp.float32),         # PLIF2 membrane
            ]),
        compiler_params=pltpu.CompilerParams(
            dimension_semantics=("parallel",)),            # v7x: one block per TC
    )(xp, params["w1f"], params["shift1"], params["w2f"], params["shift2"],
      colmask)

    # (T, nb, Cm, Nb, H, Wr) -> PyTorch [T, N, Cm, H, W].  When num_blocks == N
    # this is a pure reshape+slice; otherwise a tiny (Cm <-> Nb) XLA transpose.
    out = out.reshape(T, num_blocks, Cm, Nb, H, Wr)
    out = out.transpose(0, 1, 3, 2, 4, 5).reshape(T, N, Cm, H, Wr)
    return out[..., :W]


# ---------------------------- parameter prep ------------------------------- #
def _fold_bn(gamma, beta, mean, var, eps=1e-5):
    scale = gamma / jnp.sqrt(var + eps)
    return scale, beta - mean * scale


def make_params(w1_oihw, scale1, shift1, w2_oihw, scale2, shift2):
    """Fold BN scale into conv weights, lay them out (Cout, 9*Cin), cast bf16."""
    Cm, Cin = w1_oihw.shape[:2]
    w1f = jnp.transpose(w1_oihw, (0, 2, 3, 1)).reshape(Cm, 9 * Cin) * scale1[:, None]
    w2f = jnp.transpose(w2_oihw, (0, 2, 3, 1)).reshape(Cm, 9 * Cm) * scale2[:, None]
    return {"w1f": w1f.astype(jnp.bfloat16), "shift1": shift1.reshape(Cm, 1),
            "w2f": w2f.astype(jnp.bfloat16), "shift2": shift2.reshape(Cm, 1)}


# ---------------------------- pure-JAX reference --------------------------- #
def _unit_reference(x, w1_eff, shift1, w2_eff, shift2):
    """Reference Unit.forward on the given (BN-folded) effective conv weights,
    evaluated in f32 / HIGHEST precision."""
    T, N, _, H, W = x.shape

    def conv_shift(inp, w, sh):
        TN = inp.shape[0] * inp.shape[1]
        y = lax.conv_general_dilated(
            inp.reshape(TN, inp.shape[2], H, W), w, (1, 1), "SAME",
            dimension_numbers=("NCHW", "OIHW", "NCHW"),
            precision=lax.Precision.HIGHEST)
        y = y + sh[None, :, None, None]
        return y.reshape(T, N, -1, H, W)

    def plif(seq):
        def step(v, yt):
            v = v + (yt - v) * 0.5
            s = (v >= 1.0).astype(jnp.float32)
            return v * (1.0 - s), s
        _, s = lax.scan(step, jnp.zeros_like(seq[0]), seq)
        return s

    s1 = plif(conv_shift(x, w1_eff, shift1))
    s2 = plif(conv_shift(s1, w2_eff, shift2))
    return 1.0 - (1.0 - s1) * (1.0 - s2)


if __name__ == "__main__":
    T, N, Cin, Cm, H, W = 4, 2, 4, 8, 16, 16

    key = jax.random.PRNGKey(0)
    ks = jax.random.split(key, 11)

    # Conv weights in PyTorch OIHW layout.
    w1_oihw = 0.4 * jax.random.normal(ks[0], (Cm, Cin, 3, 3), jnp.float32)
    w2_oihw = 0.4 * jax.random.normal(ks[1], (Cm, Cm, 3, 3), jnp.float32)

    # Synthetic deterministic BatchNorm parameters / running stats (eval mode).
    # TODO(synk): training-mode BN (batch statistics) is not modeled; inference-
    # mode running stats are folded into the conv weights instead.
    g1 = 1.0 + 0.1 * jax.random.normal(ks[2], (Cm,), jnp.float32)
    b1 = 0.1 * jax.random.normal(ks[3], (Cm,), jnp.float32)
    m1 = 0.05 * jax.random.normal(ks[4], (Cm,), jnp.float32)
    v1 = 1.0 + 0.1 * jax.random.uniform(ks[5], (Cm,), jnp.float32)
    g2 = 1.0 + 0.1 * jax.random.normal(ks[6], (Cm,), jnp.float32)
    b2 = 0.1 * jax.random.normal(ks[7], (Cm,), jnp.float32)
    m2 = 0.05 * jax.random.normal(ks[8], (Cm,), jnp.float32)
    v2 = 1.0 + 0.1 * jax.random.uniform(ks[9], (Cm,), jnp.float32)
    scale1, shift1 = _fold_bn(g1, b1, m1, v1)
    scale2, shift2 = _fold_bn(g2, b2, m2, v2)

    params = make_params(w1_oihw, scale1, shift1, w2_oihw, scale2, shift2)
    x = jax.random.normal(ks[10], (T, N, Cin, H, W), jnp.float32)

    out = jax.jit(unit_forward)(x, params)
    jax.block_until_ready(out)

    assert out.shape == (T, N, Cm, H, W)
    # SEW-of-spikes must be exactly binary.
    assert bool(jnp.all((out == 0.0) | (out == 1.0)))

    # Full-module reference check.  The kernel's matmul operands are bf16 (per
    # the perf review), so the reference is evaluated on the same bf16-rounded
    # operands (exactly representable in f32): remaining differences are only
    # f32 summation-order effects at the spike threshold, which must be rare.
    w1_eff = (w1_oihw * scale1[:, None, None, None]
              ).astype(jnp.bfloat16).astype(jnp.float32)
    w2_eff = (w2_oihw * scale2[:, None, None, None]
              ).astype(jnp.bfloat16).astype(jnp.float32)
    x_q = x.astype(jnp.bfloat16).astype(jnp.float32)
    ref = _unit_reference(x_q, w1_eff, shift1, w2_eff, shift2)
    mismatch = float(jnp.mean((jnp.abs(out - ref) > 0.5).astype(jnp.float32)))
    assert mismatch < 5e-3, f"mismatch fraction too high: {mismatch}"

    print("KERNEL_OK")
</pallas_src>

<mosaic_0001>
module attributes {stable_mosaic.version = 11 : i64} {
  func.func @_unit_kernel(%arg0: i32, %arg1: memref<1x36x3072xbf16, #tpu.memory_space<vmem>>, %arg2: memref<8x36xbf16, #tpu.memory_space<vmem>>, %arg3: memref<8x1xf32, #tpu.memory_space<vmem>>, %arg4: memref<8x72xbf16, #tpu.memory_space<vmem>>, %arg5: memref<8x1xf32, #tpu.memory_space<vmem>>, %arg6: memref<1x768xf32, #tpu.memory_space<vmem>>, %arg7: memref<4x1x8x768xf32, #tpu.memory_space<vmem>>, %arg8: memref<8x3072xf32, #tpu.memory_space<vmem>>, %arg9: memref<8x3072xf32, #tpu.memory_space<vmem>>, %arg10: memref<8x3072xf32, #tpu.memory_space<vmem>>, %arg11: memref<72x3072xbf16, #tpu.memory_space<vmem>>, %arg12: memref<8x5120xbf16, #tpu.memory_space<vmem>>, %arg13: memref<8x768xf32, #tpu.memory_space<vmem>>, %arg14: memref<8x768xf32, #tpu.memory_space<vmem>>) attributes {dimension_semantics = [#tpu.dimension_semantics<parallel>], iteration_bounds = array<i64: 1>, scalar_prefetch = 0 : i64, scratch_operands = 7 : i64, tpu.core_type = #tpu.core_type<tc>, window_params = [{transform_indices = @transform_0, window_bounds = array<i64: 1, 36, 3072>}, {pipeline_mode = #tpu.pipeline_mode<synchronous>, transform_indices = @transform_1, window_bounds = array<i64: 8, 36>}, {pipeline_mode = #tpu.pipeline_mode<synchronous>, transform_indices = @transform_2, window_bounds = array<i64: 8, 1>}, {pipeline_mode = #tpu.pipeline_mode<synchronous>, transform_indices = @transform_3, window_bounds = array<i64: 8, 72>}, {pipeline_mode = #tpu.pipeline_mode<synchronous>, transform_indices = @transform_4, window_bounds = array<i64: 8, 1>}, {pipeline_mode = #tpu.pipeline_mode<synchronous>, transform_indices = @transform_5, window_bounds = array<i64: 1, 768>}, {transform_indices = @transform_6, window_bounds = array<i64: 4, 1, 8, 768>}]} {
    %cst = arith.constant 0.000000e+00 : f32
    %0 = vector.broadcast %cst : f32 to vector<8x768xf32>
    %c0 = arith.constant 0 : index
    %c0_0 = arith.constant 0 : index
    %1 = vector.load %arg13[%c0, %c0_0] : memref<8x768xf32, #tpu.memory_space<vmem>>, vector<8x768xf32>
    tpu.vector_store %arg13[%c0, %c0_0], %0 {strides = array<i32>} : memref<8x768xf32, #tpu.memory_space<vmem>>, vector<8x768xf32>,
    %cst_1 = arith.constant 0.000000e+00 : f32
    %2 = vector.broadcast %cst_1 : f32 to vector<8x768xf32>
    %c0_2 = arith.constant 0 : index
    %c0_3 = arith.constant 0 : index
    %3 = vector.load %arg14[%c0_2, %c0_3] : memref<8x768xf32, #tpu.memory_space<vmem>>, vector<8x768xf32>
    tpu.vector_store %arg14[%c0_2, %c0_3], %2 {strides = array<i32>} : memref<8x768xf32, #tpu.memory_space<vmem>>, vector<8x768xf32>,
    %cst_4 = arith.constant 0.000000e+00 : bf16
    %4 = vector.broadcast %cst_4 : bf16 to vector<8x5120xbf16>
    %c0_5 = arith.constant 0 : index
    %c0_6 = arith.constant 0 : index
    %5 = vector.load %arg12[%c0_5, %c0_6] : memref<8x5120xbf16, #tpu.memory_space<vmem>>, vector<8x5120xbf16>
    tpu.vector_store %arg12[%c0_5, %c0_6], %4 {strides = array<i32>} : memref<8x5120xbf16, #tpu.memory_space<vmem>>, vector<8x5120xbf16>,
    %c0_7 = arith.constant 0 : index
    %c0_8 = arith.constant 0 : index
    %6 = vector.load %arg6[%c0_7, %c0_8] : memref<1x768xf32, #tpu.memory_space<vmem>>, vector<1x768xf32>
    %c0_9 = arith.constant 0 : index
    %c0_10 = arith.constant 0 : index
    %7 = vector.load %arg2[%c0_9, %c0_10] : memref<8x36xbf16, #tpu.memory_space<vmem>>, vector<8x36xbf16>
    %c0_11 = arith.constant 0 : index
    %c0_12 = arith.constant 0 : index
    %c0_13 = arith.constant 0 : index
    %8 = vector.load %arg1[%c0_11, %c0_12, %c0_13] : memref<1x36x3072xbf16, #tpu.memory_space<vmem>>, vector<1x36x3072xbf16>
    %9 = vector.shape_cast %8 : vector<1x36x3072xbf16> to vector<36x3072xbf16>
    %cst_14 = arith.constant dense<0.000000e+00> : vector<8x3072xf32>
    %10 = tpu.matmul %7, %9, %cst_14 {dimension_numbers = #tpu.dot_dimension_numbers<[1], [0], [0], [1], [0, 0, 1, 1], [], []>} : vector<8x36xbf16>, vector<36x3072xbf16>, vector<8x3072xf32> -> vector<8x3072xf32>
    %c0_15 = arith.constant 0 : index
    %c0_16 = arith.constant 0 : index
    %11 = vector.load %arg3[%c0_15, %c0_16] : memref<8x1xf32, #tpu.memory_space<vmem>>, vector<8x1xf32>
    %12 = vector.broadcast %11 : vector<8x1xf32> to vector<8x3072xf32>
    %13 = arith.addf %10, %12 : vector<8x3072xf32>
    %c0_17 = arith.constant 0 : index
    %c0_18 = arith.constant 0 : index
    %14 = vector.load %arg8[%c0_17, %c0_18] : memref<8x3072xf32, #tpu.memory_space<vmem>>, vector<8x3072xf32>
    tpu.vector_store %arg8[%c0_17, %c0_18], %13 {strides = array<i32>} : memref<8x3072xf32, #tpu.memory_space<vmem>>, vector<8x3072xf32>,
    %c0_19 = arith.constant 0 : index
    %c0_20 = arith.constant 0 : index
    %15 = vector.load %arg8[%c0_19, %c0_20] : memref<8x3072xf32, #tpu.memory_space<vmem>>, vector<8x768xf32>
    %c0_21 = arith.constant 0 : index
    %c0_22 = arith.constant 0 : index
    %16 = vector.load %arg13[%c0_21, %c0_22] : memref<8x768xf32, #tpu.memory_space<vmem>>, vector<8x768xf32>
    %17 = arith.subf %15, %16 : vector<8x768xf32>
    %cst_23 = arith.constant 5.000000e-01 : f32
    %18 = vector.broadcast %cst_23 : f32 to vector<8x768xf32>
    %19 = arith.mulf %17, %18 : vector<8x768xf32>
    %20 = arith.addf %16, %19 : vector<8x768xf32>
    %cst_24 = arith.constant 1.000000e+00 : f32
    %21 = vector.broadcast %cst_24 : f32 to vector<8x768xf32>
    %22 = arith.cmpf oge, %20, %21 : vector<8x768xf32>
    %23 = arith.extui %22 : vector<8x768xi1> to vector<8x768xi32>
    %24 = arith.sitofp %23 : vector<8x768xi32> to vector<8x768xf32>
    %cst_25 = arith.constant 1.000000e+00 : f32
    %25 = vector.broadcast %cst_25 : f32 to vector<8x768xf32>
    %26 = arith.subf %25, %24 : vector<8x768xf32>
    %27 = arith.mulf %20, %26 : vector<8x768xf32>
    %c0_26 = arith.constant 0 : index
    %c0_27 = arith.constant 0 : index
    %28 = vector.load %arg13[%c0_26, %c0_27] : memref<8x768xf32, #tpu.memory_space<vmem>>, vector<8x768xf32>
    tpu.vector_store %arg13[%c0_26, %c0_27], %27 {strides = array<i32>} : memref<8x768xf32, #tpu.memory_space<vmem>>, vector<8x768xf32>,
    %c0_28 = arith.constant 0 : index
    %c0_29 = arith.constant 0 : index
    %29 = vector.load %arg10[%c0_28, %c0_29] : memref<8x3072xf32, #tpu.memory_space<vmem>>, vector<8x768xf32>
    tpu.vector_store %arg10[%c0_28, %c0_29], %24 {strides = array<i32>} : memref<8x3072xf32, #tpu.memory_space<vmem>>, vector<8x768xf32>,
    %30 = vector.broadcast %6 : vector<1x768xf32> to vector<8x768xf32>
    %31 = arith.mulf %24, %30 : vector<8x768xf32>
    %32 = arith.truncf %31 : vector<8x768xf32> to vector<8x768xbf16>
    %33 = vector.extract_strided_slice %32 {offsets = [0, 0], sizes = [8, 384], strides = [1, 1]} : vector<8x768xbf16> to vector<8x384xbf16>
    %c0_30 = arith.constant 0 : index
    %c128 = arith.constant 128 : index
    %34 = vector.load %arg12[%c0_30, %c128] : memref<8x5120xbf16, #tpu.memory_space<vmem>>, vector<8x384xbf16>
    tpu.vector_store %arg12[%c0_30, %c128], %33 {strides = array<i32>} : memref<8x5120xbf16, #tpu.memory_space<vmem>>, vector<8x384xbf16>,
    %35 = vector.extract_strided_slice %32 {offsets = [0, 384], sizes = [8, 384], strides = [1, 1]} : vector<8x768xbf16> to vector<8x384xbf16>
    %c0_31 = arith.constant 0 : index
    %c768 = arith.constant 768 : index
    %36 = vector.load %arg12[%c0_31, %c768] : memref<8x5120xbf16, #tpu.memory_space<vmem>>, vector<8x384xbf16>
    tpu.vector_store %arg12[%c0_31, %c768], %35 {strides = array<i32>} : memref<8x5120xbf16, #tpu.memory_space<vmem>>, vector<8x384xbf16>,
    %c0_32 = arith.constant 0 : index
    %c768_33 = arith.constant 768 : index
    %37 = vector.load %arg8[%c0_32, %c768_33] : memref<8x3072xf32, #tpu.memory_space<vmem>>, vector<8x768xf32>
    %c0_34 = arith.constant 0 : index
    %c0_35 = arith.constant 0 : index
    %38 = vector.load %arg13[%c0_34, %c0_35] : memref<8x768xf32, #tpu.memory_space<vmem>>, vector<8x768xf32>
    %39 = arith.subf %37, %38 : vector<8x768xf32>
    %cst_36 = arith.constant 5.000000e-01 : f32
    %40 = vector.broadcast %cst_36 : f32 to vector<8x768xf32>
    %41 = arith.mulf %39, %40 : vector<8x768xf32>
    %42 = arith.addf %38, %41 : vector<8x768xf32>
    %cst_37 = arith.constant 1.000000e+00 : f32
    %43 = vector.broadcast %cst_37 : f32 to vector<8x768xf32>
    %44 = arith.cmpf oge, %42, %43 : vector<8x768xf32>
    %45 = arith.extui %44 : vector<8x768xi1> to vector<8x768xi32>
    %46 = arith.sitofp %45 : vector<8x768xi32> to vector<8x768xf32>
    %cst_38 = arith.constant 1.000000e+00 : f32
    %47 = vector.broadcast %cst_38 : f32 to vector<8x768xf32>
    %48 = arith.subf %47, %46 : vector<8x768xf32>
    %49 = arith.mulf %42, %48 : vector<8x768xf32>
    %c0_39 = arith.constant 0 : index
    %c0_40 = arith.constant 0 : index
    %50 = vector.load %arg13[%c0_39, %c0_40] : memref<8x768xf32, #tpu.memory_space<vmem>>, vector<8x768xf32>
    tpu.vector_store %arg13[%c0_39, %c0_40], %49 {strides = array<i32>} : memref<8x768xf32, #tpu.memory_space<vmem>>, vector<8x768xf32>,
    %c0_41 = arith.constant 0 : index
    %c768_42 = arith.constant 768 : index
    %51 = vector.load %arg10[%c0_41, %c768_42] : memref<8x3072xf32, #tpu.memory_space<vmem>>, vector<8x768xf32>
    tpu.vector_store %arg10[%c0_41, %c768_42], %46 {strides = array<i32>} : memref<8x3072xf32, #tpu.memory_space<vmem>>, vector<8x768xf32>,
    %52 = vector.broadcast %6 : vector<1x768xf32> to vector<8x768xf32>
    %53 = arith.mulf %46, %52 : vector<8x768xf32>
    %54 = arith.truncf %53 : vector<8x768xf32> to vector<8x768xbf16>
    %55 = vector.extract_strided_slice %54 {offsets = [0, 0], sizes = [8, 384], strides = [1, 1]} : vector<8x768xbf16> to vector<8x384xbf16>
    %c0_43 = arith.constant 0 : index
    %c1408 = arith.constant 1408 : index
    %56 = vector.load %arg12[%c0_43, %c1408] : memref<8x5120xbf16, #tpu.memory_space<vmem>>, vector<8x384xbf16>
    tpu.vector_store %arg12[%c0_43, %c1408], %55 {strides = array<i32>} : memref<8x5120xbf16, #tpu.memory_space<vmem>>, vector<8x384xbf16>,
    %57 = vector.extract_strided_slice %54 {offsets = [0, 384], sizes = [8, 384], strides = [1, 1]} : vector<8x768xbf16> to vector<8x384xbf16>
    %c0_44 = arith.constant 0 : index
    %c2048 = arith.constant 2048 : index
    %58 = vector.load %arg12[%c0_44, %c2048] : memref<8x5120xbf16, #tpu.memory_space<vmem>>, vector<8x384xbf16>
    tpu.vector_store %arg12[%c0_44, %c2048], %57 {strides = array<i32>} : memref<8x5120xbf16, #tpu.memory_space<vmem>>, vector<8x384xbf16>,
    %c0_45 = arith.constant 0 : index
    %c1536 = arith.constant 1536 : index
    %59 = vector.load %arg8[%c0_45, %c1536] : memref<8x3072xf32, #tpu.memory_space<vmem>>, vector<8x768xf32>
    %c0_46 = arith.constant 0 : index
    %c0_47 = arith.constant 0 : index
    %60 = vector.load %arg13[%c0_46, %c0_47] : memref<8x768xf32, #tpu.memory_space<vmem>>, vector<8x768xf32>
    %61 = arith.subf %59, %60 : vector<8x768xf32>
    %cst_48 = arith.constant 5.000000e-01 : f32
    %62 = vector.broadcast %cst_48 : f32 to vector<8x768xf32>
    %63 = arith.mulf %61, %62 : vector<8x768xf32>
    %64 = arith.addf %60, %63 : vector<8x768xf32>
    %cst_49 = arith.constant 1.000000e+00 : f32
    %65 = vector.broadcast %cst_49 : f32 to vector<8x768xf32>
    %66 = arith.cmpf oge, %64, %65 : vector<8x768xf32>
    %67 = arith.extui %66 : vector<8x768xi1> to vector<8x768xi32>
    %68 = arith.sitofp %67 : vector<8x768xi32> to vector<8x768xf32>
    %cst_50 = arith.constant 1.000000e+00 : f32
    %69 = vector.broadcast %cst_50 : f32 to vector<8x768xf32>
    %70 = arith.subf %69, %68 : vector<8x768xf32>
    %71 = arith.mulf %64, %70 : vector<8x768xf32>
    %c0_51 = arith.constant 0 : index
    %c0_52 = arith.constant 0 : index
    %72 = vector.load %arg13[%c0_51, %c0_52] : memref<8x768xf32, #tpu.memory_space<vmem>>, vector<8x768xf32>
    tpu.vector_store %arg13[%c0_51, %c0_52], %71 {strides = array<i32>} : memref<8x768xf32, #tpu.memory_space<vmem>>, vector<8x768xf32>,
    %c0_53 = arith.constant 0 : index
    %c1536_54 = arith.constant 1536 : index
    %73 = vector.load %arg10[%c0_53, %c1536_54] : memref<8x3072xf32, #tpu.memory_space<vmem>>, vector<8x768xf32>
    tpu.vector_store %arg10[%c0_53, %c1536_54], %68 {strides = array<i32>} : memref<8x3072xf32, #tpu.memory_space<vmem>>, vector<8x768xf32>,
    %74 = vector.broadcast %6 : vector<1x768xf32> to vector<8x768xf32>
    %75 = arith.mulf %68, %74 : vector<8x768xf32>
    %76 = arith.truncf %75 : vector<8x768xf32> to vector<8x768xbf16>
    %77 = vector.extract_strided_slice %76 {offsets = [0, 0], sizes = [8, 384], strides = [1, 1]} : vector<8x768xbf16> to vector<8x384xbf16>
    %c0_55 = arith.constant 0 : index
    %c2688 = arith.constant 2688 : index
    %78 = vector.load %arg12[%c0_55, %c2688] : memref<8x5120xbf16, #tpu.memory_space<vmem>>, vector<8x384xbf16>
    tpu.vector_store %arg12[%c0_55, %c2688], %77 {strides = array<i32>} : memref<8x5120xbf16, #tpu.memory_space<vmem>>, vector<8x384xbf16>,
    %79 = vector.extract_strided_slice %76 {offsets = [0, 384], sizes = [8, 384], strides = [1, 1]} : vector<8x768xbf16> to vector<8x384xbf16>
    %c0_56 = arith.constant 0 : index
    %c3328 = arith.constant 3328 : index
    %80 = vector.load %arg12[%c0_56, %c3328] : memref<8x5120xbf16, #tpu.memory_space<vmem>>, vector<8x384xbf16>
    tpu.vector_store %arg12[%c0_56, %c3328], %79 {strides = array<i32>} : memref<8x5120xbf16, #tpu.memory_space<vmem>>, vector<8x384xbf16>,
    %c0_57 = arith.constant 0 : index
    %c2304 = arith.constant 2304 : index
    %81 = vector.load %arg8[%c0_57, %c2304] : memref<8x3072xf32, #tpu.memory_space<vmem>>, vector<8x768xf32>
    %c0_58 = arith.constant 0 : index
    %c0_59 = arith.constant 0 : index
    %82 = vector.load %arg13[%c0_58, %c0_59] : memref<8x768xf32, #tpu.memory_space<vmem>>, vector<8x768xf32>
    %83 = arith.subf %81, %82 : vector<8x768xf32>
    %cst_60 = arith.constant 5.000000e-01 : f32
    %84 = vector.broadcast %cst_60 : f32 to vector<8x768xf32>
    %85 = arith.mulf %83, %84 : vector<8x768xf32>
    %86 = arith.addf %82, %85 : vector<8x768xf32>
    %cst_61 = arith.constant 1.000000e+00 : f32
    %87 = vector.broadcast %cst_61 : f32 to vector<8x768xf32>
    %88 = arith.cmpf oge, %86, %87 : vector<8x768xf32>
    %89 = arith.extui %88 : vector<8x768xi1> to vector<8x768xi32>
    %90 = arith.sitofp %89 : vector<8x768xi32> to vector<8x768xf32>
    %cst_62 = arith.constant 1.000000e+00 : f32
    %91 = vector.broadcast %cst_62 : f32 to vector<8x768xf32>
    %92 = arith.subf %91, %90 : vector<8x768xf32>
    %93 = arith.mulf %86, %92 : vector<8x768xf32>
    %c0_63 = arith.constant 0 : index
    %c0_64 = arith.constant 0 : index
    %94 = vector.load %arg13[%c0_63, %c0_64] : memref<8x768xf32, #tpu.memory_space<vmem>>, vector<8x768xf32>
    tpu.vector_store %arg13[%c0_63, %c0_64], %93 {strides = array<i32>} : memref<8x768xf32, #tpu.memory_space<vmem>>, vector<8x768xf32>,
    %c0_65 = arith.constant 0 : index
    %c2304_66 = arith.constant 2304 : index
    %95 = vector.load %arg10[%c0_65, %c2304_66] : memref<8x3072xf32, #tpu.memory_space<vmem>>, vector<8x768xf32>
    tpu.vector_store %arg10[%c0_65, %c2304_66], %90 {strides = array<i32>} : memref<8x3072xf32, #tpu.memory_space<vmem>>, vector<8x768xf32>,
    %96 = vector.broadcast %6 : vector<1x768xf32> to vector<8x768xf32>
    %97 = arith.mulf %90, %96 : vector<8x768xf32>
    %98 = arith.truncf %97 : vector<8x768xf32> to vector<8x768xbf16>
    %99 = vector.extract_strided_slice %98 {offsets = [0, 0], sizes = [8, 384], strides = [1, 1]} : vector<8x768xbf16> to vector<8x384xbf16>
    %c0_67 = arith.constant 0 : index
    %c3968 = arith.constant 3968 : index
    %100 = vector.load %arg12[%c0_67, %c3968] : memref<8x5120xbf16, #tpu.memory_space<vmem>>, vector<8x384xbf16>
    tpu.vector_store %arg12[%c0_67, %c3968], %99 {strides = array<i32>} : memref<8x5120xbf16, #tpu.memory_space<vmem>>, vector<8x384xbf16>,
    %101 = vector.extract_strided_slice %98 {offsets = [0, 384], sizes = [8, 384], strides = [1, 1]} : vector<8x768xbf16> to vector<8x384xbf16>
    %c0_68 = arith.constant 0 : index
    %c4608 = arith.constant 4608 : index
    %102 = vector.load %arg12[%c0_68, %c4608] : memref<8x5120xbf16, #tpu.memory_space<vmem>>, vector<8x384xbf16>
    tpu.vector_store %arg12[%c0_68, %c4608], %101 {strides = array<i32>} : memref<8x5120xbf16, #tpu.memory_space<vmem>>, vector<8x384xbf16>,
    %c0_69 = arith.constant 0 : index
    %c103 = arith.constant 103 : index
    %103 = vector.load %arg12[%c0_69, %c103] : memref<8x5120xbf16, #tpu.memory_space<vmem>>, vector<8x384xbf16>
    %c0_70 = arith.constant 0 : index
    %c0_71 = arith.constant 0 : index
    %104 = vector.load %arg11[%c0_70, %c0_71] : memref<72x3072xbf16, #tpu.memory_space<vmem>>, vector<8x384xbf16>
    tpu.vector_store %arg11[%c0_70, %c0_71], %103 {strides = array<i32>} : memref<72x3072xbf16, #tpu.memory_space<vmem>>, vector<8x384xbf16>,
    %c0_72 = arith.constant 0 : index
    %c743 = arith.constant 743 : index
    %105 = vector.load %arg12[%c0_72, %c743] : memref<8x5120xbf16, #tpu.memory_space<vmem>>, vector<8x384xbf16>
    %c0_73 = arith.constant 0 : index
    %c384 = arith.constant 384 : index
    %106 = vector.load %arg11[%c0_73, %c384] : memref<72x3072xbf16, #tpu.memory_space<vmem>>, vector<8x384xbf16>
    tpu.vector_store %arg11[%c0_73, %c384], %105 {strides = array<i32>} : memref<72x3072xbf16, #tpu.memory_space<vmem>>, vector<8x384xbf16>,
    %c0_74 = arith.constant 0 : index
    %c1383 = arith.constant 1383 : index
    %107 = vector.load %arg12[%c0_74, %c1383] : memref<8x5120xbf16, #tpu.memory_space<vmem>>, vector<8x384xbf16>
    %c0_75 = arith.constant 0 : index
    %c768_76 = arith.constant 768 : index
    %108 = vector.load %arg11[%c0_75, %c768_76] : memref<72x3072xbf16, #tpu.memory_space<vmem>>, vector<8x384xbf16>
    tpu.vector_store %arg11[%c0_75, %c768_76], %107 {strides = array<i32>} : memref<72x3072xbf16, #tpu.memory_space<vmem>>, vector<8x384xbf16>,
    %c0_77 = arith.constant 0 : index
    %c2023 = arith.constant 2023 : index
    %109 = vector.load %arg12[%c0_77, %c2023] : memref<8x5120xbf16, #tpu.memory_space<vmem>>, vector<8x384xbf16>
    %c0_78 = arith.constant 0 : index
    %c1152 = arith.constant 1152 : index
    %110 = vector.load %arg11[%c0_78, %c1152] : memref<72x3072xbf16, #tpu.memory_space<vmem>>, vector<8x384xbf16>
    tpu.vector_store %arg11[%c0_78, %c1152], %109 {strides = array<i32>} : memref<72x3072xbf16, #tpu.memory_space<vmem>>, vector<8x384xbf16>,
    %c0_79 = arith.constant 0 : index
    %c2663 = arith.constant 2663 : index
    %111 = vector.load %arg12[%c0_79, %c2663] : memref<8x5120xbf16, #tpu.memory_space<vmem>>, vector<8x384xbf16>
    %c0_80 = arith.constant 0 : index
    %c1536_81 = arith.constant 1536 : index
    %112 = vector.load %arg11[%c0_80, %c1536_81] : memref<72x3072xbf16, #tpu.memory_space<vmem>>, vector<8x384xbf16>
    tpu.vector_store %arg11[%c0_80, %c1536_81], %111 {strides = array<i32>} : memref<72x3072xbf16, #tpu.memory_space<vmem>>, vector<8x384xbf16>,
    %c0_82 = arith.constant 0 : index
    %c3303 = arith.constant 3303 : index
    %113 = vector.load %arg12[%c0_82, %c3303] : memref<8x5120xbf16, #tpu.memory_space<vmem>>, vector<8x384xbf16>
    %c0_83 = arith.constant 0 : index
    %c1920 = arith.constant 1920 : index
    %114 = vector.load %arg11[%c0_83, %c1920] : memref<72x3072xbf16, #tpu.memory_space<vmem>>, vector<8x384xbf16>
    tpu.vector_store %arg11[%c0_83, %c1920], %113 {strides = array<i32>} : memref<72x3072xbf16, #tpu.memory_space<vmem>>, vector<8x384xbf16>,
    %c0_84 = arith.constant 0 : index
    %c3943 = arith.constant 3943 : index
    %115 = vector.load %arg12[%c0_84, %c3943] : memref<8x5120xbf16, #tpu.memory_space<vmem>>, vector<8x384xbf16>
    %c0_85 = arith.constant 0 : index
    %c2304_86 = arith.constant 2304 : index
    %116 = vector.load %arg11[%c0_85, %c2304_86] : memref<72x3072xbf16, #tpu.memory_space<vmem>>, vector<8x384xbf16>
    tpu.vector_store %arg11[%c0_85, %c2304_86], %115 {strides = array<i32>} : memref<72x3072xbf16, #tpu.memory_space<vmem>>, vector<8x384xbf16>,
    %c0_87 = arith.constant 0 : index
    %c4583 = arith.constant 4583 : index
    %117 = vector.load %arg12[%c0_87, %c4583] : memref<8x5120xbf16, #tpu.memory_space<vmem>>, vector<8x384xbf16>
    %c0_88 = arith.constant 0 : index
    %c2688_89 = arith.constant 2688 : index
    %118 = vector.load %arg11[%c0_88, %c2688_89] : memref<72x3072xbf16, #tpu.memory_space<vmem>>, vector<8x384xbf16>
    tpu.vector_store %arg11[%c0_88, %c2688_89], %117 {strides = array<i32>} : memref<72x3072xbf16, #tpu.memory_space<vmem>>, vector<8x384xbf16>,
    %c0_90 = arith.constant 0 : index
    %c104 = arith.constant 104 : index
    %119 = vector.load %arg12[%c0_90, %c104] : memref<8x5120xbf16, #tpu.memory_space<vmem>>, vector<8x384xbf16>
    %c8 = arith.constant 8 : index
    %c0_91 = arith.constant 0 : index
    %120 = vector.load %arg11[%c8, %c0_91] : memref<72x3072xbf16, #tpu.memory_space<vmem>>, vector<8x384xbf16>
    tpu.vector_store %arg11[%c8, %c0_91], %119 {strides = array<i32>} : memref<72x3072xbf16, #tpu.memory_space<vmem>>, vector<8x384xbf16>,
    %c0_92 = arith.constant 0 : index
    %c744 = arith.constant 744 : index
    %121 = vector.load %arg12[%c0_92, %c744] : memref<8x5120xbf16, #tpu.memory_space<vmem>>, vector<8x384xbf16>
    %c8_93 = arith.constant 8 : index
    %c384_94 = arith.constant 384 : index
    %122 = vector.load %arg11[%c8_93, %c384_94] : memref<72x3072xbf16, #tpu.memory_space<vmem>>, vector<8x384xbf16>
    tpu.vector_store %arg11[%c8_93, %c384_94], %121 {strides = array<i32>} : memref<72x3072xbf16, #tpu.memory_space<vmem>>, vector<8x384xbf16>,
    %c0_95 = arith.constant 0 : index
    %c1384 = arith.constant 1384 : index
    %123 = vector.load %arg12[%c0_95, %c1384] : memref<8x5120xbf16, #tpu.memory_space<vmem>>, vector<8x384xbf16>
    %c8_96 = arith.constant 8 : index
    %c768_97 = arith.constant 768 : index
    %124 = vector.load %arg11[%c8_96, %c768_97] : memref<72x3072xbf16, #tpu.memory_space<vmem>>, vector<8x384xbf16>
    tpu.vector_store %arg11[%c8_96, %c768_97], %123 {strides = array<i32>} : memref<72x3072xbf16, #tpu.memory_space<vmem>>, vector<8x384xbf16>,
    %c0_98 = arith.constant 0 : index
    %c2024 = arith.constant 2024 : index
    %125 = vector.load %arg12[%c0_98, %c2024] : memref<8x5120xbf16, #tpu.memory_space<vmem>>, vector<8x384xbf16>
    %c8_99 = arith.constant 8 : index
    %c1152_100 = arith.constant 1152 : index
    %126 = vector.load %arg11[%c8_99, %c1152_100] : memref<72x3072xbf16, #tpu.memory_space<vmem>>, vector<8x384xbf16>
    tpu.vector_store %arg11[%c8_99, %c1152_100], %125 {strides = array<i32>} : memref<72x3072xbf16, #tpu.memory_space<vmem>>, vector<8x384xbf16>,
    %c0_101 = arith.constant 0 : index
    %c2664 = arith.constant 2664 : index
    %127 = vector.load %arg12[%c0_101, %c2664] : memref<8x5120xbf16, #tpu.memory_space<vmem>>, vector<8x384xbf16>
    %c8_102 = arith.constant 8 : index
    %c1536_103 = arith.constant 1536 : index
    %128 = vector.load %arg11[%c8_102, %c1536_103] : memref<72x3072xbf16, #tpu.memory_space<vmem>>, vector<8x384xbf16>
    tpu.vector_store %arg11[%c8_102, %c1536_103], %127 {strides = array<i32>} : memref<72x3072xbf16, #tpu.memory_space<vmem>>, vector<8x384xbf16>,
    %c0_104 = arith.constant 0 : index
    %c3304 = arith.constant 3304 : index
    %129 = vector.load %arg12[%c0_104, %c3304] : memref<8x5120xbf16, #tpu.memory_space<vmem>>, vector<8x384xbf16>
    %c8_105 = arith.constant 8 : index
    %c1920_106 = arith.constant 1920 : index
    %130 = vector.load %arg11[%c8_105, %c1920_106] : memref<72x3072xbf16, #tpu.memory_space<vmem>>, vector<8x384xbf16>
    tpu.vector_store %arg11[%c8_105, %c1920_106], %129 {strides = array<i32>} : memref<72x3072xbf16, #tpu.memory_space<vmem>>, vector<8x384xbf16>,
    %c0_107 = arith.constant 0 : index
    %c3944 = arith.constant 3944 : index
    %131 = vector.load %arg12[%c0_107, %c3944] : memref<8x5120xbf16, #tpu.memory_space<vmem>>, vector<8x384xbf16>
    %c8_108 = arith.constant 8 : index
    %c2304_109 = arith.constant 2304 : index
    %132 = vector.load %arg11[%c8_108, %c2304_109] : memref<72x3072xbf16, #tpu.memory_space<vmem>>, vector<8x384xbf16>
    tpu.vector_store %arg11[%c8_108, %c2304_109], %131 {strides = array<i32>} : memref<72x3072xbf16, #tpu.memory_space<vmem>>, vector<8x384xbf16>,
    %c0_110 = arith.constant 0 : index
    %c4584 = arith.constant 4584 : index
    %133 = vector.load %arg12[%c0_110, %c4584] : memref<8x5120xbf16, #tpu.memory_space<vmem>>, vector<8x384xbf16>
    %c8_111 = arith.constant 8 : index
    %c2688_112 = arith.constant 2688 : index
    %134 = vector.load %arg11[%c8_111, %c2688_112] : memref<72x3072xbf16, #tpu.memory_space<vmem>>, vector<8x384xbf16>
    tpu.vector_store %arg11[%c8_111, %c2688_112], %133 {strides = array<i32>} : memref<72x3072xbf16, #tpu.memory_space<vmem>>, vector<8x384xbf16>,
    %c0_113 = arith.constant 0 : index
    %c105 = arith.constant 105 : index
    %135 = vector.load %arg12[%c0_113, %c105] : memref<8x5120xbf16, #tpu.memory_space<vmem>>, vector<8x384xbf16>
    %c16 = arith.constant 16 : index
    %c0_114 = arith.constant 0 : index
    %136 = vector.load %arg11[%c16, %c0_114] : memref<72x3072xbf16, #tpu.memory_space<vmem>>, vector<8x384xbf16>
    tpu.vector_store %arg11[%c16, %c0_114], %135 {strides = array<i32>} : memref<72x3072xbf16, #tpu.memory_space<vmem>>, vector<8x384xbf16>,
    %c0_115 = arith.constant 0 : index
    %c745 = arith.constant 745 : index
    %137 = vector.load %arg12[%c0_115, %c745] : memref<8x5120xbf16, #tpu.memory_space<vmem>>, vector<8x384xbf16>
    %c16_116 = arith.constant 16 : index
    %c384_117 = arith.constant 384 : index
    %138 = vector.load %arg11[%c16_116, %c384_117] : memref<72x3072xbf16, #tpu.memory_space<vmem>>, vector<8x384xbf16>
    tpu.vector_store %arg11[%c16_116, %c384_117], %137 {strides = array<i32>} : memref<72x3072xbf16, #tpu.memory_space<vmem>>, vector<8x384xbf16>,
    %c0_118 = arith.constant 0 : index
    %c1385 = arith.constant 1385 : index
    %139 = vector.load %arg12[%c0_118, %c1385] : memref<8x5120xbf16, #tpu.memory_space<vmem>>, vector<8x384xbf16>
    %c16_119 = arith.constant 16 : index
    %c768_120 = arith.constant 768 : index
    %140 = vector.load %arg11[%c16_119, %c768_120] : memref<72x3072xbf16, #tpu.memory_space<vmem>>, vector<8x384xbf16>
    tpu.vector_store %arg11[%c16_119, %c768_120], %139 {strides = array<i32>} : memref<72x3072xbf16, #tpu.memory_space<vmem>>, vector<8x384xbf16>,
    %c0_121 = arith.constant 0 : index
    %c2025 = arith.constant 2025 : index
    %141 = vector.load %arg12[%c0_121, %c2025] : memref<8x5120xbf16, #tpu.memory_space<vmem>>, vector<8x384xbf16>
    %c16_122 = arith.constant 16 : index
    %c1152_123 = arith.constant 1152 : index
    %142 = vector.load %arg11[%c16_122, %c1152_123] : memref<72x3072xbf16, #tpu.memory_space<vmem>>, vector<8x384xbf16>
    tpu.vector_store %arg11[%c16_122, %c1152_123], %141 {strides = array<i32>} : memref<72x3072xbf16, #tpu.memory_space<vmem>>, vector<8x384xbf16>,
    %c0_124 = arith.constant 0 : index
    %c2665 = arith.constant 2665 : index
    %143 = vector.load %arg12[%c0_124, %c2665] : memref<8x5120xbf16, #tpu.memory_space<vmem>>, vector<8x384xbf16>
    %c16_125 = arith.constant 16 : index
    %c1536_126 = arith.constant 1536 : index
    %144 = vector.load %arg11[%c16_125, %c1536_126] : memref<72x3072xbf16, #tpu.memory_space<vmem>>, vector<8x384xbf16>
    tpu.vector_store %arg11[%c16_125, %c1536_126], %143 {strides = array<i32>} : memref<72x3072xbf16, #tpu.memory_space<vmem>>, vector<8x384xbf16>,
    %c0_127 = arith.constant 0 : index
    %c3305 = arith.constant 3305 : index
    %145 = vector.load %arg12[%c0_127, %c3305] : memref<8x5120xbf16, #tpu.memory_space<vmem>>, vector<8x384xbf16>
    %c16_128 = arith.constant 16 : index
    %c1920_129 = arith.constant 1920 : index
    %146 = vector.load %arg11[%c16_128, %c1920_129] : memref<72x3072xbf16, #tpu.memory_space<vmem>>, vector<8x384xbf16>
    tpu.vector_store %arg11[%c16_128, %c1920_129], %145 {strides = array<i32>} : memref<72x3072xbf16, #tpu.memory_space<vmem>>, vector<8x384xbf16>,
    %c0_130 = arith.constant 0 : index
    %c3945 = arith.constant 3945 : index
    %147 = vector.load %arg12[%c0_130, %c3945] : memref<8x5120xbf16, #tpu.memory_space<vmem>>, vector<8x384xbf16>
    %c16_131 = arith.constant 16 : index
    %c2304_132 = arith.constant 2304 : index
    %148 = vector.load %arg11[%c16_131, %c2304_132] : memref<72x3072xbf16, #tpu.memory_space<vmem>>, vector<8x384xbf16>
    tpu.vector_store %arg11[%c16_131, %c2304_132], %147 {strides = array<i32>} : memref<72x3072xbf16, #tpu.memory_space<vmem>>, vector<8x384xbf16>,
    %c0_133 = arith.constant 0 : index
    %c4585 = arith.constant 4585 : index
    %149 = vector.load %arg12[%c0_133, %c4585] : memref<8x5120xbf16, #tpu.memory_space<vmem>>, vector<8x384xbf16>
    %c16_134 = arith.constant 16 : index
    %c2688_135 = arith.constant 2688 : index
    %150 = vector.load %arg11[%c16_134, %c2688_135] : memref<72x3072xbf16, #tpu.memory_space<vmem>>, vector<8x384xbf16>
    tpu.vector_store %arg11[%c16_134, %c2688_135], %149 {strides = array<i32>} : memref<72x3072xbf16, #tpu.memory_space<vmem>>, vector<8x384xbf16>,
    %c0_136 = arith.constant 0 : index
    %c127 = arith.constant 127 : index
    %151 = vector.load %arg12[%c0_136, %c127] : memref<8x5120xbf16, #tpu.memory_space<vmem>>, vector<8x384xbf16>
    %c24 = arith.constant 24 : index
    %c0_137 = arith.constant 0 : index
    %152 = vector.load %arg11[%c24, %c0_137] : memref<72x3072xbf16, #tpu.memory_space<vmem>>, vector<8x384xbf16>
    tpu.vector_store %arg11[%c24, %c0_137], %151 {strides = array<i32>} : memref<72x3072xbf16, #tpu.memory_space<vmem>>, vector<8x384xbf16>,
    %c0_138 = arith.constant 0 : index
    %c767 = arith.constant 767 : index
    %153 = vector.load %arg12[%c0_138, %c767] : memref<8x5120xbf16, #tpu.memory_space<vmem>>, vector<8x384xbf16>
    %c24_139 = arith.constant 24 : index
    %c384_140 = arith.constant 384 : index
    %154 = vector.load %arg11[%c24_139, %c384_140] : memref<72x3072xbf16, #tpu.memory_space<vmem>>, vector<8x384xbf16>
    tpu.vector_store %arg11[%c24_139, %c384_140], %153 {strides = array<i32>} : memref<72x3072xbf16, #tpu.memory_space<vmem>>, vector<8x384xbf16>,
    %c0_141 = arith.constant 0 : index
    %c1407 = arith.constant 1407 : index
    %155 = vector.load %arg12[%c0_141, %c1407] : memref<8x5120xbf16, #tpu.memory_space<vmem>>, vector<8x384xbf16>
    %c24_142 = arith.constant 24 : index
    %c768_143 = arith.constant 768 : index
    %156 = vector.load %arg11[%c24_142, %c768_143] : memref<72x3072xbf16, #tpu.memory_space<vmem>>, vector<8x384xbf16>
    tpu.vector_store %arg11[%c24_142, %c768_143], %155 {strides = array<i32>} : memref<72x3072xbf16, #tpu.memory_space<vmem>>, vector<8x384xbf16>,
    %c0_144 = arith.constant 0 : index
    %c2047 = arith.constant 2047 : index
    %157 = vector.load %arg12[%c0_144, %c2047] : memref<8x5120xbf16, #tpu.memory_space<vmem>>, vector<8x384xbf16>
    %c24_145 = arith.constant 24 : index
    %c1152_146 = arith.constant 1152 : index
    %158 = vector.load %arg11[%c24_145, %c1152_146] : memref<72x3072xbf16, #tpu.memory_space<vmem>>, vector<8x384xbf16>
    tpu.vector_store %arg11[%c24_145, %c1152_146], %157 {strides = array<i32>} : memref<72x3072xbf16, #tpu.memory_space<vmem>>, vector<8x384xbf16>,
    %c0_147 = arith.constant 0 : index
    %c2687 = arith.constant 2687 : index
    %159 = vector.load %arg12[%c0_147, %c2687] : memref<8x5120xbf16, #tpu.memory_space<vmem>>, vector<8x384xbf16>
    %c24_148 = arith.constant 24 : index
    %c1536_149 = arith.constant 1536 : index
    %160 = vector.load %arg11[%c24_148, %c1536_149] : memref<72x3072xbf16, #tpu.memory_space<vmem>>, vector<8x384xbf16>
    tpu.vector_store %arg11[%c24_148, %c1536_149], %159 {strides = array<i32>} : memref<72x3072xbf16, #tpu.memory_space<vmem>>, vector<8x384xbf16>,
    %c0_150 = arith.constant 0 : index
    %c3327 = arith.constant 3327 : index
    %161 = vector.load %arg12[%c0_150, %c3327] : memref<8x5120xbf16, #tpu.memory_space<vmem>>, vector<8x384xbf16>
    %c24_151 = arith.constant 24 : index
    %c1920_152 = arith.constant 1920 : index
    %162 = vector.load %arg11[%c24_151, %c1920_152] : memref<72x3072xbf16, #tpu.memory_space<vmem>>, vector<8x384xbf16>
    tpu.vector_store %arg11[%c24_151, %c1920_152], %161 {strides = array<i32>} : memref<72x3072xbf16, #tpu.memory_space<vmem>>, vector<8x384xbf16>,
    %c0_153 = arith.constant 0 : index
    %c3967 = arith.constant 3967 : index
    %163 = vector.load %arg12[%c0_153, %c3967] : memref<8x5120xbf16, #tpu.memory_space<vmem>>, vector<8x384xbf16>
    %c24_154 = arith.constant 24 : index
    %c2304_155 = arith.constant 2304 : index
    %164 = vector.load %arg11[%c24_154, %c2304_155] : memref<72x3072xbf16, #tpu.memory_space<vmem>>, vector<8x384xbf16>
    tpu.vector_store %arg11[%c24_154, %c2304_155], %163 {strides = array<i32>} : memref<72x3072xbf16, #tpu.memory_space<vmem>>, vector<8x384xbf16>,
    %c0_156 = arith.constant 0 : index
    %c4607 = arith.constant 4607 : index
    %165 = vector.load %arg12[%c0_156, %c4607] : memref<8x5120xbf16, #tpu.memory_space<vmem>>, vector<8x384xbf16>
    %c24_157 = arith.constant 24 : index
    %c2688_158 = arith.constant 2688 : index
    %166 = vector.load %arg11[%c24_157, %c2688_158] : memref<72x3072xbf16, #tpu.memory_space<vmem>>, vector<8x384xbf16>
    tpu.vector_store %arg11[%c24_157, %c2688_158], %165 {strides = array<i32>} : memref<72x3072xbf16, #tpu.memory_space<vmem>>, vector<8x384xbf16>,
    %c0_159 = arith.constant 0 : index
    %c128_160 = arith.constant 128 : index
    %167 = vector.load %arg12[%c0_159, %c128_160] : memref<8x5120xbf16, #tpu.memory_space<vmem>>, vector<8x384xbf16>
    %c32 = arith.constant 32 : index
    %c0_161 = arith.constant 0 : index
    %168 = vector.load %arg11[%c32, %c0_161] : memref<72x3072xbf16, #tpu.memory_space<vmem>>, vector<8x384xbf16>
    tpu.vector_store %arg11[%c32, %c0_161], %167 {strides = array<i32>} : memref<72x3072xbf16, #tpu.memory_space<vmem>>, vector<8x384xbf16>,
    %c0_162 = arith.constant 0 : index
    %c768_163 = arith.constant 768 : index
    %169 = vector.load %arg12[%c0_162, %c768_163] : memref<8x5120xbf16, #tpu.memory_space<vmem>>, vector<8x384xbf16>
    %c32_164 = arith.constant 32 : index
    %c384_165 = arith.constant 384 : index
    %170 = vector.load %arg11[%c32_164, %c384_165] : memref<72x3072xbf16, #tpu.memory_space<vmem>>, vector<8x384xbf16>
    tpu.vector_store %arg11[%c32_164, %c384_165], %169 {strides = array<i32>} : memref<72x3072xbf16, #tpu.memory_space<vmem>>, vector<8x384xbf16>,
    %c0_166 = arith.constant 0 : index
    %c1408_167 = arith.constant 1408 : index
    %171 = vector.load %arg12[%c0_166, %c1408_167] : memref<8x5120xbf16, #tpu.memory_space<vmem>>, vector<8x384xbf16>
    %c32_168 = arith.constant 32 : index
    %c768_169 = arith.constant 768 : index
    %172 = vector.load %arg11[%c32_168, %c768_169] : memref<72x3072xbf16, #tpu.memory_space<vmem>>, vector<8x384xbf16>
    tpu.vector_store %arg11[%c32_168, %c768_169], %171 {strides = array<i32>} : memref<72x3072xbf16, #tpu.memory_space<vmem>>, vector<8x384xbf16>,
    %c0_170 = arith.constant 0 : index
    %c2048_171 = arith.constant 2048 : index
    %173 = vector.load %arg12[%c0_170, %c2048_171] : memref<8x5120xbf16, #tpu.memory_space<vmem>>, vector<8x384xbf16>
    %c32_172 = arith.constant 32 : index
    %c1152_173 = arith.constant 1152 : index
    %174 = vector.load %arg11[%c32_172, %c1152_173] : memref<72x3072xbf16, #tpu.memory_space<vmem>>, vector<8x384xbf16>
    tpu.vector_store %arg11[%c32_172, %c1152_173], %173 {strides = array<i32>} : memref<72x3072xbf16, #tpu.memory_space<vmem>>, vector<8x384xbf16>,
    %c0_174 = arith.constant 0 : index
    %c2688_175 = arith.constant 2688 : index
    %175 = vector.load %arg12[%c0_174, %c2688_175] : memref<8x5120xbf16, #tpu.memory_space<vmem>>, vector<8x384xbf16>
    %c32_176 = arith.constant 32 : index
    %c1536_177 = arith.constant 1536 : index
    %176 = vector.load %arg11[%c32_176, %c1536_177] : memref<72x3072xbf16, #tpu.memory_space<vmem>>, vector<8x384xbf16>
    tpu.vector_store %arg11[%c32_176, %c1536_177], %175 {strides = array<i32>} : memref<72x3072xbf16, #tpu.memory_space<vmem>>, vector<8x384xbf16>,
    %c0_178 = arith.constant 0 : index
    %c3328_179 = arith.constant 3328 : index
    %177 = vector.load %arg12[%c0_178, %c3328_179] : memref<8x5120xbf16, #tpu.memory_space<vmem>>, vector<8x384xbf16>
    %c32_180 = arith.constant 32 : index
    %c1920_181 = arith.constant 1920 : index
    %178 = vector.load %arg11[%c32_180, %c1920_181] : memref<72x3072xbf16, #tpu.memory_space<vmem>>, vector<8x384xbf16>
    tpu.vector_store %arg11[%c32_180, %c1920_181], %177 {strides = array<i32>} : memref<72x3072xbf16, #tpu.memory_space<vmem>>, vector<8x384xbf16>,
    %c0_182 = arith.constant 0 : index
    %c3968_183 = arith.constant 3968 : index
    %179 = vector.load %arg12[%c0_182, %c3968_183] : memref<8x5120xbf16, #tpu.memory_space<vmem>>, vector<8x384xbf16>
    %c32_184 = arith.constant 32 : index
    %c2304_185 = arith.constant 2304 : index
    %180 = vector.load %arg11[%c32_184, %c2304_185] : memref<72x3072xbf16, #tpu.memory_space<vmem>>, vector<8x384xbf16>
    tpu.vector_store %arg11[%c32_184, %c2304_185], %179 {strides = array<i32>} : memref<72x3072xbf16, #tpu.memory_space<vmem>>, vector<8x384xbf16>,
    %c0_186 = arith.constant 0 : index
    %c4608_187 = arith.constant 4608 : index
    %181 = vector.load %arg12[%c0_186, %c4608_187] : memref<8x5120xbf16, #tpu.memory_space<vmem>>, vector<8x384xbf16>
    %c32_188 = arith.constant 32 : index
    %c2688_189 = arith.constant 2688 : index
    %182 = vector.load %arg11[%c32_188, %c2688_189] : memref<72x3072xbf16, #tpu.memory_space<vmem>>, vector<8x384xbf16>
    tpu.vector_store %arg11[%c32_188, %c2688_189], %181 {strides = array<i32>} : memref<72x3072xbf16, #tpu.memory_space<vmem>>, vector<8x384xbf16>,
    %c0_190 = arith.constant 0 : index
    %c129 = arith.constant 129 : index
    %183 = vector.load %arg12[%c0_190, %c129] : memref<8x5120xbf16, #tpu.memory_space<vmem>>, vector<8x384xbf16>
    %c40 = arith.constant 40 : index
    %c0_191 = arith.constant 0 : index
    %184 = vector.load %arg11[%c40, %c0_191] : memref<72x3072xbf16, #tpu.memory_space<vmem>>, vector<8x384xbf16>
    tpu.vector_store %arg11[%c40, %c0_191], %183 {strides = array<i32>} : memref<72x3072xbf16, #tpu.memory_space<vmem>>, vector<8x384xbf16>,
    %c0_192 = arith.constant 0 : index
    %c769 = arith.constant 769 : index
    %185 = vector.load %arg12[%c0_192, %c769] : memref<8x5120xbf16, #tpu.memory_space<vmem>>, vector<8x384xbf16>
    %c40_193 = arith.constant 40 : index
    %c384_194 = arith.constant 384 : index
    %186 = vector.load %arg11[%c40_193, %c384_194] : memref<72x3072xbf16, #tpu.memory_space<vmem>>, vector<8x384xbf16>
    tpu.vector_store %arg11[%c40_193, %c384_194], %185 {strides = array<i32>} : memref<72x3072xbf16, #tpu.memory_space<vmem>>, vector<8x384xbf16>,
    %c0_195 = arith.constant 0 : index
    %c1409 = arith.constant 1409 : index
    %187 = vector.load %arg12[%c0_195, %c1409] : memref<8x5120xbf16, #tpu.memory_space<vmem>>, vector<8x384xbf16>
    %c40_196 = arith.constant 40 : index
    %c768_197 = arith.constant 768 : index
    %188 = vector.load %arg11[%c40_196, %c768_197] : memref<72x3072xbf16, #tpu.memory_space<vmem>>, vector<8x384xbf16>
    tpu.vector_store %arg11[%c40_196, %c768_197], %187 {strides = array<i32>} : memref<72x3072xbf16, #tpu.memory_space<vmem>>, vector<8x384xbf16>,
    %c0_198 = arith.constant 0 : index
    %c2049 = arith.constant 2049 : index
    %189 = vector.load %arg12[%c0_198, %c2049] : memref<8x5120xbf16, #tpu.memory_space<vmem>>, vector<8x384xbf16>
    %c40_199 = arith.constant 40 : index
    %c1152_200 = arith.constant 1152 : index
    %190 = vector.load %arg11[%c40_199, %c1152_200] : memref<72x3072xbf16, #tpu.memory_space<vmem>>, vector<8x384xbf16>
    tpu.vector_store %arg11[%c40_199, %c1152_200], %189 {strides = array<i32>} : memref<72x3072xbf16, #tpu.memory_space<vmem>>, vector<8x384xbf16>,
    %c0_201 = arith.constant 0 : index
    %c2689 = arith.constant 2689 : index
    %191 = vector.load %arg12[%c0_201, %c2689] : memref<8x5120xbf16, #tpu.memory_space<vmem>>, vector<8x384xbf16>
    %c40_202 = arith.constant 40 : index
    %c1536_203 = arith.constant 1536 : index
    %192 = vector.load %arg11[%c40_202, %c1536_203] : memref<72x3072xbf16, #tpu.memory_space<vmem>>, vector<8x384xbf16>
    tpu.vector_store %arg11[%c40_202, %c1536_203], %191 {strides = array<i32>} : memref<72x3072xbf16, #tpu.memory_space<vmem>>, vector<8x384xbf16>,
    %c0_204 = arith.constant 0 : index
    %c3329 = arith.constant 3329 : index
    %193 = vector.load %arg12[%c0_204, %c3329] : memref<8x5120xbf16, #tpu.memory_space<vmem>>, vector<8x384xbf16>
    %c40_205 = arith.constant 40 : index
    %c1920_206 = arith.constant 1920 : index
    %194 = vector.load %arg11[%c40_205, %c1920_206] : memref<72x3072xbf16, #tpu.memory_space<vmem>>, vector<8x384xbf16>
    tpu.vector_store %arg11[%c40_205, %c1920_206], %193 {strides = array<i32>} : memref<72x3072xbf16, #tpu.memory_space<vmem>>, vector<8x384xbf16>,
    %c0_207 = arith.constant 0 : index
    %c3969 = arith.constant 3969 : index
    %195 = vector.load %arg12[%c0_207, %c3969] : memref<8x5120xbf16, #tpu.memory_space<vmem>>, vector<8x384xbf16>
    %c40_208 = arith.constant 40 : index
    %c2304_209 = arith.constant 2304 : index
    %196 = vector.load %arg11[%c40_208, %c2304_209] : memref<72x3072xbf16, #tpu.memory_space<vmem>>, vector<8x384xbf16>
    tpu.vector_store %arg11[%c40_208, %c2304_209], %195 {strides = array<i32>} : memref<72x3072xbf16, #tpu.memory_space<vmem>>, vector<8x384xbf16>,
    %c0_210 = arith.constant 0 : index
    %c4609 = arith.constant 4609 : index
    %197 = vector.load %arg12[%c0_210, %c4609] : memref<8x5120xbf16, #tpu.memory_space<vmem>>, vector<8x384xbf16>
    %c40_211 = arith.constant 40 : index
    %c2688_212 = arith.constant 2688 : index
    %198 = vector.load %arg11[%c40_211, %c2688_212] : memref<72x3072xbf16, #tpu.memory_space<vmem>>, vector<8x384xbf16>
    tpu.vector_store %arg11[%c40_211, %c2688_212], %197 {strides = array<i32>} : memref<72x3072xbf16, #tpu.memory_space<vmem>>, vector<8x384xbf16>,
    %c0_213 = arith.constant 0 : index
    %c151 = arith.constant 151 : index
    %199 = vector.load %arg12[%c0_213, %c151] : memref<8x5120xbf16, #tpu.memory_space<vmem>>, vector<8x384xbf16>
    %c48 = arith.constant 48 : index
    %c0_214 = arith.constant 0 : index
    %200 = vector.load %arg11[%c48, %c0_214] : memref<72x3072xbf16, #tpu.memory_space<vmem>>, vector<8x384xbf16>
    tpu.vector_store %arg11[%c48, %c0_214], %199 {strides = array<i32>} : memref<72x3072xbf16, #tpu.memory_space<vmem>>, vector<8x384xbf16>,
    %c0_215 = arith.constant 0 : index
    %c791 = arith.constant 791 : index
    %201 = vector.load %arg12[%c0_215, %c791] : memref<8x5120xbf16, #tpu.memory_space<vmem>>, vector<8x384xbf16>
    %c48_216 = arith.constant 48 : index
    %c384_217 = arith.constant 384 : index
    %202 = vector.load %arg11[%c48_216, %c384_217] : memref<72x3072xbf16, #tpu.memory_space<vmem>>, vector<8x384xbf16>
    tpu.vector_store %arg11[%c48_216, %c384_217], %201 {strides = array<i32>} : memref<72x3072xbf16, #tpu.memory_space<vmem>>, vector<8x384xbf16>,
    %c0_218 = arith.constant 0 : index
    %c1431 = arith.constant 1431 : index
    %203 = vector.load %arg12[%c0_218, %c1431] : memref<8x5120xbf16, #tpu.memory_space<vmem>>, vector<8x384xbf16>
    %c48_219 = arith.constant 48 : index
    %c768_220 = arith.constant 768 : index
    %204 = vector.load %arg11[%c48_219, %c768_220] : memref<72x3072xbf16, #tpu.memory_space<vmem>>, vector<8x384xbf16>
    tpu.vector_store %arg11[%c48_219, %c768_220], %203 {strides = array<i32>} : memref<72x3072xbf16, #tpu.memory_space<vmem>>, vector<8x384xbf16>,
    %c0_221 = arith.constant 0 : index
    %c2071 = arith.constant 2071 : index
    %205 = vector.load %arg12[%c0_221, %c2071] : memref<8x5120xbf16, #tpu.memory_space<vmem>>, vector<8x384xbf16>
    %c48_222 = arith.constant 48 : index
    %c1152_223 = arith.constant 1152 : index
    %206 = vector.load %arg11[%c48_222, %c1152_223] : memref<72x3072xbf16, #tpu.memory_space<vmem>>, vector<8x384xbf16>
    tpu.vector_store %arg11[%c48_222, %c1152_223], %205 {strides = array<i32>} : memref<72x3072xbf16, #tpu.memory_space<vmem>>, vector<8x384xbf16>,
    %c0_224 = arith.constant 0 : index
    %c2711 = arith.constant 2711 : index
    %207 = vector.load %arg12[%c0_224, %c2711] : memref<8x5120xbf16, #tpu.memory_space<vmem>>, vector<8x384xbf16>
    %c48_225 = arith.constant 48 : index
    %c1536_226 = arith.constant 1536 : index
    %208 = vector.load %arg11[%c48_225, %c1536_226] : memref<72x3072xbf16, #tpu.memory_space<vmem>>, vector<8x384xbf16>
    tpu.vector_store %arg11[%c48_225, %c1536_226], %207 {strides = array<i32>} : memref<72x3072xbf16, #tpu.memory_space<vmem>>, vector<8x384xbf16>,
    %c0_227 = arith.constant 0 : index
    %c3351 = arith.constant 3351 : index
    %209 = vector.load %arg12[%c0_227, %c3351] : memref<8x5120xbf16, #tpu.memory_space<vmem>>, vector<8x384xbf16>
    %c48_228 = arith.constant 48 : index
    %c1920_229 = arith.constant 1920 : index
    %210 = vector.load %arg11[%c48_228, %c1920_229] : memref<72x3072xbf16, #tpu.memory_space<vmem>>, vector<8x384xbf16>
    tpu.vector_store %arg11[%c48_228, %c1920_229], %209 {strides = array<i32>} : memref<72x3072xbf16, #tpu.memory_space<vmem>>, vector<8x384xbf16>,
    %c0_230 = arith.constant 0 : index
    %c3991 = arith.constant 3991 : index
    %211 = vector.load %arg12[%c0_230, %c3991] : memref<8x5120xbf16, #tpu.memory_space<vmem>>, vector<8x384xbf16>
    %c48_231 = arith.constant 48 : index
    %c2304_232 = arith.constant 2304 : index
    %212 = vector.load %arg11[%c48_231, %c2304_232] : memref<72x3072xbf16, #tpu.memory_space<vmem>>, vector<8x384xbf16>
    tpu.vector_store %arg11[%c48_231, %c2304_232], %211 {strides = array<i32>} : memref<72x3072xbf16, #tpu.memory_space<vmem>>, vector<8x384xbf16>,
    %c0_233 = arith.constant 0 : index
    %c4631 = arith.constant 4631 : index
    %213 = vector.load %arg12[%c0_233, %c4631] : memref<8x5120xbf16, #tpu.memory_space<vmem>>, vector<8x384xbf16>
    %c48_234 = arith.constant 48 : index
    %c2688_235 = arith.constant 2688 : index
    %214 = vector.load %arg11[%c48_234, %c2688_235] : memref<72x3072xbf16, #tpu.memory_space<vmem>>, vector<8x384xbf16>
    tpu.vector_store %arg11[%c48_234, %c2688_235], %213 {strides = array<i32>} : memref<72x3072xbf16, #tpu.memory_space<vmem>>, vector<8x384xbf16>,
    %c0_236 = arith.constant 0 : index
    %c152 = arith.constant 152 : index
    %215 = vector.load %arg12[%c0_236, %c152] : memref<8x5120xbf16, #tpu.memory_space<vmem>>, vector<8x384xbf16>
    %c56 = arith.constant 56 : index
    %c0_237 = arith.constant 0 : index
    %216 = vector.load %arg11[%c56, %c0_237] : memref<72x3072xbf16, #tpu.memory_space<vmem>>, vector<8x384xbf16>
    tpu.vector_store %arg11[%c56, %c0_237], %215 {strides = array<i32>} : memref<72x3072xbf16, #tpu.memory_space<vmem>>, vector<8x384xbf16>,
    %c0_238 = arith.constant 0 : index
    %c792 = arith.constant 792 : index
    %217 = vector.load %arg12[%c0_238, %c792] : memref<8x5120xbf16, #tpu.memory_space<vmem>>, vector<8x384xbf16>
    %c56_239 = arith.constant 56 : index
    %c384_240 = arith.constant 384 : index
    %218 = vector.load %arg11[%c56_239, %c384_240] : memref<72x3072xbf16, #tpu.memory_space<vmem>>, vector<8x384xbf16>
    tpu.vector_store %arg11[%c56_239, %c384_240], %217 {strides = array<i32>} : memref<72x3072xbf16, #tpu.memory_space<vmem>>, vector<8x384xbf16>,
    %c0_241 = arith.constant 0 : index
    %c1432 = arith.constant 1432 : index
    %219 = vector.load %arg12[%c0_241, %c1432] : memref<8x5120xbf16, #tpu.memory_space<vmem>>, vector<8x384xbf16>
    %c56_242 = arith.constant 56 : index
    %c768_243 = arith.constant 768 : index
    %220 = vector.load %arg11[%c56_242, %c768_243] : memref<72x3072xbf16, #tpu.memory_space<vmem>>, vector<8x384xbf16>
    tpu.vector_store %arg11[%c56_242, %c768_243], %219 {strides = array<i32>} : memref<72x3072xbf16, #tpu.memory_space<vmem>>, vector<8x384xbf16>,
    %c0_244 = arith.constant 0 : index
    %c2072 = arith.constant 2072 : index
    %221 = vector.load %arg12[%c0_244, %c2072] : memref<8x5120xbf16, #tpu.memory_space<vmem>>, vector<8x384xbf16>
    %c56_245 = arith.constant 56 : index
    %c1152_246 = arith.constant 1152 : index
    %222 = vector.load %arg11[%c56_245, %c1152_246] : memref<72x3072xbf16, #tpu.memory_space<vmem>>, vector<8x384xbf16>
    tpu.vector_store %arg11[%c56_245, %c1152_246], %221 {strides = array<i32>} : memref<72x3072xbf16, #tpu.memory_space<vmem>>, vector<8x384xbf16>,
    %c0_247 = arith.constant 0 : index
    %c2712 = arith.constant 2712 : index
    %223 = vector.load %arg12[%c0_247, %c2712] : memref<8x5120xbf16, #tpu.memory_space<vmem>>, vector<8x384xbf16>
    %c56_248 = arith.constant 56 : index
    %c1536_249 = arith.constant 1536 : index
    %224 = vector.load %arg11[%c56_248, %c1536_249] : memref<72x3072xbf16, #tpu.memory_space<vmem>>, vector<8x384xbf16>
    tpu.vector_store %arg11[%c56_248, %c1536_249], %223 {strides = array<i32>} : memref<72x3072xbf16, #tpu.memory_space<vmem>>, vector<8x384xbf16>,
    %c0_250 = arith.constant 0 : index
    %c3352 = arith.constant 3352 : index
    %225 = vector.load %arg12[%c0_250, %c3352] : memref<8x5120xbf16, #tpu.memory_space<vmem>>, vector<8x384xbf16>
    %c56_251 = arith.constant 56 : index
    %c1920_252 = arith.constant 1920 : index
    %226 = vector.load %arg11[%c56_251, %c1920_252] : memref<72x3072xbf16, #tpu.memory_space<vmem>>, vector<8x384xbf16>
    tpu.vector_store %arg11[%c56_251, %c1920_252], %225 {strides = array<i32>} : memref<72x3072xbf16, #tpu.memory_space<vmem>>, vector<8x384xbf16>,
    %c0_253 = arith.constant 0 : index
    %c3992 = arith.constant 3992 : index
    %227 = vector.load %arg12[%c0_253, %c3992] : memref<8x5120xbf16, #tpu.memory_space<vmem>>, vector<8x384xbf16>
    %c56_254 = arith.constant 56 : index
    %c2304_255 = arith.constant 2304 : index
    %228 = vector.load %arg11[%c56_254, %c2304_255] : memref<72x3072xbf16, #tpu.memory_space<vmem>>, vector<8x384xbf16>
    tpu.vector_store %arg11[%c56_254, %c2304_255], %227 {strides = array<i32>} : memref<72x3072xbf16, #tpu.memory_space<vmem>>, vector<8x384xbf16>,
    %c0_256 = arith.constant 0 : index
    %c4632 = arith.constant 4632 : index
    %229 = vector.load %arg12[%c0_256, %c4632] : memref<8x5120xbf16, #tpu.memory_space<vmem>>, vector<8x384xbf16>
    %c56_257 = arith.constant 56 : index
    %c2688_258 = arith.constant 2688 : index
    %230 = vector.load %arg11[%c56_257, %c2688_258] : memref<72x3072xbf16, #tpu.memory_space<vmem>>, vector<8x384xbf16>
    tpu.vector_store %arg11[%c56_257, %c2688_258], %229 {strides = array<i32>} : memref<72x3072xbf16, #tpu.memory_space<vmem>>, vector<8x384xbf16>,
    %c0_259 = arith.constant 0 : index
    %c153 = arith.constant 153 : index
    %231 = vector.load %arg12[%c0_259, %c153] : memref<8x5120xbf16, #tpu.memory_space<vmem>>, vector<8x384xbf16>
    %c64 = arith.constant 64 : index
    %c0_260 = arith.constant 0 : index
    %232 = vector.load %arg11[%c64, %c0_260] : memref<72x3072xbf16, #tpu.memory_space<vmem>>, vector<8x384xbf16>
    tpu.vector_store %arg11[%c64, %c0_260], %231 {strides = array<i32>} : memref<72x3072xbf16, #tpu.memory_space<vmem>>, vector<8x384xbf16>,
    %c0_261 = arith.constant 0 : index
    %c793 = arith.constant 793 : index
    %233 = vector.load %arg12[%c0_261, %c793] : memref<8x5120xbf16, #tpu.memory_space<vmem>>, vector<8x384xbf16>
    %c64_262 = arith.constant 64 : index
    %c384_263 = arith.constant 384 : index
    %234 = vector.load %arg11[%c64_262, %c384_263] : memref<72x3072xbf16, #tpu.memory_space<vmem>>, vector<8x384xbf16>
    tpu.vector_store %arg11[%c64_262, %c384_263], %233 {strides = array<i32>} : memref<72x3072xbf16, #tpu.memory_space<vmem>>, vector<8x384xbf16>,
    %c0_264 = arith.constant 0 : index
    %c1433 = arith.constant 1433 : index
    %235 = vector.load %arg12[%c0_264, %c1433] : memref<8x5120xbf16, #tpu.memory_space<vmem>>, vector<8x384xbf16>
    %c64_265 = arith.constant 64 : index
    %c768_266 = arith.constant 768 : index
    %236 = vector.load %arg11[%c64_265, %c768_266] : memref<72x3072xbf16, #tpu.memory_space<vmem>>, vector<8x384xbf16>
    tpu.vector_store %arg11[%c64_265, %c768_266], %235 {strides = array<i32>} : memref<72x3072xbf16, #tpu.memory_space<vmem>>, vector<8x384xbf16>,
    %c0_267 = arith.constant 0 : index
    %c2073 = arith.constant 2073 : index
    %237 = vector.load %arg12[%c0_267, %c2073] : memref<8x5120xbf16, #tpu.memory_space<vmem>>, vector<8x384xbf16>
    %c64_268 = arith.constant 64 : index
    %c1152_269 = arith.constant 1152 : index
    %238 = vector.load %arg11[%c64_268, %c1152_269] : memref<72x3072xbf16, #tpu.memory_space<vmem>>, vector<8x384xbf16>
    tpu.vector_store %arg11[%c64_268, %c1152_269], %237 {strides = array<i32>} : memref<72x3072xbf16, #tpu.memory_space<vmem>>, vector<8x384xbf16>,
    %c0_270 = arith.constant 0 : index
    %c2713 = arith.constant 2713 : index
    %239 = vector.load %arg12[%c0_270, %c2713] : memref<8x5120xbf16, #tpu.memory_space<vmem>>, vector<8x384xbf16>
    %c64_271 = arith.constant 64 : index
    %c1536_272 = arith.constant 1536 : index
    %240 = vector.load %arg11[%c64_271, %c1536_272] : memref<72x3072xbf16, #tpu.memory_space<vmem>>, vector<8x384xbf16>
    tpu.vector_store %arg11[%c64_271, %c1536_272], %239 {strides = array<i32>} : memref<72x3072xbf16, #tpu.memory_space<vmem>>, vector<8x384xbf16>,
    %c0_273 = arith.constant 0 : index
    %c3353 = arith.constant 3353 : index
    %241 = vector.load %arg12[%c0_273, %c3353] : memref<8x5120xbf16, #tpu.memory_space<vmem>>, vector<8x384xbf16>
    %c64_274 = arith.constant 64 : index
    %c1920_275 = arith.constant 1920 : index
    %242 = vector.load %arg11[%c64_274, %c1920_275] : memref<72x3072xbf16, #tpu.memory_space<vmem>>, vector<8x384xbf16>
    tpu.vector_store %arg11[%c64_274, %c1920_275], %241 {strides = array<i32>} : memref<72x3072xbf16, #tpu.memory_space<vmem>>, vector<8x384xbf16>,
    %c0_276 = arith.constant 0 : index
    %c3993 = arith.constant 3993 : index
    %243 = vector.load %arg12[%c0_276, %c3993] : memref<8x5120xbf16, #tpu.memory_space<vmem>>, vector<8x384xbf16>
    %c64_277 = arith.constant 64 : index
    %c2304_278 = arith.constant 2304 : index
    %244 = vector.load %arg11[%c64_277, %c2304_278] : memref<72x3072xbf16, #tpu.memory_space<vmem>>, vector<8x384xbf16>
    tpu.vector_store %arg11[%c64_277, %c2304_278], %243 {strides = array<i32>} : memref<72x3072xbf16, #tpu.memory_space<vmem>>, vector<8x384xbf16>,
    %c0_279 = arith.constant 0 : index
    %c4633 = arith.constant 4633 : index
    %245 = vector.load %arg12[%c0_279, %c4633] : memref<8x5120xbf16, #tpu.memory_space<vmem>>, vector<8x384xbf16>
    %c64_280 = arith.constant 64 : index
    %c2688_281 = arith.constant 2688 : index
    %246 = vector.load %arg11[%c64_280, %c2688_281] : memref<72x3072xbf16, #tpu.memory_space<vmem>>, vector<8x384xbf16>
    tpu.vector_store %arg11[%c64_280, %c2688_281], %245 {strides = array<i32>} : memref<72x3072xbf16, #tpu.memory_space<vmem>>, vector<8x384xbf16>,
    %c0_282 = arith.constant 0 : index
    %c0_283 = arith.constant 0 : index
    %247 = vector.load %arg4[%c0_282, %c0_283] : memref<8x72xbf16, #tpu.memory_space<vmem>>, vector<8x72xbf16>
    %c0_284 = arith.constant 0 : index
    %c0_285 = arith.constant 0 : index
    %248 = vector.load %arg11[%c0_284, %c0_285] : memref<72x3072xbf16, #tpu.memory_space<vmem>>, vector<72x3072xbf16>
    %cst_286 = arith.constant dense<0.000000e+00> : vector<8x3072xf32>
    %249 = tpu.matmul %247, %248, %cst_286 {dimension_numbers = #tpu.dot_dimension_numbers<[1], [0], [0], [1], [0, 0, 1, 1], [], []>} : vector<8x72xbf16>, vector<72x3072xbf16>, vector<8x3072xf32> -> vector<8x3072xf32>
    %c0_287 = arith.constant 0 : index
    %c0_288 = arith.constant 0 : index
    %250 = vector.load %arg5[%c0_287, %c0_288] : memref<8x1xf32, #tpu.memory_space<vmem>>, vector<8x1xf32>
    %251 = vector.broadcast %250 : vector<8x1xf32> to vector<8x3072xf32>
    %252 = arith.addf %249, %251 : vector<8x3072xf32>
    %c0_289 = arith.constant 0 : index
    %c0_290 = arith.constant 0 : index
    %253 = vector.load %arg9[%c0_289, %c0_290] : memref<8x3072xf32, #tpu.memory_space<vmem>>, vector<8x3072xf32>
    tpu.vector_store %arg9[%c0_289, %c0_290], %252 {strides = array<i32>} : memref<8x3072xf32, #tpu.memory_space<vmem>>, vector<8x3072xf32>,
    %c0_291 = arith.constant 0 : index
    %c0_292 = arith.constant 0 : index
    %254 = vector.load %arg9[%c0_291, %c0_292] : memref<8x3072xf32, #tpu.memory_space<vmem>>, vector<8x768xf32>
    %c0_293 = arith.constant 0 : index
    %c0_294 = arith.constant 0 : index
    %255 = vector.load %arg14[%c0_293, %c0_294] : memref<8x768xf32, #tpu.memory_space<vmem>>, vector<8x768xf32>
    %256 = arith.subf %254, %255 : vector<8x768xf32>
    %cst_295 = arith.constant 5.000000e-01 : f32
    %257 = vector.broadcast %cst_295 : f32 to vector<8x768xf32>
    %258 = arith.mulf %256, %257 : vector<8x768xf32>
    %259 = arith.addf %255, %258 : vector<8x768xf32>
    %cst_296 = arith.constant 1.000000e+00 : f32
    %260 = vector.broadcast %cst_296 : f32 to vector<8x768xf32>
    %261 = arith.cmpf oge, %259, %260 : vector<8x768xf32>
    %262 = arith.extui %261 : vector<8x768xi1> to vector<8x768xi32>
    %263 = arith.sitofp %262 : vector<8x768xi32> to vector<8x768xf32>
    %cst_297 = arith.constant 1.000000e+00 : f32
    %264 = vector.broadcast %cst_297 : f32 to vector<8x768xf32>
    %265 = arith.subf %264, %263 : vector<8x768xf32>
    %266 = arith.mulf %259, %265 : vector<8x768xf32>
    %c0_298 = arith.constant 0 : index
    %c0_299 = arith.constant 0 : index
    %267 = vector.load %arg14[%c0_298, %c0_299] : memref<8x768xf32, #tpu.memory_space<vmem>>, vector<8x768xf32>
    tpu.vector_store %arg14[%c0_298, %c0_299], %266 {strides = array<i32>} : memref<8x768xf32, #tpu.memory_space<vmem>>, vector<8x768xf32>,
    %c0_300 = arith.constant 0 : index
    %c0_301 = arith.constant 0 : index
    %268 = vector.load %arg10[%c0_300, %c0_301] : memref<8x3072xf32, #tpu.memory_space<vmem>>, vector<8x768xf32>
    %cst_302 = arith.constant 1.000000e+00 : f32
    %269 = vector.broadcast %cst_302 : f32 to vector<8x768xf32>
    %270 = arith.subf %269, %268 : vector<8x768xf32>
    %cst_303 = arith.constant 1.000000e+00 : f32
    %271 = vector.broadcast %cst_303 : f32 to vector<8x768xf32>
    %272 = arith.subf %271, %263 : vector<8x768xf32>
    %273 = arith.mulf %270, %272 : vector<8x768xf32>
    %cst_304 = arith.constant 1.000000e+00 : f32
    %274 = vector.broadcast %cst_304 : f32 to vector<8x768xf32>
    %275 = arith.subf %274, %273 : vector<8x768xf32>
    %c0_305 = arith.constant 0 : index
    %c0_306 = arith.constant 0 : index
    %c0_307 = arith.constant 0 : index
    %c0_308 = arith.constant 0 : index
    %276 = vector.load %arg7[%c0_305, %c0_306, %c0_307, %c0_308] : memref<4x1x8x768xf32, #tpu.memory_space<vmem>>, vector<1x1x8x768xf32>
    %277 = vector.shape_cast %276 : vector<1x1x8x768xf32> to vector<8x768xf32>
    %278 = vector.shape_cast %275 : vector<8x768xf32> to vector<1x1x8x768xf32>
    tpu.vector_store %arg7[%c0_305, %c0_306, %c0_307, %c0_308], %278 {strides = array<i32>} : memref<4x1x8x768xf32, #tpu.memory_space<vmem>>, vector<1x1x8x768xf32>,
    %c0_309 = arith.constant 0 : index
    %c768_310 = arith.constant 768 : index
    %279 = vector.load %arg9[%c0_309, %c768_310] : memref<8x3072xf32, #tpu.memory_space<vmem>>, vector<8x768xf32>
    %c0_311 = arith.constant 0 : index
    %c0_312 = arith.constant 0 : index
    %280 = vector.load %arg14[%c0_311, %c0_312] : memref<8x768xf32, #tpu.memory_space<vmem>>, vector<8x768xf32>
    %281 = arith.subf %279, %280 : vector<8x768xf32>
    %cst_313 = arith.constant 5.000000e-01 : f32
    %282 = vector.broadcast %cst_313 : f32 to vector<8x768xf32>
    %283 = arith.mulf %281, %282 : vector<8x768xf32>
    %284 = arith.addf %280, %283 : vector<8x768xf32>
    %cst_314 = arith.constant 1.000000e+00 : f32
    %285 = vector.broadcast %cst_314 : f32 to vector<8x768xf32>
    %286 = arith.cmpf oge, %284, %285 : vector<8x768xf32>
    %287 = arith.extui %286 : vector<8x768xi1> to vector<8x768xi32>
    %288 = arith.sitofp %287 : vector<8x768xi32> to vector<8x768xf32>
    %cst_315 = arith.constant 1.000000e+00 : f32
    %289 = vector.broadcast %cst_315 : f32 to vector<8x768xf32>
    %290 = arith.subf %289, %288 : vector<8x768xf32>
    %291 = arith.mulf %284, %290 : vector<8x768xf32>
    %c0_316 = arith.constant 0 : index
    %c0_317 = arith.constant 0 : index
    %292 = vector.load %arg14[%c0_316, %c0_317] : memref<8x768xf32, #tpu.memory_space<vmem>>, vector<8x768xf32>
    tpu.vector_store %arg14[%c0_316, %c0_317], %291 {strides = array<i32>} : memref<8x768xf32, #tpu.memory_space<vmem>>, vector<8x768xf32>,
    %c0_318 = arith.constant 0 : index
    %c768_319 = arith.constant 768 : index
    %293 = vector.load %arg10[%c0_318, %c768_319] : memref<8x3072xf32, #tpu.memory_space<vmem>>, vector<8x768xf32>
    %cst_320 = arith.constant 1.000000e+00 : f32
    %294 = vector.broadcast %cst_320 : f32 to vector<8x768xf32>
    %295 = arith.subf %294, %293 : vector<8x768xf32>
    %cst_321 = arith.constant 1.000000e+00 : f32
    %296 = vector.broadcast %cst_321 : f32 to vector<8x768xf32>
    %297 = arith.subf %296, %288 : vector<8x768xf32>
    %298 = arith.mulf %295, %297 : vector<8x768xf32>
    %cst_322 = arith.constant 1.000000e+00 : f32
    %299 = vector.broadcast %cst_322 : f32 to vector<8x768xf32>
    %300 = arith.subf %299, %298 : vector<8x768xf32>
    %c1 = arith.constant 1 : index
    %c0_323 = arith.constant 0 : index
    %c0_324 = arith.constant 0 : index
    %c0_325 = arith.constant 0 : index
    %301 = vector.load %arg7[%c1, %c0_323, %c0_324, %c0_325] : memref<4x1x8x768xf32, #tpu.memory_space<vmem>>, vector<1x1x8x768xf32>
    %302 = vector.shape_cast %301 : vector<1x1x8x768xf32> to vector<8x768xf32>
    %303 = vector.shape_cast %300 : vector<8x768xf32> to vector<1x1x8x768xf32>
    tpu.vector_store %arg7[%c1, %c0_323, %c0_324, %c0_325], %303 {strides = array<i32>} : memref<4x1x8x768xf32, #tpu.memory_space<vmem>>, vector<1x1x8x768xf32>,
    %c0_326 = arith.constant 0 : index
    %c1536_327 = arith.constant 1536 : index
    %304 = vector.load %arg9[%c0_326, %c1536_327] : memref<8x3072xf32, #tpu.memory_space<vmem>>, vector<8x768xf32>
    %c0_328 = arith.constant 0 : index
    %c0_329 = arith.constant 0 : index
    %305 = vector.load %arg14[%c0_328, %c0_329] : memref<8x768xf32, #tpu.memory_space<vmem>>, vector<8x768xf32>
    %306 = arith.subf %304, %305 : vector<8x768xf32>
    %cst_330 = arith.constant 5.000000e-01 : f32
    %307 = vector.broadcast %cst_330 : f32 to vector<8x768xf32>
    %308 = arith.mulf %306, %307 : vector<8x768xf32>
    %309 = arith.addf %305, %308 : vector<8x768xf32>
    %cst_331 = arith.constant 1.000000e+00 : f32
    %310 = vector.broadcast %cst_331 : f32 to vector<8x768xf32>
    %311 = arith.cmpf oge, %309, %310 : vector<8x768xf32>
    %312 = arith.extui %311 : vector<8x768xi1> to vector<8x768xi32>
    %313 = arith.sitofp %312 : vector<8x768xi32> to vector<8x768xf32>
    %cst_332 = arith.constant 1.000000e+00 : f32
    %314 = vector.broadcast %cst_332 : f32 to vector<8x768xf32>
    %315 = arith.subf %314, %313 : vector<8x768xf32>
    %316 = arith.mulf %309, %315 : vector<8x768xf32>
    %c0_333 = arith.constant 0 : index
    %c0_334 = arith.constant 0 : index
    %317 = vector.load %arg14[%c0_333, %c0_334] : memref<8x768xf32, #tpu.memory_space<vmem>>, vector<8x768xf32>
    tpu.vector_store %arg14[%c0_333, %c0_334], %316 {strides = array<i32>} : memref<8x768xf32, #tpu.memory_space<vmem>>, vector<8x768xf32>,
    %c0_335 = arith.constant 0 : index
    %c1536_336 = arith.constant 1536 : index
    %318 = vector.load %arg10[%c0_335, %c1536_336] : memref<8x3072xf32, #tpu.memory_space<vmem>>, vector<8x768xf32>
    %cst_337 = arith.constant 1.000000e+00 : f32
    %319 = vector.broadcast %cst_337 : f32 to vector<8x768xf32>
    %320 = arith.subf %319, %318 : vector<8x768xf32>
    %cst_338 = arith.constant 1.000000e+00 : f32
    %321 = vector.broadcast %cst_338 : f32 to vector<8x768xf32>
    %322 = arith.subf %321, %313 : vector<8x768xf32>
    %323 = arith.mulf %320, %322 : vector<8x768xf32>
    %cst_339 = arith.constant 1.000000e+00 : f32
    %324 = vector.broadcast %cst_339 : f32 to vector<8x768xf32>
    %325 = arith.subf %324, %323 : vector<8x768xf32>
    %c2 = arith.constant 2 : index
    %c0_340 = arith.constant 0 : index
    %c0_341 = arith.constant 0 : index
    %c0_342 = arith.constant 0 : index
    %326 = vector.load %arg7[%c2, %c0_340, %c0_341, %c0_342] : memref<4x1x8x768xf32, #tpu.memory_space<vmem>>, vector<1x1x8x768xf32>
    %327 = vector.shape_cast %326 : vector<1x1x8x768xf32> to vector<8x768xf32>
    %328 = vector.shape_cast %325 : vector<8x768xf32> to vector<1x1x8x768xf32>
    tpu.vector_store %arg7[%c2, %c0_340, %c0_341, %c0_342], %328 {strides = array<i32>} : memref<4x1x8x768xf32, #tpu.memory_space<vmem>>, vector<1x1x8x768xf32>,
    %c0_343 = arith.constant 0 : index
    %c2304_344 = arith.constant 2304 : index
    %329 = vector.load %arg9[%c0_343, %c2304_344] : memref<8x3072xf32, #tpu.memory_space<vmem>>, vector<8x768xf32>
    %c0_345 = arith.constant 0 : index
    %c0_346 = arith.constant 0 : index
    %330 = vector.load %arg14[%c0_345, %c0_346] : memref<8x768xf32, #tpu.memory_space<vmem>>, vector<8x768xf32>
    %331 = arith.subf %329, %330 : vector<8x768xf32>
    %cst_347 = arith.constant 5.000000e-01 : f32
    %332 = vector.broadcast %cst_347 : f32 to vector<8x768xf32>
    %333 = arith.mulf %331, %332 : vector<8x768xf32>
    %334 = arith.addf %330, %333 : vector<8x768xf32>
    %cst_348 = arith.constant 1.000000e+00 : f32
    %335 = vector.broadcast %cst_348 : f32 to vector<8x768xf32>
    %336 = arith.cmpf oge, %334, %335 : vector<8x768xf32>
    %337 = arith.extui %336 : vector<8x768xi1> to vector<8x768xi32>
    %338 = arith.sitofp %337 : vector<8x768xi32> to vector<8x768xf32>
    %cst_349 = arith.constant 1.000000e+00 : f32
    %339 = vector.broadcast %cst_349 : f32 to vector<8x768xf32>
    %340 = arith.subf %339, %338 : vector<8x768xf32>
    %341 = arith.mulf %334, %340 : vector<8x768xf32>
    %c0_350 = arith.constant 0 : index
    %c0_351 = arith.constant 0 : index
    %342 = vector.load %arg14[%c0_350, %c0_351] : memref<8x768xf32, #tpu.memory_space<vmem>>, vector<8x768xf32>
    tpu.vector_store %arg14[%c0_350, %c0_351], %341 {strides = array<i32>} : memref<8x768xf32, #tpu.memory_space<vmem>>, vector<8x768xf32>,
    %c0_352 = arith.constant 0 : index
    %c2304_353 = arith.constant 2304 : index
    %343 = vector.load %arg10[%c0_352, %c2304_353] : memref<8x3072xf32, #tpu.memory_space<vmem>>, vector<8x768xf32>
    %cst_354 = arith.constant 1.000000e+00 : f32
    %344 = vector.broadcast %cst_354 : f32 to vector<8x768xf32>
    %345 = arith.subf %344, %343 : vector<8x768xf32>
    %cst_355 = arith.constant 1.000000e+00 : f32
    %346 = vector.broadcast %cst_355 : f32 to vector<8x768xf32>
    %347 = arith.subf %346, %338 : vector<8x768xf32>
    %348 = arith.mulf %345, %347 : vector<8x768xf32>
    %cst_356 = arith.constant 1.000000e+00 : f32
    %349 = vector.broadcast %cst_356 : f32 to vector<8x768xf32>
    %350 = arith.subf %349, %348 : vector<8x768xf32>
    %c3 = arith.constant 3 : index
    %c0_357 = arith.constant 0 : index
    %c0_358 = arith.constant 0 : index
    %c0_359 = arith.constant 0 : index
    %351 = vector.load %arg7[%c3, %c0_357, %c0_358, %c0_359] : memref<4x1x8x768xf32, #tpu.memory_space<vmem>>, vector<1x1x8x768xf32>
    %352 = vector.shape_cast %351 : vector<1x1x8x768xf32> to vector<8x768xf32>
    %353 = vector.shape_cast %350 : vector<8x768xf32> to vector<1x1x8x768xf32>
    tpu.vector_store %arg7[%c3, %c0_357, %c0_358, %c0_359], %353 {strides = array<i32>} : memref<4x1x8x768xf32, #tpu.memory_space<vmem>>, vector<1x1x8x768xf32>,
    return
  }
  func.func @transform_0(%arg0: i32) -> (i32, i32, i32) {
    %c0_i32 = arith.constant 0 : i32
    %c0_i32_0 = arith.constant 0 : i32
    %c0_i32_1 = arith.constant 0 : i32
    return %arg0, %c0_i32, %c0_i32_0 : i32, i32, i32
  }
  func.func @transform_1(%arg0: i32) -> (i32, i32) {
    %c0_i32 = arith.constant 0 : i32
    %c0_i32_0 = arith.constant 0 : i32
    %c0_i32_1 = arith.constant 0 : i32
    return %c0_i32, %c0_i32_0 : i32, i32
  }
  func.func @transform_2(%arg0: i32) -> (i32, i32) {
    %c0_i32 = arith.constant 0 : i32
    %c0_i32_0 = arith.constant 0 : i32
    %c0_i32_1 = arith.constant 0 : i32
    return %c0_i32, %c0_i32_0 : i32, i32
  }
  func.func @transform_3(%arg0: i32) -> (i32, i32) {
    %c0_i32 = arith.constant 0 : i32
    %c0_i32_0 = arith.constant 0 : i32
    %c0_i32_1 = arith.constant 0 : i32
    return %c0_i32, %c0_i32_0 : i32, i32
  }
  func.func @transform_4(%arg0: i32) -> (i32, i32) {
    %c0_i32 = arith.constant 0 : i32
    %c0_i32_0 = arith.constant 0 : i32
    %c0_i32_1 = arith.constant 0 : i32
    return %c0_i32, %c0_i32_0 : i32, i32
  }
  func.func @transform_5(%arg0: i32) -> (i32, i32) {
    %c0_i32 = arith.constant 0 : i32
    %c0_i32_0 = arith.constant 0 : i32
    %c0_i32_1 = arith.constant 0 : i32
    return %c0_i32, %c0_i32_0 : i32, i32
  }
  func.func @transform_6(%arg0: i32) -> (i32, i32, i32, i32) {
    %c0_i32 = arith.constant 0 : i32
    %c0_i32_0 = arith.constant 0 : i32
    %c0_i32_1 = arith.constant 0 : i32
    %c0_i32_2 = arith.constant 0 : i32
    return %c0_i32, %arg0, %c0_i32_0, %c0_i32_1 : i32, i32, i32, i32
  }
}

</mosaic_0001>

<llo_original>
// kernel: unit_forward.1
$region0: #{unit_forward.1}
  #allocation0 [shape = 'u32[]', space=smem, size = 0x4, offset = 0x4, fixed_abs, tag = 'smem constant byte address 0x4 - core index']
  #allocation1 [shape = 'u32[144,128]{1,0:T(1,128)}', space=vmem, size = 0x12000, scoped, tag = 'internal scratch']
  #allocation2 [shape = 'f32[8,3072]{1,0:T(8,128)}', space=vmem, size = 0x18000, scoped, tag = 'scratch operand']
  #allocation3 [shape = 'f32[8,3072]{1,0:T(8,128)}', space=vmem, size = 0x18000, scoped, tag = 'scratch operand']
  #allocation4 [shape = 'f32[8,3072]{1,0:T(8,128)}', space=vmem, size = 0x18000, scoped, tag = 'scratch operand']
  #allocation5 [shape = 'bf16[72,3072]{1,0:T(8,128)(2,1)}', space=vmem, size = 0x6c000, scoped, tag = 'scratch operand']
  #allocation6 [shape = 'bf16[8,5120]{1,0:T(8,128)(2,1)}', space=vmem, size = 0x14000, scoped, tag = 'scratch operand']
  #allocation7 [shape = 'f32[8,768]{1,0:T(8,128)}', space=vmem, size = 0x6000, scoped, tag = 'scratch operand']
  #allocation8 [shape = 'f32[8,768]{1,0:T(8,128)}', space=vmem, size = 0x6000, scoped, tag = 'scratch operand']
  %s0 = inlined_call_operand.vmem [shape: bf16[1,36,3072], index: 0, kind: input, shape index: {}]
  %s1 = inlined_call_operand.vmem [shape: bf16[8,36], index: 1, kind: input, shape index: {}]
  %s2 = inlined_call_operand.vmem [shape: f32[8,1], index: 2, kind: input, shape index: {}]
  %s3 = inlined_call_operand.vmem [shape: bf16[8,72], index: 3, kind: input, shape index: {}]
  %s4 = inlined_call_operand.vmem [shape: f32[8,1], index: 4, kind: input, shape index: {}]
  %s5 = inlined_call_operand.vmem [shape: f32[1,768], index: 5, kind: input, shape index: {}]
  %s6 = inlined_call_operand.vmem [shape: f32[4,1,8,768], index: 6, kind: output, shape index: {}]
  %s7 = sld [smem:[#allocation0]]
  $region34: #{unit_forward.1} parent=0
    _
  %s9 = ssub.s32 1, %s7
  %s10 = scalar_select 0, %s9, %s7
  // Predicated region
  $region2: #{unit_forward.1} parent=0 // pred_check
    _
  $region3: #{unit_forward.1} parent=0 // pred_check_branch
    %12 = sbr.rel (0) target = $region5
  $region4: #{unit_forward.1} parent=0 // pred_region
    _
  $region5: #{unit_forward.1} parent=0 // pred_fallthru
    _
  // Predicated region
  $region6: #{unit_forward.1} parent=0 // pred_check
    _
  $region7: #{unit_forward.1} parent=0 // pred_check_branch
    %14 = sbr.rel (0) target = $region9
  $region8: #{unit_forward.1} parent=0 // pred_region
    _
  $region9: #{unit_forward.1} parent=0 // pred_fallthru
    _
  // Predicated region
  $region10: #{unit_forward.1} parent=0 // pred_check
    _
  $region11: #{unit_forward.1} parent=0 // pred_check_branch
    %16 = sbr.rel (0) target = $region13
  $region12: #{unit_forward.1} parent=0 // pred_region
    _
  $region13: #{unit_forward.1} parent=0 // pred_fallthru
    _
  // Predicated region
  $region14: #{unit_forward.1} parent=0 // pred_check
    _
  $region15: #{unit_forward.1} parent=0 // pred_check_branch
    %18 = sbr.rel (0) target = $region17
  $region16: #{unit_forward.1} parent=0 // pred_region
    _
  $region17: #{unit_forward.1} parent=0 // pred_fallthru
    _
  // Predicated region
  $region18: #{unit_forward.1} parent=0 // pred_check
    _
  $region19: #{unit_forward.1} parent=0 // pred_check_branch
    %20 = sbr.rel (0) target = $region21
  $region20: #{unit_forward.1} parent=0 // pred_region
    _
  $region21: #{unit_forward.1} parent=0 // pred_fallthru
    _
  // Predicated region
  $region22: #{unit_forward.1} parent=0 // pred_check
    _
  $region23: #{unit_forward.1} parent=0 // pred_check_branch
    %22 = sbr.rel (0) target = $region25
  $region24: #{unit_forward.1} parent=0 // pred_region
    _
  $region25: #{unit_forward.1} parent=0 // pred_fallthru
    _
  %24 = vst [vmem:[#allocation7] sm:$0xff] 0.0
  %25 = vst [vmem:[#allocation7 + $0x8] sm:$0xff] 0.0
  %26 = vst [vmem:[#allocation7 + $0x10] sm:$0xff] 0.0
  %27 = vst [vmem:[#allocation7 + $0x18] sm:$0xff] 0.0
  %28 = vst [vmem:[#allocation7 + $0x20] sm:$0xff] 0.0
  %29 = vst [vmem:[#allocation7 + $0x28] sm:$0xff] 0.0
  %30 = vst [vmem:[#allocation8] sm:$0xff] 0.0
  %31 = vst [vmem:[#allocation8 + $0x8] sm:$0xff] 0.0
  %32 = vst [vmem:[#allocation8 + $0x10] sm:$0xff] 0.0
  %33 = vst [vmem:[#allocation8 + $0x18] sm:$0xff] 0.0
  %34 = vst [vmem:[#allocation8 + $0x20] sm:$0xff] 0.0
  %35 = vst [vmem:[#allocation8 + $0x28] sm:$0xff] 0.0
  %36 = vst [vmem:[#allocation6] sm:$0xff] 0
  %37 = vst [vmem:[#allocation6 + $0x8] sm:$0xff] 0
  %38 = vst [vmem:[#allocation6 + $0x10] sm:$0xff] 0
  %39 = vst [vmem:[#allocation6 + $0x18] sm:$0xff] 0
  %40 = vst [vmem:[#allocation6 + $0x20] sm:$0xff] 0
  %41 = vst [vmem:[#allocation6 + $0x28] sm:$0xff] 0
  %42 = vst [vmem:[#allocation6 + $0x30] sm:$0xff] 0
  %43 = vst [vmem:[#allocation6 + $0x38] sm:$0xff] 0
  %44 = vst [vmem:[#allocation6 + $0x40] sm:$0xff] 0
  %45 = vst [vmem:[#allocation6 + $0x48] sm:$0xff] 0
  %46 = vst [vmem:[#allocation6 + $0x50] sm:$0xff] 0
  %47 = vst [vmem:[#allocation6 + $0x58] sm:$0xff] 0
  %48 = vst [vmem:[#allocation6 + $0x60] sm:$0xff] 0
  %49 = vst [vmem:[#allocation6 + $0x68] sm:$0xff] 0
  %50 = vst [vmem:[#allocation6 + $0x70] sm:$0xff] 0
  %51 = vst [vmem:[#allocation6 + $0x78] sm:$0xff] 0
  %52 = vst [vmem:[#allocation6 + $0x80] sm:$0xff] 0
  %53 = vst [vmem:[#allocation6 + $0x88] sm:$0xff] 0
  %54 = vst [vmem:[#allocation6 + $0x90] sm:$0xff] 0
  %55 = vst [vmem:[#allocation6 + $0x98] sm:$0xff] 0
  %v56 = vld [vmem:[%s5] sm:$0x3f]
  %v57 = vld [vmem:[%s1] sm:$0xf]
  %v58 = vld [vmem:[%s0] sm:$0xff]
  %v59 = vld [vmem:[%s0 + $0x8] sm:$0xff]
  %v60 = vld [vmem:[%s0 + $0x10] sm:$0xff]
  %v61 = vld [vmem:[%s0 + $0x18] sm:$0xff]
  %v62 = vld [vmem:[%s0 + $0x20] sm:$0xff]
  %v63 = vld [vmem:[%s0 + $0x28] sm:$0xff]
  %v64 = vld [vmem:[%s0 + $0x30] sm:$0xff]
  %v65 = vld [vmem:[%s0 + $0x38] sm:$0xff]
  %v66 = vld [vmem:[%s0 + $0x40] sm:$0xff]
  %v67 = vld [vmem:[%s0 + $0x48] sm:$0xff]
  %v68 = vld [vmem:[%s0 + $0x50] sm:$0xff]
  %v69 = vld [vmem:[%s0 + $0x58] sm:$0xff]
  %v70 = vld [vmem:[%s0 + $0x60] sm:$0xff]
  %v71 = vld [vmem:[%s0 + $0x68] sm:$0xff]
  %v72 = vld [vmem:[%s0 + $0x70] sm:$0xff]
  %v73 = vld [vmem:[%s0 + $0x78] sm:$0xff]
  %v74 = vld [vmem:[%s0 + $0x80] sm:$0xff]
  %v75 = vld [vmem:[%s0 + $0x88] sm:$0xff]
  %v76 = vld [vmem:[%s0 + $0x90] sm:$0xff]
  %v77 = vld [vmem:[%s0 + $0x98] sm:$0xff]
  %v78 = vld [vmem:[%s0 + $0xa0] sm:$0xff]
  %v79 = vld [vmem:[%s0 + $0xa8] sm:$0xff]
  %v80 = vld [vmem:[%s0 + $0xb0] sm:$0xff]
  %v81 = vld [vmem:[%s0 + $0xb8] sm:$0xff]
  %v82 = vld [vmem:[%s0 + $0xc0] sm:$0xff]
  %v83 = vld [vmem:[%s0 + $0xc8] sm:$0xff]
  %v84 = vld [vmem:[%s0 + $0xd0] sm:$0xff]
  %v85 = vld [vmem:[%s0 + $0xd8] sm:$0xff]
  %v86 = vld [vmem:[%s0 + $0xe0] sm:$0xff]
  %v87 = vld [vmem:[%s0 + $0xe8] sm:$0xff]
  %v88 = vld [vmem:[%s0 + $0xf0] sm:$0xff]
  %v89 = vld [vmem:[%s0 + $0xf8] sm:$0xff]
  %v90 = vld [vmem:[%s0 + $0x100] sm:$0xff]
  %v91 = vld [vmem:[%s0 + $0x108] sm:$0xff]
  %v92 = vld [vmem:[%s0 + $0x110] sm:$0xff]
  %v93 = vld [vmem:[%s0 + $0x118] sm:$0xff]
  %v94 = vld [vmem:[%s0 + $0x120] sm:$0xff]
  %v95 = vld [vmem:[%s0 + $0x128] sm:$0xff]
  %v96 = vld [vmem:[%s0 + $0x130] sm:$0xff]
  %v97 = vld [vmem:[%s0 + $0x138] sm:$0xff]
  %v98 = vld [vmem:[%s0 + $0x140] sm:$0xff]
  %v99 = vld [vmem:[%s0 + $0x148] sm:$0xff]
  %v100 = vld [vmem:[%s0 + $0x150] sm:$0xff]
  %v101 = vld [vmem:[%s0 + $0x158] sm:$0xff]
  %v102 = vld [vmem:[%s0 + $0x160] sm:$0xff]
  %v103 = vld [vmem:[%s0 + $0x168] sm:$0xff]
  %v104 = vld [vmem:[%s0 + $0x170] sm:$0xff]
  %v105 = vld [vmem:[%s0 + $0x178] sm:$0xff]
  %v106 = vld [vmem:[%s0 + $0x180] sm:$0x33]
  %v107 = vld [vmem:[%s0 + $0x188] sm:$0x33]
  %v108 = vld [vmem:[%s0 + $0x190] sm:$0x33]
  %v109 = vld [vmem:[%s0 + $0x198] sm:$0x33]
  %v110 = vld [vmem:[%s0 + $0x1a0] sm:$0x33]
  %v111 = vld [vmem:[%s0 + $0x1a8] sm:$0x33]
  %v112 = vld [vmem:[%s0 + $0x1b0] sm:$0x33]
  %v113 = vld [vmem:[%s0 + $0x1b8] sm:$0x33]
  %v114 = vld [vmem:[%s0 + $0x1c0] sm:$0x33]
  %v115 = vld [vmem:[%s0 + $0x1c8] sm:$0x33]
  %v116 = vld [vmem:[%s0 + $0x1d0] sm:$0x33]
  %v117 = vld [vmem:[%s0 + $0x1d8] sm:$0x33]
  %v118 = vld [vmem:[%s2] sm:$0xff]
  %120 = vset.pattern.permute.xlu0 0
  %121 = vperm.xlu0 %120, %v118
  %v122 = vpop.permute.xlu0 %121
  %v184 = vunpack.c.l.b16 %v58
  %v185 = vunpack.c.h.b16 %v58
  %v186 = vunpack.c.l.b16 %v59
  %v187 = vunpack.c.h.b16 %v59
  %v188 = vunpack.c.l.b16 %v60
  %v189 = vunpack.c.h.b16 %v60
  %v190 = vunpack.c.l.b16 %v61
  %v191 = vunpack.c.h.b16 %v61
  %v192 = vunpack.c.l.b16 %v62
  %v193 = vunpack.c.h.b16 %v62
  %v194 = vunpack.c.l.b16 %v63
  %v195 = vunpack.c.h.b16 %v63
  %v196 = vunpack.c.l.b16 %v64
  %v197 = vunpack.c.h.b16 %v64
  %v198 = vunpack.c.l.b16 %v65
  %v199 = vunpack.c.h.b16 %v65
  %v200 = vunpack.c.l.b16 %v66
  %v201 = vunpack.c.h.b16 %v66
  %v202 = vunpack.c.l.b16 %v67
  %v203 = vunpack.c.h.b16 %v67
  %v204 = vunpack.c.l.b16 %v68
  %v205 = vunpack.c.h.b16 %v68
  %v206 = vunpack.c.l.b16 %v69
  %v207 = vunpack.c.h.b16 %v69
  %v208 = vunpack.c.l.b16 %v70
  %v209 = vunpack.c.h.b16 %v70
  %v210 = vunpack.c.l.b16 %v71
  %v211 = vunpack.c.h.b16 %v71
  %v212 = vunpack.c.l.b16 %v72
  %v213 = vunpack.c.h.b16 %v72
  %v214 = vunpack.c.l.b16 %v73
  %v215 = vunpack.c.h.b16 %v73
  %v216 = vunpack.c.l.b16 %v74
  %v217 = vunpack.c.h.b16 %v74
  %v218 = vunpack.c.l.b16 %v75
  %v219 = vunpack.c.h.b16 %v75
  %v220 = vunpack.c.l.b16 %v76
  %v221 = vunpack.c.h.b16 %v76
  %v222 = vunpack.c.l.b16 %v77
  %v223 = vunpack.c.h.b16 %v77
  %v224 = vunpack.c.l.b16 %v78
  %v225 = vunpack.c.h.b16 %v78
  %v226 = vunpack.c.l.b16 %v79
  %v227 = vunpack.c.h.b16 %v79
  %v228 = vunpack.c.l.b16 %v80
  %v229 = vunpack.c.h.b16 %v80
  %v230 = vunpack.c.l.b16 %v81
  %v231 = vunpack.c.h.b16 %v81
  %v232 = vunpack.c.l.b16 %v82
  %v233 = vunpack.c.h.b16 %v82
  %v234 = vunpack.c.l.b16 %v83
  %v235 = vunpack.c.h.b16 %v83
  %v236 = vunpack.c.l.b16 %v84
  %v237 = vunpack.c.h.b16 %v84
  %v238 = vunpack.c.l.b16 %v85
  %v239 = vunpack.c.h.b16 %v85
  %v240 = vunpack.c.l.b16 %v86
  %v241 = vunpack.c.h.b16 %v86
  %v242 = vunpack.c.l.b16 %v87
  %v243 = vunpack.c.h.b16 %v87
  %v244 = vunpack.c.l.b16 %v88
  %v245 = vunpack.c.h.b16 %v88
  %v246 = vunpack.c.l.b16 %v89
  %v247 = vunpack.c.h.b16 %v89
  %v248 = vunpack.c.l.b16 %v90
  %v249 = vunpack.c.h.b16 %v90
  %v250 = vunpack.c.l.b16 %v91
  %v251 = vunpack.c.h.b16 %v91
  %v252 = vunpack.c.l.b16 %v92
  %v253 = vunpack.c.h.b16 %v92
  %v254 = vunpack.c.l.b16 %v93
  %v255 = vunpack.c.h.b16 %v93
  %v256 = vunpack.c.l.b16 %v94
  %v257 = vunpack.c.h.b16 %v94
  %v258 = vunpack.c.l.b16 %v95
  %v259 = vunpack.c.h.b16 %v95
  %v260 = vunpack.c.l.b16 %v96
  %v261 = vunpack.c.h.b16 %v96
  %v262 = vunpack.c.l.b16 %v97
  %v263 = vunpack.c.h.b16 %v97
  %v264 = vunpack.c.l.b16 %v98
  %v265 = vunpack.c.h.b16 %v98
  %v266 = vunpack.c.l.b16 %v99
  %v267 = vunpack.c.h.b16 %v99
  %v268 = vunpack.c.l.b16 %v100
  %v269 = vunpack.c.h.b16 %v100
  %v270 = vunpack.c.l.b16 %v101
  %v271 = vunpack.c.h.b16 %v101
  %v272 = vunpack.c.l.b16 %v102
  %v273 = vunpack.c.h.b16 %v102
  %v274 = vunpack.c.l.b16 %v103
  %v275 = vunpack.c.h.b16 %v103
  %v276 = vunpack.c.l.b16 %v104
  %v277 = vunpack.c.h.b16 %v104
  %v278 = vunpack.c.l.b16 %v105
  %v279 = vunpack.c.h.b16 %v105
  %v280 = vunpack.c.l.b16 %v106
  %v281 = vunpack.c.h.b16 %v106
  %v282 = vunpack.c.l.b16 %v107
  %v283 = vunpack.c.h.b16 %v107
  %v284 = vunpack.c.l.b16 %v108
  %v285 = vunpack.c.h.b16 %v108
  %v286 = vunpack.c.l.b16 %v109
  %v287 = vunpack.c.h.b16 %v109
  %v288 = vunpack.c.l.b16 %v110
  %v289 = vunpack.c.h.b16 %v110
  %v290 = vunpack.c.l.b16 %v111
  %v291 = vunpack.c.h.b16 %v111
  %v292 = vunpack.c.l.b16 %v112
  %v293 = vunpack.c.h.b16 %v112
  %v294 = vunpack.c.l.b16 %v113
  %v295 = vunpack.c.h.b16 %v113
  %v296 = vunpack.c.l.b16 %v114
  %v297 = vunpack.c.h.b16 %v114
  %v298 = vunpack.c.l.b16 %v115
  %v299 = vunpack.c.h.b16 %v115
  %v300 = vunpack.c.l.b16 %v116
  %v301 = vunpack.c.h.b16 %v116
  %v302 = vunpack.c.l.b16 %v117
  %v303 = vunpack.c.h.b16 %v117
  %v304 = vpack.c.b16 %v208, %v184
  %v305 = vpack.c.b16 %v209, %v185
  %v306 = vpack.c.b16 %v210, %v186
  %v307 = vpack.c.b16 %v211, %v187
  %v308 = vpack.c.b16 %v212, %v188
  %v309 = vpack.c.b16 %v213, %v189
  %v310 = vpack.c.b16 %v214, %v190
  %v311 = vpack.c.b16 %v215, %v191
  %v312 = vpack.c.b16 %v216, %v192
  %v313 = vpack.c.b16 %v217, %v193
  %v314 = vpack.c.b16 %v218, %v194
  %v315 = vpack.c.b16 %v219, %v195
  %v316 = vpack.c.b16 %v220, %v196
  %v317 = vpack.c.b16 %v221, %v197
  %v318 = vpack.c.b16 %v222, %v198
  %v319 = vpack.c.b16 %v223, %v199
  %v320 = vpack.c.b16 %v224, %v200
  %v321 = vpack.c.b16 %v225, %v201
  %v322 = vpack.c.b16 %v226, %v202
  %v323 = vpack.c.b16 %v227, %v203
  %v324 = vpack.c.b16 %v228, %v204
  %v325 = vpack.c.b16 %v229, %v205
  %v326 = vpack.c.b16 %v230, %v206
  %v327 = vpack.c.b16 %v231, %v207
  %v328 = vpack.c.b16 %v256, %v232
  %v329 = vpack.c.b16 %v257, %v233
  %v330 = vpack.c.b16 %v258, %v234
  %v331 = vpack.c.b16 %v259, %v235
  %v332 = vpack.c.b16 %v260, %v236
  %v333 = vpack.c.b16 %v261, %v237
  %v334 = vpack.c.b16 %v262, %v238
  %v335 = vpack.c.b16 %v263, %v239
  %v336 = vpack.c.b16 %v264, %v240
  %v337 = vpack.c.b16 %v265, %v241
  %v338 = vpack.c.b16 %v266, %v242
  %v339 = vpack.c.b16 %v267, %v243
  %v340 = vpack.c.b16 %v268, %v244
  %v341 = vpack.c.b16 %v269, %v245
  %v342 = vpack.c.b16 %v270, %v246
  %v343 = vpack.c.b16 %v271, %v247
  %v344 = vpack.c.b16 %v272, %v248
  %v345 = vpack.c.b16 %v273, %v249
  %v346 = vpack.c.b16 %v274, %v250
  %v347 = vpack.c.b16 %v275, %v251
  %v348 = vpack.c.b16 %v276, %v252
  %v349 = vpack.c.b16 %v277, %v253
  %v350 = vpack.c.b16 %v278, %v254
  %v351 = vpack.c.b16 %v279, %v255
  %v352 = vpack.c.b16 %v280, %v280
  %v353 = vpack.c.b16 %v281, %v281
  %v354 = vpack.c.b16 %v282, %v282
  %v355 = vpack.c.b16 %v283, %v283
  %v356 = vpack.c.b16 %v284, %v284
  %v357 = vpack.c.b16 %v285, %v285
  %v358 = vpack.c.b16 %v286, %v286
  %v359 = vpack.c.b16 %v287, %v287
  %v360 = vpack.c.b16 %v288, %v288
  %v361 = vpack.c.b16 %v289, %v289
  %v362 = vpack.c.b16 %v290, %v290
  %v363 = vpack.c.b16 %v291, %v291
  %v364 = vpack.c.b16 %v292, %v292
  %v365 = vpack.c.b16 %v293, %v293
  %v366 = vpack.c.b16 %v294, %v294
  %v367 = vpack.c.b16 %v295, %v295
  %v368 = vpack.c.b16 %v296, %v296
  %v369 = vpack.c.b16 %v297, %v297
  %v370 = vpack.c.b16 %v298, %v298
  %v371 = vpack.c.b16 %v299, %v299
  %v372 = vpack.c.b16 %v300, %v300
  %v373 = vpack.c.b16 %v301, %v301
  %v374 = vpack.c.b16 %v302, %v302
  %v375 = vpack.c.b16 %v303, %v303
  %vm424 = vcmask 293888
  %v426 = vsel %vm424, %v57, 0
  %vm428 = vcmask 1041408
  %v430 = vsel %vm428, %v352, 0
  %v433 = vsel %vm428, %v353, 0
  %v436 = vsel %vm428, %v354, 0
  %v439 = vsel %vm428, %v355, 0
  %v442 = vsel %vm428, %v356, 0
  %v445 = vsel %vm428, %v357, 0
  %v448 = vsel %vm428, %v358, 0
  %v451 = vsel %vm428, %v359, 0
  %v454 = vsel %vm428, %v360, 0
  %v457 = vsel %vm428, %v361, 0
  %v460 = vsel %vm428, %v362, 0
  %v463 = vsel %vm428, %v363, 0
  %v466 = vsel %vm428, %v364, 0
  %v469 = vsel %vm428, %v365, 0
  %v472 = vsel %vm428, %v366, 0
  %v475 = vsel %vm428, %v367, 0
  %v478 = vsel %vm428, %v368, 0
  %v481 = vsel %vm428, %v369, 0
  %v484 = vsel %vm428, %v370, 0
  %v487 = vsel %vm428, %v371, 0
  %v490 = vsel %vm428, %v372, 0
  %v493 = vsel %vm428, %v373, 0
  %v496 = vsel %vm428, %v374, 0
  %v499 = vsel %vm428, %v375, 0
  %501 = vmatprep.subr.bf16.mxu0 0
  %502 = vmatpush1.bf16.msra.mxu0 0
  %503 = vmatprep.subr.bf16.mxu0 0
  %504 = vmatpush1.bf16.msra.mxu0 0
  %505 = vmatprep.subr.bf16.mxu0 0
  %506 = vmatpush1.bf16.msra.mxu0 0
  %507 = vmatprep.subr.bf16.mxu0 0
  %508 = vmatpush1.bf16.msra.mxu0 0
  %509 = vmatprep.subr.bf16.mxu0 0
  %510 = vmatpush1.bf16.msra.mxu0 0
  %511 = vmatprep.subr.bf16.mxu0 %v433
  %512 = vmatpush1.bf16.msra.mxu0 %v430
  %513 = vmatprep.subr.bf16.mxu0 %v329
  %514 = vmatpush1.bf16.msra.mxu0 %v328
  %515 = vmatprep.subr.bf16.mxu0 %v305
  %516 = vmatpush1.bf16.msra.mxu0 %v304
  %517 = vmatprep.subr.bf16.mxu0 0
  %518 = vmatpush2.bf16.msra.mxu0 0
  %519 = vmatprep.subr.bf16.mxu0 0
  %520 = vmatpush2.bf16.msra.mxu0 0
  %521 = vmatprep.subr.bf16.mxu0 0
  %522 = vmatpush2.bf16.msra.mxu0 0
  %523 = vmatprep.subr.bf16.mxu0 0
  %524 = vmatpush2.bf16.msra.mxu0 0
  %525 = vmatprep.subr.bf16.mxu0 0
  %526 = vmatpush2.bf16.msra.mxu0 0
  %527 = vmatprep.subr.bf16.mxu0 0
  %528 = vmatpush2.bf16.msra.mxu0 0
  %529 = vmatprep.subr.bf16.mxu0 0
  %530 = vmatpush2.bf16.msra.mxu0 0
  %531 = vmatprep.subr.bf16.mxu0 0
  %532 = vmatpush2.bf16.msra.mxu0 0
  %533 = vmatprep.mubr.bf16.mxu0 0
  %534 = vmatmul.mubr.bf16.gmra.mxu0 %v426
  %v535 = vpop.f32.mrf.mxu0
  %v536 = vadd.f32 %v122, %v535
  %v537 = vpop.f32.mrf.mxu0
  %v538 = vadd.f32 %v122, %v537
  %v539 = vpop.f32.mrf.mxu0
  %v540 = vpop.f32.mrf.mxu0
  %541 = vdwg.mxu0
  %542 = vmatprep.subr.bf16.mxu0 0
  %543 = vmatpush1.bf16.msra.mxu0 0
  %544 = vmatprep.subr.bf16.mxu0 0
  %545 = vmatpush1.bf16.msra.mxu0 0
  %546 = vmatprep.subr.bf16.mxu0 0
  %547 = vmatpush1.bf16.msra.mxu0 0
  %548 = vmatprep.subr.bf16.mxu0 0
  %549 = vmatpush1.bf16.msra.mxu0 0
  %550 = vmatprep.subr.bf16.mxu0 0
  %551 = vmatpush1.bf16.msra.mxu0 0
  %552 = vmatprep.subr.bf16.mxu0 %v439
  %553 = vmatpush1.bf16.msra.mxu0 %v436
  %554 = vmatprep.subr.bf16.mxu0 %v331
  %555 = vmatpush1.bf16.msra.mxu0 %v330
  %556 = vmatprep.subr.bf16.mxu0 %v307
  %557 = vmatpush1.bf16.msra.mxu0 %v306
  %558 = vmatprep.subr.bf16.mxu0 0
  %559 = vmatpush2.bf16.msra.mxu0 0
  %560 = vmatprep.subr.bf16.mxu0 0
  %561 = vmatpush2.bf16.msra.mxu0 0
  %562 = vmatprep.subr.bf16.mxu0 0
  %563 = vmatpush2.bf16.msra.mxu0 0
  %564 = vmatprep.subr.bf16.mxu0 0
  %565 = vmatpush2.bf16.msra.mxu0 0
  %566 = vmatprep.subr.bf16.mxu0 0
  %567 = vmatpush2.bf16.msra.mxu0 0
  %568 = vmatprep.subr.bf16.mxu0 0
  %569 = vmatpush2.bf16.msra.mxu0 0
  %570 = vmatprep.subr.bf16.mxu0 0
  %571 = vmatpush2.bf16.msra.mxu0 0
  %572 = vmatprep.subr.bf16.mxu0 0
  %573 = vmatpush2.bf16.msra.mxu0 0
  %574 = vmatprep.mubr.bf16.mxu0 0
  %575 = vmatmul.mubr.bf16.gmra.mxu0 %v426
  %v576 = vpop.f32.mrf.mxu0
  %v577 = vadd.f32 %v122, %v576
  %v578 = vpop.f32.mrf.mxu0
  %v579 = vadd.f32 %v122, %v578
  %v580 = vpop.f32.mrf.mxu0
  %v581 = vpop.f32.mrf.mxu0
  %582 = vdwg.mxu0
  %583 = vmatprep.subr.bf16.mxu0 0
  %584 = vmatpush1.bf16.msra.mxu0 0
  %585 = vmatprep.subr.bf16.mxu0 0
  %586 = vmatpush1.bf16.msra.mxu0 0
  %587 = vmatprep.subr.bf16.mxu0 0
  %588 = vmatpush1.bf16.msra.mxu0 0
  %589 = vmatprep.subr.bf16.mxu0 0
  %590 = vmatpush1.bf16.msra.mxu0 0
  %591 = vmatprep.subr.bf16.mxu0 0
  %592 = vmatpush1.bf16.msra.mxu0 0
  %593 = vmatprep.subr.bf16.mxu0 %v445
  %594 = vmatpush1.bf16.msra.mxu0 %v442
  %595 = vmatprep.subr.bf16.mxu0 %v333
  %596 = vmatpush1.bf16.msra.mxu0 %v332
  %597 = vmatprep.subr.bf16.mxu0 %v309
  %598 = vmatpush1.bf16.msra.mxu0 %v308
  %599 = vmatprep.subr.bf16.mxu0 0
  %600 = vmatpush2.bf16.msra.mxu0 0
  %601 = vmatprep.subr.bf16.mxu0 0
  %602 = vmatpush2.bf16.msra.mxu0 0
  %603 = vmatprep.subr.bf16.mxu0 0
  %604 = vmatpush2.bf16.msra.mxu0 0
  %605 = vmatprep.subr.bf16.mxu0 0
  %606 = vmatpush2.bf16.msra.mxu0 0
  %607 = vmatprep.subr.bf16.mxu0 0
  %608 = vmatpush2.bf16.msra.mxu0 0
  %609 = vmatprep.subr.bf16.mxu0 0
  %610 = vmatpush2.bf16.msra.mxu0 0
  %611 = vmatprep.subr.bf16.mxu0 0
  %612 = vmatpush2.bf16.msra.mxu0 0
  %613 = vmatprep.subr.bf16.mxu0 0
  %614 = vmatpush2.bf16.msra.mxu0 0
  %615 = vmatprep.mubr.bf16.mxu0 0
  %616 = vmatmul.mubr.bf16.gmra.mxu0 %v426
  %v617 = vpop.f32.mrf.mxu0
  %v618 = vadd.f32 %v122, %v617
  %v619 = vpop.f32.mrf.mxu0
  %v620 = vadd.f32 %v122, %v619
  %v621 = vpop.f32.mrf.mxu0
  %v622 = vpop.f32.mrf.mxu0
  %623 = vdwg.mxu0
  %624 = vmatprep.subr.bf16.mxu0 0
  %625 = vmatpush1.bf16.msra.mxu0 0
  %626 = vmatprep.subr.bf16.mxu0 0
  %627 = vmatpush1.bf16.msra.mxu0 0
  %628 = vmatprep.subr.bf16.mxu0 0
  %629 = vmatpush1.bf16.msra.mxu0 0
  %630 = vmatprep.subr.bf16.mxu0 0
  %631 = vmatpush1.bf16.msra.mxu0 0
  %632 = vmatprep.subr.bf16.mxu0 0
  %633 = vmatpush1.bf16.msra.mxu0 0
  %634 = vmatprep.subr.bf16.mxu0 %v451
  %635 = vmatpush1.bf16.msra.mxu0 %v448
  %636 = vmatprep.subr.bf16.mxu0 %v335
  %637 = vmatpush1.bf16.msra.mxu0 %v334
  %638 = vmatprep.subr.bf16.mxu0 %v311
  %639 = vmatpush1.bf16.msra.mxu0 %v310
  %640 = vmatprep.subr.bf16.mxu0 0
  %641 = vmatpush2.bf16.msra.mxu0 0
  %642 = vmatprep.subr.bf16.mxu0 0
  %643 = vmatpush2.bf16.msra.mxu0 0
  %644 = vmatprep.subr.bf16.mxu0 0
  %645 = vmatpush2.bf16.msra.mxu0 0
  %646 = vmatprep.subr.bf16.mxu0 0
  %647 = vmatpush2.bf16.msra.mxu0 0
  %648 = vmatprep.subr.bf16.mxu0 0
  %649 = vmatpush2.bf16.msra.mxu0 0
  %650 = vmatprep.subr.bf16.mxu0 0
  %651 = vmatpush2.bf16.msra.mxu0 0
  %652 = vmatprep.subr.bf16.mxu0 0
  %653 = vmatpush2.bf16.msra.mxu0 0
  %654 = vmatprep.subr.bf16.mxu0 0
  %655 = vmatpush2.bf16.msra.mxu0 0
  %656 = vmatprep.mubr.bf16.mxu0 0
  %657 = vmatmul.mubr.bf16.gmra.mxu0 %v426
  %v658 = vpop.f32.mrf.mxu0
  %v659 = vadd.f32 %v122, %v658
  %v660 = vpop.f32.mrf.mxu0
  %v661 = vadd.f32 %v122, %v660
  %v662 = vpop.f32.mrf.mxu0
  %v663 = vpop.f32.mrf.mxu0
  %664 = vdwg.mxu0
  %665 = vmatprep.subr.bf16.mxu0 0
  %666 = vmatpush1.bf16.msra.mxu0 0
  %667 = vmatprep.subr.bf16.mxu0 0
  %668 = vmatpush1.bf16.msra.mxu0 0
  %669 = vmatprep.subr.bf16.mxu0 0
  %670 = vmatpush1.bf16.msra.mxu0 0
  %671 = vmatprep.subr.bf16.mxu0 0
  %672 = vmatpush1.bf16.msra.mxu0 0
  %673 = vmatprep.subr.bf16.mxu0 0
  %674 = vmatpush1.bf16.msra.mxu0 0
  %675 = vmatprep.subr.bf16.mxu0 %v457
  %676 = vmatpush1.bf16.msra.mxu0 %v454
  %677 = vmatprep.subr.bf16.mxu0 %v337
  %678 = vmatpush1.bf16.msra.mxu0 %v336
  %679 = vmatprep.subr.bf16.mxu0 %v313
  %680 = vmatpush1.bf16.msra.mxu0 %v312
  %681 = vmatprep.subr.bf16.mxu0 0
  %682 = vmatpush2.bf16.msra.mxu0 0
  %683 = vmatprep.subr.bf16.mxu0 0
  %684 = vmatpush2.bf16.msra.mxu0 0
  %685 = vmatprep.subr.bf16.mxu0 0
  %686 = vmatpush2.bf16.msra.mxu0 0
  %687 = vmatprep.subr.bf16.mxu0 0
  %688 = vmatpush2.bf16.msra.mxu0 0
  %689 = vmatprep.subr.bf16.mxu0 0
  %690 = vmatpush2.bf16.msra.mxu0 0
  %691 = vmatprep.subr.bf16.mxu0 0
  %692 = vmatpush2.bf16.msra.mxu0 0
  %693 = vmatprep.subr.bf16.mxu0 0
  %694 = vmatpush2.bf16.msra.mxu0 0
  %695 = vmatprep.subr.bf16.mxu0 0
  %696 = vmatpush2.bf16.msra.mxu0 0
  %697 = vmatprep.mubr.bf16.mxu0 0
  %698 = vmatmul.mubr.bf16.gmra.mxu0 %v426
  %v699 = vpop.f32.mrf.mxu0
  %v700 = vadd.f32 %v122, %v699
  %v701 = vpop.f32.mrf.mxu0
  %v702 = vadd.f32 %v122, %v701
  %v703 = vpop.f32.mrf.mxu0
  %v704 = vpop.f32.mrf.mxu0
  %705 = vdwg.mxu0
  %706 = vmatprep.subr.bf16.mxu0 0
  %707 = vmatpush1.bf16.msra.mxu0 0
  %708 = vmatprep.subr.bf16.mxu0 0
  %709 = vmatpush1.bf16.msra.mxu0 0
  %710 = vmatprep.subr.bf16.mxu0 0
  %711 = vmatpush1.bf16.msra.mxu0 0
  %712 = vmatprep.subr.bf16.mxu0 0
  %713 = vmatpush1.bf16.msra.mxu0 0
  %714 = vmatprep.subr.bf16.mxu0 0
  %715 = vmatpush1.bf16.msra.mxu0 0
  %716 = vmatprep.subr.bf16.mxu0 %v463
  %717 = vmatpush1.bf16.msra.mxu0 %v460
  %718 = vmatprep.subr.bf16.mxu0 %v339
  %719 = vmatpush1.bf16.msra.mxu0 %v338
  %720 = vmatprep.subr.bf16.mxu0 %v315
  %721 = vmatpush1.bf16.msra.mxu0 %v314
  %722 = vmatprep.subr.bf16.mxu0 0
  %723 = vmatpush2.bf16.msra.mxu0 0
  %724 = vmatprep.subr.bf16.mxu0 0
  %725 = vmatpush2.bf16.msra.mxu0 0
  %726 = vmatprep.subr.bf16.mxu0 0
  %727 = vmatpush2.bf16.msra.mxu0 0
  %728 = vmatprep.subr.bf16.mxu0 0
  %729 = vmatpush2.bf16.msra.mxu0 0
  %730 = vmatprep.subr.bf16.mxu0 0
  %731 = vmatpush2.bf16.msra.mxu0 0
  %732 = vmatprep.subr.bf16.mxu0 0
  %733 = vmatpush2.bf16.msra.mxu0 0
  %734 = vmatprep.subr.bf16.mxu0 0
  %735 = vmatpush2.bf16.msra.mxu0 0
  %736 = vmatprep.subr.bf16.mxu0 0
  %737 = vmatpush2.bf16.msra.mxu0 0
  %738 = vmatprep.mubr.bf16.mxu0 0
  %739 = vmatmul.mubr.bf16.gmra.mxu0 %v426
  %v740 = vpop.f32.mrf.mxu0
  %v741 = vadd.f32 %v122, %v740
  %v742 = vpop.f32.mrf.mxu0
  %v743 = vadd.f32 %v122, %v742
  %v744 = vpop.f32.mrf.mxu0
  %v745 = vpop.f32.mrf.mxu0
  %746 = vdwg.mxu0
  %747 = vmatprep.subr.bf16.mxu0 0
  %748 = vmatpush1.bf16.msra.mxu0 0
  %749 = vmatprep.subr.bf16.mxu0 0
  %750 = vmatpush1.bf16.msra.mxu0 0
  %751 = vmatprep.subr.bf16.mxu0 0
  %752 = vmatpush1.bf16.msra.mxu0 0
  %753 = vmatprep.subr.bf16.mxu0 0
  %754 = vmatpush1.bf16.msra.mxu0 0
  %755 = vmatprep.subr.bf16.mxu0 0
  %756 = vmatpush1.bf16.msra.mxu0 0
  %757 = vmatprep.subr.bf16.mxu0 %v469
  %758 = vmatpush1.bf16.msra.mxu0 %v466
  %759 = vmatprep.subr.bf16.mxu0 %v341
  %760 = vmatpush1.bf16.msra.mxu0 %v340
  %761 = vmatprep.subr.bf16.mxu0 %v317
  %762 = vmatpush1.bf16.msra.mxu0 %v316
  %763 = vmatprep.subr.bf16.mxu0 0
  %764 = vmatpush2.bf16.msra.mxu0 0
  %765 = vmatprep.subr.bf16.mxu0 0
  %766 = vmatpush2.bf16.msra.mxu0 0
  %767 = vmatprep.subr.bf16.mxu0 0
  %768 = vmatpush2.bf16.msra.mxu0 0
  %769 = vmatprep.subr.bf16.mxu0 0
  %770 = vmatpush2.bf16.msra.mxu0 0
  %771 = vmatprep.subr.bf16.mxu0 0
  %772 = vmatpush2.bf16.msra.mxu0 0
  %773 = vmatprep.subr.bf16.mxu0 0
  %774 = vmatpush2.bf16.msra.mxu0 0
  %775 = vmatprep.subr.bf16.mxu0 0
  %776 = vmatpush2.bf16.msra.mxu0 0
  %777 = vmatprep.subr.bf16.mxu0 0
  %778 = vmatpush2.bf16.msra.mxu0 0
  %779 = vmatprep.mubr.bf16.mxu0 0
  %780 = vmatmul.mubr.bf16.gmra.mxu0 %v426
  %v781 = vpop.f32.mrf.mxu0
  %v782 = vadd.f32 %v122, %v781
  %v783 = vpop.f32.mrf.mxu0
  %v784 = vadd.f32 %v122, %v783
  %v785 = vpop.f32.mrf.mxu0
  %v786 = vpop.f32.mrf.mxu0
  %787 = vdwg.mxu0
  %788 = vmatprep.subr.bf16.mxu0 0
  %789 = vmatpush1.bf16.msra.mxu0 0
  %790 = vmatprep.subr.bf16.mxu0 0
  %791 = vmatpush1.bf16.msra.mxu0 0
  %792 = vmatprep.subr.bf16.mxu0 0
  %793 = vmatpush1.bf16.msra.mxu0 0
  %794 = vmatprep.subr.bf16.mxu0 0
  %795 = vmatpush1.bf16.msra.mxu0 0
  %796 = vmatprep.subr.bf16.mxu0 0
  %797 = vmatpush1.bf16.msra.mxu0 0
  %798 = vmatprep.subr.bf16.mxu0 %v475
  %799 = vmatpush1.bf16.msra.mxu0 %v472
  %800 = vmatprep.subr.bf16.mxu0 %v343
  %801 = vmatpush1.bf16.msra.mxu0 %v342
  %802 = vmatprep.subr.bf16.mxu0 %v319
  %803 = vmatpush1.bf16.msra.mxu0 %v318
  %804 = vmatprep.subr.bf16.mxu0 0
  %805 = vmatpush2.bf16.msra.mxu0 0
  %806 = vmatprep.subr.bf16.mxu0 0
  %807 = vmatpush2.bf16.msra.mxu0 0
  %808 = vmatprep.subr.bf16.mxu0 0
  %809 = vmatpush2.bf16.msra.mxu0 0
  %810 = vmatprep.subr.bf16.mxu0 0
  %811 = vmatpush2.bf16.msra.mxu0 0
  %812 = vmatprep.subr.bf16.mxu0 0
  %813 = vmatpush2.bf16.msra.mxu0 0
  %814 = vmatprep.subr.bf16.mxu0 0
  %815 = vmatpush2.bf16.msra.mxu0 0
  %816 = vmatprep.subr.bf16.mxu0 0
  %817 = vmatpush2.bf16.msra.mxu0 0
  %818 = vmatprep.subr.bf16.mxu0 0
  %819 = vmatpush2.bf16.msra.mxu0 0
  %820 = vmatprep.mubr.bf16.mxu0 0
  %821 = vmatmul.mubr.bf16.gmra.mxu0 %v426
  %v822 = vpop.f32.mrf.mxu0
  %v823 = vadd.f32 %v122, %v822
  %v824 = vpop.f32.mrf.mxu0
  %v825 = vadd.f32 %v122, %v824
  %v826 = vpop.f32.mrf.mxu0
  %v827 = vpop.f32.mrf.mxu0
  %828 = vdwg.mxu0
  %829 = vmatprep.subr.bf16.mxu0 0
  %830 = vmatpush1.bf16.msra.mxu0 0
  %831 = vmatprep.subr.bf16.mxu0 0
  %832 = vmatpush1.bf16.msra.mxu0 0
  %833 = vmatprep.subr.bf16.mxu0 0
  %834 = vmatpush1.bf16.msra.mxu0 0
  %835 = vmatprep.subr.bf16.mxu0 0
  %836 = vmatpush1.bf16.msra.mxu0 0
  %837 = vmatprep.subr.bf16.mxu0 0
  %838 = vmatpush1.bf16.msra.mxu0 0
  %839 = vmatprep.subr.bf16.mxu0 %v481
  %840 = vmatpush1.bf16.msra.mxu0 %v478
  %841 = vmatprep.subr.bf16.mxu0 %v345
  %842 = vmatpush1.bf16.msra.mxu0 %v344
  %843 = vmatprep.subr.bf16.mxu0 %v321
  %844 = vmatpush1.bf16.msra.mxu0 %v320
  %845 = vmatprep.subr.bf16.mxu0 0
  %846 = vmatpush2.bf16.msra.mxu0 0
  %847 = vmatprep.subr.bf16.mxu0 0
  %848 = vmatpush2.bf16.msra.mxu0 0
  %849 = vmatprep.subr.bf16.mxu0 0
  %850 = vmatpush2.bf16.msra.mxu0 0
  %851 = vmatprep.subr.bf16.mxu0 0
  %852 = vmatpush2.bf16.msra.mxu0 0
  %853 = vmatprep.subr.bf16.mxu0 0
  %854 = vmatpush2.bf16.msra.mxu0 0
  %855 = vmatprep.subr.bf16.mxu0 0
  %856 = vmatpush2.bf16.msra.mxu0 0
  %857 = vmatprep.subr.bf16.mxu0 0
  %858 = vmatpush2.bf16.msra.mxu0 0
  %859 = vmatprep.subr.bf16.mxu0 0
  %860 = vmatpush2.bf16.msra.mxu0 0
  %861 = vmatprep.mubr.bf16.mxu0 0
  %862 = vmatmul.mubr.bf16.gmra.mxu0 %v426
  %v863 = vpop.f32.mrf.mxu0
  %v864 = vadd.f32 %v122, %v863
  %v865 = vpop.f32.mrf.mxu0
  %v866 = vadd.f32 %v122, %v865
  %v867 = vpop.f32.mrf.mxu0
  %v868 = vpop.f32.mrf.mxu0
  %869 = vdwg.mxu0
  %870 = vmatprep.subr.bf16.mxu0 0
  %871 = vmatpush1.bf16.msra.mxu0 0
  %872 = vmatprep.subr.bf16.mxu0 0
  %873 = vmatpush1.bf16.msra.mxu0 0
  %874 = vmatprep.subr.bf16.mxu0 0
  %875 = vmatpush1.bf16.msra.mxu0 0
  %876 = vmatprep.subr.bf16.mxu0 0
  %877 = vmatpush1.bf16.msra.mxu0 0
  %878 = vmatprep.subr.bf16.mxu0 0
  %879 = vmatpush1.bf16.msra.mxu0 0
  %880 = vmatprep.subr.bf16.mxu0 %v487
  %881 = vmatpush1.bf16.msra.mxu0 %v484
  %882 = vmatprep.subr.bf16.mxu0 %v347
  %883 = vmatpush1.bf16.msra.mxu0 %v346
  %884 = vmatprep.subr.bf16.mxu0 %v323
  %885 = vmatpush1.bf16.msra.mxu0 %v322
  %886 = vmatprep.subr.bf16.mxu0 0
  %887 = vmatpush2.bf16.msra.mxu0 0
  %888 = vmatprep.subr.bf16.mxu0 0
  %889 = vmatpush2.bf16.msra.mxu0 0
  %890 = vmatprep.subr.bf16.mxu0 0
  %891 = vmatpush2.bf16.msra.mxu0 0
  %892 = vmatprep.subr.bf16.mxu0 0
  %893 = vmatpush2.bf16.msra.mxu0 0
  %894 = vmatprep.subr.bf16.mxu0 0
  %895 = vmatpush2.bf16.msra.mxu0 0
  %896 = vmatprep.subr.bf16.mxu0 0
  %897 = vmatpush2.bf16.msra.mxu0 0
  %898 = vmatprep.subr.bf16.mxu0 0
  %899 = vmatpush2.bf16.msra.mxu0 0
  %900 = vmatprep.subr.bf16.mxu0 0
  %901 = vmatpush2.bf16.msra.mxu0 0
  %902 = vmatprep.mubr.bf16.mxu0 0
  %903 = vmatmul.mubr.bf16.gmra.mxu0 %v426
  %v904 = vpop.f32.mrf.mxu0
  %v905 = vadd.f32 %v122, %v904
  %v906 = vpop.f32.mrf.mxu0
  %v907 = vadd.f32 %v122, %v906
  %v908 = vpop.f32.mrf.mxu0
  %v909 = vpop.f32.mrf.mxu0
  %910 = vdwg.mxu0
  %911 = vmatprep.subr.bf16.mxu0 0
  %912 = vmatpush1.bf16.msra.mxu0 0
  %913 = vmatprep.subr.bf16.mxu0 0
  %914 = vmatpush1.bf16.msra.mxu0 0
  %915 = vmatprep.subr.bf16.mxu0 0
  %916 = vmatpush1.bf16.msra.mxu0 0
  %917 = vmatprep.subr.bf16.mxu0 0
  %918 = vmatpush1.bf16.msra.mxu0 0
  %919 = vmatprep.subr.bf16.mxu0 0
  %920 = vmatpush1.bf16.msra.mxu0 0
  %921 = vmatprep.subr.bf16.mxu0 %v493
  %922 = vmatpush1.bf16.msra.mxu0 %v490
  %923 = vmatprep.subr.bf16.mxu0 %v349
  %924 = vmatpush1.bf16.msra.mxu0 %v348
  %925 = vmatprep.subr.bf16.mxu0 %v325
  %926 = vmatpush1.bf16.msra.mxu0 %v324
  %927 = vmatprep.subr.bf16.mxu0 0
  %928 = vmatpush2.bf16.msra.mxu0 0
  %929 = vmatprep.subr.bf16.mxu0 0
  %930 = vmatpush2.bf16.msra.mxu0 0
  %931 = vmatprep.subr.bf16.mxu0 0
  %932 = vmatpush2.bf16.msra.mxu0 0
  %933 = vmatprep.subr.bf16.mxu0 0
  %934 = vmatpush2.bf16.msra.mxu0 0
  %935 = vmatprep.subr.bf16.mxu0 0
  %936 = vmatpush2.bf16.msra.mxu0 0
  %937 = vmatprep.subr.bf16.mxu0 0
  %938 = vmatpush2.bf16.msra.mxu0 0
  %939 = vmatprep.subr.bf16.mxu0 0
  %940 = vmatpush2.bf16.msra.mxu0 0
  %941 = vmatprep.subr.bf16.mxu0 0
  %942 = vmatpush2.bf16.msra.mxu0 0
  %943 = vmatprep.mubr.bf16.mxu0 0
  %944 = vmatmul.mubr.bf16.gmra.mxu0 %v426
  %v945 = vpop.f32.mrf.mxu0
  %v946 = vadd.f32 %v122, %v945
  %v947 = vpop.f32.mrf.mxu0
  %v948 = vadd.f32 %v122, %v947
  %v949 = vpop.f32.mrf.mxu0
  %v950 = vpop.f32.mrf.mxu0
  %951 = vdwg.mxu0
  %952 = vmatprep.subr.bf16.mxu0 0
  %953 = vmatpush1.bf16.msra.mxu0 0
  %954 = vmatprep.subr.bf16.mxu0 0
  %955 = vmatpush1.bf16.msra.mxu0 0
  %956 = vmatprep.subr.bf16.mxu0 0
  %957 = vmatpush1.bf16.msra.mxu0 0
  %958 = vmatprep.subr.bf16.mxu0 0
  %959 = vmatpush1.bf16.msra.mxu0 0
  %960 = vmatprep.subr.bf16.mxu0 0
  %961 = vmatpush1.bf16.msra.mxu0 0
  %962 = vmatprep.subr.bf16.mxu0 %v499
  %963 = vmatpush1.bf16.msra.mxu0 %v496
  %964 = vmatprep.subr.bf16.mxu0 %v351
  %965 = vmatpush1.bf16.msra.mxu0 %v350
  %966 = vmatprep.subr.bf16.mxu0 %v327
  %967 = vmatpush1.bf16.msra.mxu0 %v326
  %968 = vmatprep.subr.bf16.mxu0 0
  %969 = vmatpush2.bf16.msra.mxu0 0
  %970 = vmatprep.subr.bf16.mxu0 0
  %971 = vmatpush2.bf16.msra.mxu0 0
  %972 = vmatprep.subr.bf16.mxu0 0
  %973 = vmatpush2.bf16.msra.mxu0 0
  %974 = vmatprep.subr.bf16.mxu0 0
  %975 = vmatpush2.bf16.msra.mxu0 0
  %976 = vmatprep.subr.bf16.mxu0 0
  %977 = vmatpush2.bf16.msra.mxu0 0
  %978 = vmatprep.subr.bf16.mxu0 0
  %979 = vmatpush2.bf16.msra.mxu0 0
  %980 = vmatprep.subr.bf16.mxu0 0
  %981 = vmatpush2.bf16.msra.mxu0 0
  %982 = vmatprep.subr.bf16.mxu0 0
  %983 = vmatpush2.bf16.msra.mxu0 0
  %984 = vmatprep.mubr.bf16.mxu0 0
  %985 = vmatmul.mubr.bf16.gmra.mxu0 %v426
  %v986 = vpop.f32.mrf.mxu0
  %v987 = vadd.f32 %v122, %v986
  %v988 = vpop.f32.mrf.mxu0
  %v989 = vadd.f32 %v122, %v988
  %v990 = vpop.f32.mrf.mxu0
  %v991 = vpop.f32.mrf.mxu0
  %992 = vdwg.mxu0
  %993 = vst [vmem:[#allocation2] sm:$0xff] %v536
  %994 = vst [vmem:[#allocation2 + $0x8] sm:$0xff] %v538
  %995 = vst [vmem:[#allocation2 + $0x10] sm:$0xff] %v577
  %996 = vst [vmem:[#allocation2 + $0x18] sm:$0xff] %v579
  %997 = vst [vmem:[#allocation2 + $0x20] sm:$0xff] %v618
  %998 = vst [vmem:[#allocation2 + $0x28] sm:$0xff] %v620
  %999 = vst [vmem:[#allocation2 + $0x30] sm:$0xff] %v659
  %1000 = vst [vmem:[#allocation2 + $0x38] sm:$0xff] %v661
  %1001 = vst [vmem:[#allocation2 + $0x40] sm:$0xff] %v700
  %1002 = vst [vmem:[#allocation2 + $0x48] sm:$0xff] %v702
  %1003 = vst [vmem:[#allocation2 + $0x50] sm:$0xff] %v741
  %1004 = vst [vmem:[#allocation2 + $0x58] sm:$0xff] %v743
  %1005 = vst [vmem:[#allocation2 + $0x60] sm:$0xff] %v782
  %1006 = vst [vmem:[#allocation2 + $0x68] sm:$0xff] %v784
  %1007 = vst [vmem:[#allocation2 + $0x70] sm:$0xff] %v823
  %1008 = vst [vmem:[#allocation2 + $0x78] sm:$0xff] %v825
  %1009 = vst [vmem:[#allocation2 + $0x80] sm:$0xff] %v864
  %1010 = vst [vmem:[#allocation2 + $0x88] sm:$0xff] %v866
  %1011 = vst [vmem:[#allocation2 + $0x90] sm:$0xff] %v905
  %1012 = vst [vmem:[#allocation2 + $0x98] sm:$0xff] %v907
  %1013 = vst [vmem:[#allocation2 + $0xa0] sm:$0xff] %v946
  %1014 = vst [vmem:[#allocation2 + $0xa8] sm:$0xff] %v948
  %1015 = vst [vmem:[#allocation2 + $0xb0] sm:$0xff] %v987
  %1016 = vst [vmem:[#allocation2 + $0xb8] sm:$0xff] %v989
  %v1017 = vld [vmem:[#allocation2] sm:$0xff]
  %v1018 = vld [vmem:[#allocation2 + $0x8] sm:$0xff]
  %v1019 = vld [vmem:[#allocation2 + $0x10] sm:$0xff]
  %v1020 = vld [vmem:[#allocation2 + $0x18] sm:$0xff]
  %v1021 = vld [vmem:[#allocation2 + $0x20] sm:$0xff]
  %v1022 = vld [vmem:[#allocation2 + $0x28] sm:$0xff]
  %v1023 = vld [vmem:[#allocation7] sm:$0xff]
  %v1024 = vld [vmem:[#allocation7 + $0x8] sm:$0xff]
  %v1025 = vld [vmem:[#allocation7 + $0x10] sm:$0xff]
  %v1026 = vld [vmem:[#allocation7 + $0x18] sm:$0xff]
  %v1027 = vld [vmem:[#allocation7 + $0x20] sm:$0xff]
  %v1028 = vld [vmem:[#allocation7 + $0x28] sm:$0xff]
  %v1029 = vsub.f32 %v1017, %v1023
  %v1030 = vsub.f32 %v1018, %v1024
  %v1031 = vsub.f32 %v1019, %v1025
  %v1032 = vsub.f32 %v1020, %v1026
  %v1033 = vsub.f32 %v1021, %v1027
  %v1034 = vsub.f32 %v1022, %v1028
  %v1035 = vmul.f32 %v1029, 0.5
  %v1036 = vmul.f32 %v1030, 0.5
  %v1037 = vmul.f32 %v1031, 0.5
  %v1038 = vmul.f32 %v1032, 0.5
  %v1039 = vmul.f32 %v1033, 0.5
  %v1040 = vmul.f32 %v1034, 0.5
  %v1041 = vadd.f32 %v1023, %v1035
  %v1042 = vadd.f32 %v1024, %v1036
  %v1043 = vadd.f32 %v1025, %v1037
  %v1044 = vadd.f32 %v1026, %v1038
  %v1045 = vadd.f32 %v1027, %v1039
  %v1046 = vadd.f32 %v1028, %v1040
  %vm1047 = vcmp.ge.f32.partialorder %v1041, 1.0
  %vm1048 = vcmp.ge.f32.partialorder %v1042, 1.0
  %vm1049 = vcmp.ge.f32.partialorder %v1043, 1.0
  %vm1050 = vcmp.ge.f32.partialorder %v1044, 1.0
  %vm1051 = vcmp.ge.f32.partialorder %v1045, 1.0
  %vm1052 = vcmp.ge.f32.partialorder %v1046, 1.0
  %v1053 = vsel %vm1047, 1, 0
  %v1054 = vsel %vm1048, 1, 0
  %v1055 = vsel %vm1049, 1, 0
  %v1056 = vsel %vm1050, 1, 0
  %v1057 = vsel %vm1051, 1, 0
  %v1058 = vsel %vm1052, 1, 0
  %v1059 = vcvt.s32.f32 %v1053
  %v1060 = vcvt.s32.f32 %v1054
  %v1061 = vcvt.s32.f32 %v1055
  %v1062 = vcvt.s32.f32 %v1056
  %v1063 = vcvt.s32.f32 %v1057
  %v1064 = vcvt.s32.f32 %v1058
  %v1065 = vsub.f32 1.0, %v1059
  %v1066 = vsub.f32 1.0, %v1060
  %v1067 = vsub.f32 1.0, %v1061
  %v1068 = vsub.f32 1.0, %v1062
  %v1069 = vsub.f32 1.0, %v1063
  %v1070 = vsub.f32 1.0, %v1064
  %v1071 = vmul.f32 %v1041, %v1065
  %v1072 = vmul.f32 %v1042, %v1066
  %v1073 = vmul.f32 %v1043, %v1067
  %v1074 = vmul.f32 %v1044, %v1068
  %v1075 = vmul.f32 %v1045, %v1069
  %v1076 = vmul.f32 %v1046, %v1070
  %1077 = vst [vmem:[#allocation7] sm:$0xff] %v1071
  %1078 = vst [vmem:[#allocation7 + $0x8] sm:$0xff] %v1072
  %1079 = vst [vmem:[#allocation7 + $0x10] sm:$0xff] %v1073
  %1080 = vst [vmem:[#allocation7 + $0x18] sm:$0xff] %v1074
  %1081 = vst [vmem:[#allocation7 + $0x20] sm:$0xff] %v1075
  %1082 = vst [vmem:[#allocation7 + $0x28] sm:$0xff] %v1076
  %1083 = vst [vmem:[#allocation4] sm:$0xff] %v1059
  %1084 = vst [vmem:[#allocation4 + $0x8] sm:$0xff] %v1060
  %1085 = vst [vmem:[#allocation4 + $0x10] sm:$0xff] %v1061
  %1086 = vst [vmem:[#allocation4 + $0x18] sm:$0xff] %v1062
  %1087 = vst [vmem:[#allocation4 + $0x20] sm:$0xff] %v1063
  %1088 = vst [vmem:[#allocation4 + $0x28] sm:$0xff] %v1064
  %v1090 = vlaneseq
  %v1091 = vshrl.u32 %v1090, 7
  %v1092 = vsub.s32 0, %v1091
  %v1093 = vrot.slane %v56, %v1092
  %v1094 = vlaneseq
  %v1095 = vshrl.u32 %v1094, 7
  %v1096 = vsub.s32 1, %v1095
  %v1097 = vrot.slane %v56, %v1096
  %v1098 = vlaneseq
  %v1099 = vshrl.u32 %v1098, 7
  %v1100 = vsub.s32 2, %v1099
  %v1101 = vrot.slane %v56, %v1100
  %v1102 = vlaneseq
  %v1103 = vshrl.u32 %v1102, 7
  %v1104 = vsub.s32 3, %v1103
  %v1105 = vrot.slane %v56, %v1104
  %v1106 = vlaneseq
  %v1107 = vshrl.u32 %v1106, 7
  %v1108 = vsub.s32 4, %v1107
  %v1109 = vrot.slane %v56, %v1108
  %v1110 = vlaneseq
  %v1111 = vshrl.u32 %v1110, 7
  %v1112 = vsub.s32 5, %v1111
  %v1113 = vrot.slane %v56, %v1112
  %v1120 = vmul.f32 %v1059, %v1093
  %v1121 = vmul.f32 %v1060, %v1097
  %v1122 = vmul.f32 %v1061, %v1101
  %v1123 = vmul.f32 %v1062, %v1105
  %v1124 = vmul.f32 %v1063, %v1109
  %v1125 = vmul.f32 %v1064, %v1113
  %v1126 = vpack.c.bf16 %v1120, %v1120
  %v1127 = vpack.c.bf16 %v1121, %v1121
  %v1128 = vpack.c.bf16 %v1122, %v1122
  %v1129 = vpack.c.bf16 %v1123, %v1123
  %v1130 = vpack.c.bf16 %v1124, %v1124
  %v1131 = vpack.c.bf16 %v1125, %v1125
  %v1135 = vunpack.c.l.b16 %v1126
  %v1136 = vunpack.c.l.b16 %v1127
  %v1137 = vunpack.c.l.b16 %v1128
  %v1138 = vpack.c.b16 %v1136, %v1135
  %v1139 = vpack.c.b16 %v1137, %v1137
  %1142 = vst [vmem:[#allocation6 + $0x4] sm:$0xff] %v1138
  %1143 = vst [vmem:[#allocation6 + $0xc] sm:$0xf] %v1139
  %v1147 = vunpack.c.l.b16 %v1129
  %v1148 = vunpack.c.l.b16 %v1130
  %v1149 = vunpack.c.l.b16 %v1131
  %v1150 = vpack.c.b16 %v1148, %v1147
  %v1151 = vpack.c.b16 %v1149, %v1149
  %1154 = vst [vmem:[#allocation6 + $0x18] sm:$0xff] %v1150
  %1155 = vst [vmem:[#allocation6 + $0x20] sm:$0xf] %v1151
  %v1156 = vld [vmem:[#allocation2 + $0x30] sm:$0xff]
  %v1157 = vld [vmem:[#allocation2 + $0x38] sm:$0xff]
  %v1158 = vld [vmem:[#allocation2 + $0x40] sm:$0xff]
  %v1159 = vld [vmem:[#allocation2 + $0x48] sm:$0xff]
  %v1160 = vld [vmem:[#allocation2 + $0x50] sm:$0xff]
  %v1161 = vld [vmem:[#allocation2 + $0x58] sm:$0xff]
  %v1162 = vld [vmem:[#allocation7] sm:$0xff]
  %v1163 = vld [vmem:[#allocation7 + $0x8] sm:$0xff]
  %v1164 = vld [vmem:[#allocation7 + $0x10] sm:$0xff]
  %v1165 = vld [vmem:[#allocation7 + $0x18] sm:$0xff]
  %v1166 = vld [vmem:[#allocation7 + $0x20] sm:$0xff]
  %v1167 = vld [vmem:[#allocation7 + $0x28] sm:$0xff]
  %v1168 = vsub.f32 %v1156, %v1162
  %v1169 = vsub.f32 %v1157, %v1163
  %v1170 = vsub.f32 %v1158, %v1164
  %v1171 = vsub.f32 %v1159, %v1165
  %v1172 = vsub.f32 %v1160, %v1166
  %v1173 = vsub.f32 %v1161, %v1167
  %v1174 = vmul.f32 %v1168, 0.5
  %v1175 = vmul.f32 %v1169, 0.5
  %v1176 = vmul.f32 %v1170, 0.5
  %v1177 = vmul.f32 %v1171, 0.5
  %v1178 = vmul.f32 %v1172, 0.5
  %v1179 = vmul.f32 %v1173, 0.5
  %v1180 = vadd.f32 %v1162, %v1174
  %v1181 = vadd.f32 %v1163, %v1175
  %v1182 = vadd.f32 %v1164, %v1176
  %v1183 = vadd.f32 %v1165, %v1177
  %v1184 = vadd.f32 %v1166, %v1178
  %v1185 = vadd.f32 %v1167, %v1179
  %vm1186 = vcmp.ge.f32.partialorder %v1180, 1.0
  %vm1187 = vcmp.ge.f32.partialorder %v1181, 1.0
  %vm1188 = vcmp.ge.f32.partialorder %v1182, 1.0
  %vm1189 = vcmp.ge.f32.partialorder %v1183, 1.0
  %vm1190 = vcmp.ge.f32.partialorder %v1184, 1.0
  %vm1191 = vcmp.ge.f32.partialorder %v1185, 1.0
  %v1192 = vsel %vm1186, 1, 0
  %v1193 = vsel %vm1187, 1, 0
  %v1194 = vsel %vm1188, 1, 0
  %v1195 = vsel %vm1189, 1, 0
  %v1196 = vsel %vm1190, 1, 0
  %v1197 = vsel %vm1191, 1, 0
  %v1198 = vcvt.s32.f32 %v1192
  %v1199 = vcvt.s32.f32 %v1193
  %v1200 = vcvt.s32.f32 %v1194
  %v1201 = vcvt.s32.f32 %v1195
  %v1202 = vcvt.s32.f32 %v1196
  %v1203 = vcvt.s32.f32 %v1197
  %v1204 = vsub.f32 1.0, %v1198
  %v1205 = vsub.f32 1.0, %v1199
  %v1206 = vsub.f32 1.0, %v1200
  %v1207 = vsub.f32 1.0, %v1201
  %v1208 = vsub.f32 1.0, %v1202
  %v1209 = vsub.f32 1.0, %v1203
  %v1210 = vmul.f32 %v1180, %v1204
  %v1211 = vmul.f32 %v1181, %v1205
  %v1212 = vmul.f32 %v1182, %v1206
  %v1213 = vmul.f32 %v1183, %v1207
  %v1214 = vmul.f32 %v1184, %v1208
  %v1215 = vmul.f32 %v1185, %v1209
  %1216 = vst [vmem:[#allocation7] sm:$0xff] %v1210
  %1217 = vst [vmem:[#allocation7 + $0x8] sm:$0xff] %v1211
  %1218 = vst [vmem:[#allocation7 + $0x10] sm:$0xff] %v1212
  %1219 = vst [vmem:[#allocation7 + $0x18] sm:$0xff] %v1213
  %1220 = vst [vmem:[#allocation7 + $0x20] sm:$0xff] %v1214
  %1221 = vst [vmem:[#allocation7 + $0x28] sm:$0xff] %v1215
  %1222 = vst [vmem:[#allocation4 + $0x30] sm:$0xff] %v1198
  %1223 = vst [vmem:[#allocation4 + $0x38] sm:$0xff] %v1199
  %1224 = vst [vmem:[#allocation4 + $0x40] sm:$0xff] %v1200
  %1225 = vst [vmem:[#allocation4 + $0x48] sm:$0xff] %v1201
  %1226 = vst [vmem:[#allocation4 + $0x50] sm:$0xff] %v1202
  %1227 = vst [vmem:[#allocation4 + $0x58] sm:$0xff] %v1203
  %v1228 = vmul.f32 %v1198, %v1093
  %v1229 = vmul.f32 %v1199, %v1097
  %v1230 = vmul.f32 %v1200, %v1101
  %v1231 = vmul.f32 %v1201, %v1105
  %v1232 = vmul.f32 %v1202, %v1109
  %v1233 = vmul.f32 %v1203, %v1113
  %v1234 = vpack.c.bf16 %v1228, %v1228
  %v1235 = vpack.c.bf16 %v1229, %v1229
  %v1236 = vpack.c.bf16 %v1230, %v1230
  %v1237 = vpack.c.bf16 %v1231, %v1231
  %v1238 = vpack.c.bf16 %v1232, %v1232
  %v1239 = vpack.c.bf16 %v1233, %v1233
  %v1243 = vunpack.c.l.b16 %v1234
  %v1244 = vunpack.c.l.b16 %v1235
  %v1245 = vunpack.c.l.b16 %v1236
  %v1246 = vpack.c.b16 %v1244, %v1243
  %v1247 = vpack.c.b16 %v1245, %v1245
  %1250 = vst [vmem:[#allocation6 + $0x2c] sm:$0xff] %v1246
  %1251 = vst [vmem:[#allocation6 + $0x34] sm:$0xf] %v1247
  %v1255 = vunpack.c.l.b16 %v1237
  %v1256 = vunpack.c.l.b16 %v1238
  %v1257 = vunpack.c.l.b16 %v1239
  %v1258 = vpack.c.b16 %v1256, %v1255
  %v1259 = vpack.c.b16 %v1257, %v1257
  %1262 = vst [vmem:[#allocation6 + $0x40] sm:$0xff] %v1258
  %1263 = vst [vmem:[#allocation6 + $0x48] sm:$0xf] %v1259
  %v1264 = vld [vmem:[#allocation2 + $0x60] sm:$0xff]
  %v1265 = vld [vmem:[#allocation2 + $0x68] sm:$0xff]
  %v1266 = vld [vmem:[#allocation2 + $0x70] sm:$0xff]
  %v1267 = vld [vmem:[#allocation2 + $0x78] sm:$0xff]
  %v1268 = vld [vmem:[#allocation2 + $0x80] sm:$0xff]
  %v1269 = vld [vmem:[#allocation2 + $0x88] sm:$0xff]
  %v1270 = vld [vmem:[#allocation7] sm:$0xff]
  %v1271 = vld [vmem:[#allocation7 + $0x8] sm:$0xff]
  %v1272 = vld [vmem:[#allocation7 + $0x10] sm:$0xff]
  %v1273 = vld [vmem:[#allocation7 + $0x18] sm:$0xff]
  %v1274 = vld [vmem:[#allocation7 + $0x20] sm:$0xff]
  %v1275 = vld [vmem:[#allocation7 + $0x28] sm:$0xff]
  %v1276 = vsub.f32 %v1264, %v1270
  %v1277 = vsub.f32 %v1265, %v1271
  %v1278 = vsub.f32 %v1266, %v1272
  %v1279 = vsub.f32 %v1267, %v1273
  %v1280 = vsub.f32 %v1268, %v1274
  %v1281 = vsub.f32 %v1269, %v1275
  %v1282 = vmul.f32 %v1276, 0.5
  %v1283 = vmul.f32 %v1277, 0.5
  %v1284 = vmul.f32 %v1278, 0.5
  %v1285 = vmul.f32 %v1279, 0.5
  %v1286 = vmul.f32 %v1280, 0.5
  %v1287 = vmul.f32 %v1281, 0.5
  %v1288 = vadd.f32 %v1270, %v1282
  %v1289 = vadd.f32 %v1271, %v1283
  %v1290 = vadd.f32 %v1272, %v1284
  %v1291 = vadd.f32 %v1273, %v1285
  %v1292 = vadd.f32 %v1274, %v1286
  %v1293 = vadd.f32 %v1275, %v1287
  %vm1294 = vcmp.ge.f32.partialorder %v1288, 1.0
  %vm1295 = vcmp.ge.f32.partialorder %v1289, 1.0
  %vm1296 = vcmp.ge.f32.partialorder %v1290, 1.0
  %vm1297 = vcmp.ge.f32.partialorder %v1291, 1.0
  %vm1298 = vcmp.ge.f32.partialorder %v1292, 1.0
  %vm1299 = vcmp.ge.f32.partialorder %v1293, 1.0
  %v1300 = vsel %vm1294, 1, 0
  %v1301 = vsel %vm1295, 1, 0
  %v1302 = vsel %vm1296, 1, 0
  %v1303 = vsel %vm1297, 1, 0
  %v1304 = vsel %vm1298, 1, 0
  %v1305 = vsel %vm1299, 1, 0
  %v1306 = vcvt.s32.f32 %v1300
  %v1307 = vcvt.s32.f32 %v1301
  %v1308 = vcvt.s32.f32 %v1302
  %v1309 = vcvt.s32.f32 %v1303
  %v1310 = vcvt.s32.f32 %v1304
  %v1311 = vcvt.s32.f32 %v1305
  %v1312 = vsub.f32 1.0, %v1306
  %v1313 = vsub.f32 1.0, %v1307
  %v1314 = vsub.f32 1.0, %v1308
  %v1315 = vsub.f32 1.0, %v1309
  %v1316 = vsub.f32 1.0, %v1310
  %v1317 = vsub.f32 1.0, %v1311
  %v1318 = vmul.f32 %v1288, %v1312
  %v1319 = vmul.f32 %v1289, %v1313
  %v1320 = vmul.f32 %v1290, %v1314
  %v1321 = vmul.f32 %v1291, %v1315
  %v1322 = vmul.f32 %v1292, %v1316
  %v1323 = vmul.f32 %v1293, %v1317
  %1324 = vst [vmem:[#allocation7] sm:$0xff] %v1318
  %1325 = vst [vmem:[#allocation7 + $0x8] sm:$0xff] %v1319
  %1326 = vst [vmem:[#allocation7 + $0x10] sm:$0xff] %v1320
  %1327 = vst [vmem:[#allocation7 + $0x18] sm:$0xff] %v1321
  %1328 = vst [vmem:[#allocation7 + $0x20] sm:$0xff] %v1322
  %1329 = vst [vmem:[#allocation7 + $0x28] sm:$0xff] %v1323
  %1330 = vst [vmem:[#allocation4 + $0x60] sm:$0xff] %v1306
  %1331 = vst [vmem:[#allocation4 + $0x68] sm:$0xff] %v1307
  %1332 = vst [vmem:[#allocation4 + $0x70] sm:$0xff] %v1308
  %1333 = vst [vmem:[#allocation4 + $0x78] sm:$0xff] %v1309
  %1334 = vst [vmem:[#allocation4 + $0x80] sm:$0xff] %v1310
  %1335 = vst [vmem:[#allocation4 + $0x88] sm:$0xff] %v1311
  %v1336 = vmul.f32 %v1306, %v1093
  %v1337 = vmul.f32 %v1307, %v1097
  %v1338 = vmul.f32 %v1308, %v1101
  %v1339 = vmul.f32 %v1309, %v1105
  %v1340 = vmul.f32 %v1310, %v1109
  %v1341 = vmul.f32 %v1311, %v1113
  %v1342 = vpack.c.bf16 %v1336, %v1336
  %v1343 = vpack.c.bf16 %v1337, %v1337
  %v1344 = vpack.c.bf16 %v1338, %v1338
  %v1345 = vpack.c.bf16 %v1339, %v1339
  %v1346 = vpack.c.bf16 %v1340, %v1340
  %v1347 = vpack.c.bf16 %v1341, %v1341
  %v1351 = vunpack.c.l.b16 %v1342
  %v1352 = vunpack.c.l.b16 %v1343
  %v1353 = vunpack.c.l.b16 %v1344
  %v1354 = vpack.c.b16 %v1352, %v1351
  %v1355 = vpack.c.b16 %v1353, %v1353
  %1358 = vst [vmem:[#allocation6 + $0x54] sm:$0xff] %v1354
  %1359 = vst [vmem:[#allocation6 + $0x5c] sm:$0xf] %v1355
  %v1363 = vunpack.c.l.b16 %v1345
  %v1364 = vunpack.c.l.b16 %v1346
  %v1365 = vunpack.c.l.b16 %v1347
  %v1366 = vpack.c.b16 %v1364, %v1363
  %v1367 = vpack.c.b16 %v1365, %v1365
  %1370 = vst [vmem:[#allocation6 + $0x68] sm:$0xff] %v1366
  %1371 = vst [vmem:[#allocation6 + $0x70] sm:$0xf] %v1367
  %v1372 = vld [vmem:[#allocation2 + $0x90] sm:$0xff]
  %v1373 = vld [vmem:[#allocation2 + $0x98] sm:$0xff]
  %v1374 = vld [vmem:[#allocation2 + $0xa0] sm:$0xff]
  %v1375 = vld [vmem:[#allocation2 + $0xa8] sm:$0xff]
  %v1376 = vld [vmem:[#allocation2 + $0xb0] sm:$0xff]
  %v1377 = vld [vmem:[#allocation2 + $0xb8] sm:$0xff]
  %v1378 = vld [vmem:[#allocation7] sm:$0xff]
  %v1379 = vld [vmem:[#allocation7 + $0x8] sm:$0xff]
  %v1380 = vld [vmem:[#allocation7 + $0x10] sm:$0xff]
  %v1381 = vld [vmem:[#allocation7 + $0x18] sm:$0xff]
  %v1382 = vld [vmem:[#allocation7 + $0x20] sm:$0xff]
  %v1383 = vld [vmem:[#allocation7 + $0x28] sm:$0xff]
  %v1384 = vsub.f32 %v1372, %v1378
  %v1385 = vsub.f32 %v1373, %v1379
  %v1386 = vsub.f32 %v1374, %v1380
  %v1387 = vsub.f32 %v1375, %v1381
  %v1388 = vsub.f32 %v1376, %v1382
  %v1389 = vsub.f32 %v1377, %v1383
  %v1390 = vmul.f32 %v1384, 0.5
  %v1391 = vmul.f32 %v1385, 0.5
  %v1392 = vmul.f32 %v1386, 0.5
  %v1393 = vmul.f32 %v1387, 0.5
  %v1394 = vmul.f32 %v1388, 0.5
  %v1395 = vmul.f32 %v1389, 0.5
  %v1396 = vadd.f32 %v1378, %v1390
  %v1397 = vadd.f32 %v1379, %v1391
  %v1398 = vadd.f32 %v1380, %v1392
  %v1399 = vadd.f32 %v1381, %v1393
  %v1400 = vadd.f32 %v1382, %v1394
  %v1401 = vadd.f32 %v1383, %v1395
  %vm1402 = vcmp.ge.f32.partialorder %v1396, 1.0
  %vm1403 = vcmp.ge.f32.partialorder %v1397, 1.0
  %vm1404 = vcmp.ge.f32.partialorder %v1398, 1.0
  %vm1405 = vcmp.ge.f32.partialorder %v1399, 1.0
  %vm1406 = vcmp.ge.f32.partialorder %v1400, 1.0
  %vm1407 = vcmp.ge.f32.partialorder %v1401, 1.0
  %v1408 = vsel %vm1402, 1, 0
  %v1409 = vsel %vm1403, 1, 0
  %v1410 = vsel %vm1404, 1, 0
  %v1411 = vsel %vm1405, 1, 0
  %v1412 = vsel %vm1406, 1, 0
  %v1413 = vsel %vm1407, 1, 0
  %v1414 = vcvt.s32.f32 %v1408
  %v1415 = vcvt.s32.f32 %v1409
  %v1416 = vcvt.s32.f32 %v1410
  %v1417 = vcvt.s32.f32 %v1411
  %v1418 = vcvt.s32.f32 %v1412
  %v1419 = vcvt.s32.f32 %v1413
  %v1420 = vsub.f32 1.0, %v1414
  %v1421 = vsub.f32 1.0, %v1415
  %v1422 = vsub.f32 1.0, %v1416
  %v1423 = vsub.f32 1.0, %v1417
  %v1424 = vsub.f32 1.0, %v1418
  %v1425 = vsub.f32 1.0, %v1419
  %v1426 = vmul.f32 %v1396, %v1420
  %v1427 = vmul.f32 %v1397, %v1421
  %v1428 = vmul.f32 %v1398, %v1422
  %v1429 = vmul.f32 %v1399, %v1423
  %v1430 = vmul.f32 %v1400, %v1424
  %v1431 = vmul.f32 %v1401, %v1425
  %1432 = vst [vmem:[#allocation7] sm:$0xff] %v1426
  %1433 = vst [vmem:[#allocation7 + $0x8] sm:$0xff] %v1427
  %1434 = vst [vmem:[#allocation7 + $0x10] sm:$0xff] %v1428
  %1435 = vst [vmem:[#allocation7 + $0x18] sm:$0xff] %v1429
  %1436 = vst [vmem:[#allocation7 + $0x20] sm:$0xff] %v1430
  %1437 = vst [vmem:[#allocation7 + $0x28] sm:$0xff] %v1431
  %1438 = vst [vmem:[#allocation4 + $0x90] sm:$0xff] %v1414
  %1439 = vst [vmem:[#allocation4 + $0x98] sm:$0xff] %v1415
  %1440 = vst [vmem:[#allocation4 + $0xa0] sm:$0xff] %v1416
  %1441 = vst [vmem:[#allocation4 + $0xa8] sm:$0xff] %v1417
  %1442 = vst [vmem:[#allocation4 + $0xb0] sm:$0xff] %v1418
  %1443 = vst [vmem:[#allocation4 + $0xb8] sm:$0xff] %v1419
  %v1444 = vmul.f32 %v1414, %v1093
  %v1445 = vmul.f32 %v1415, %v1097
  %v1446 = vmul.f32 %v1416, %v1101
  %v1447 = vmul.f32 %v1417, %v1105
  %v1448 = vmul.f32 %v1418, %v1109
  %v1449 = vmul.f32 %v1419, %v1113
  %v1450 = vpack.c.bf16 %v1444, %v1444
  %v1451 = vpack.c.bf16 %v1445, %v1445
  %v1452 = vpack.c.bf16 %v1446, %v1446
  %v1453 = vpack.c.bf16 %v1447, %v1447
  %v1454 = vpack.c.bf16 %v1448, %v1448
  %v1455 = vpack.c.bf16 %v1449, %v1449
  %v1459 = vunpack.c.l.b16 %v1450
  %v1460 = vunpack.c.l.b16 %v1451
  %v1461 = vunpack.c.l.b16 %v1452
  %v1462 = vpack.c.b16 %v1460, %v1459
  %v1463 = vpack.c.b16 %v1461, %v1461
  %1466 = vst [vmem:[#allocation6 + $0x7c] sm:$0xff] %v1462
  %1467 = vst [vmem:[#allocation6 + $0x84] sm:$0xf] %v1463
  %v1471 = vunpack.c.l.b16 %v1453
  %v1472 = vunpack.c.l.b16 %v1454
  %v1473 = vunpack.c.l.b16 %v1455
  %v1474 = vpack.c.b16 %v1472, %v1471
  %v1475 = vpack.c.b16 %v1473, %v1473
  %1478 = vst [vmem:[#allocation6 + $0x90] sm:$0xff] %v1474
  %1479 = vst [vmem:[#allocation6 + $0x98] sm:$0xf] %v1475
  %v1480 = vld [vmem:[#allocation6] sm:$0xff]
  %v1481 = vld [vmem:[#allocation6 + $0x8] sm:$0xff]
  %1484 = vrot.lane.b32.xlu0 %v1480, 25
  %v1485 = vpop.permute.xlu0 %1484
  %1486 = vrot.lane.b32.xlu0 %v1481, 25
  %v1487 = vpop.permute.xlu0 %1486
  %v1488 = vrot.slane %v1485, 4
  %v1489 = vrot.slane %v1487, 4
  %vm1490 = vcmask 1043456
  %v1491 = vsel %vm1490, %v1488, %v1489
  %vm1492 = vcmask 203776
  %v1493 = vsel %vm1492, %v1485, %v1491
  %v1494 = vsel %vm1492, %v1487, %v1489
  %1497 = vst [vmem:[#allocation5] sm:$0xff] %v1493
  %1498 = vst [vmem:[#allocation5 + $0x8] sm:$0xf] %v1494
  %v1499 = vld [vmem:[#allocation6 + $0x14] sm:$0xff]
  %v1500 = vld [vmem:[#allocation6 + $0x1c] sm:$0xff]
  %1503 = vrot.lane.b32.xlu0 %v1499, 25
  %v1504 = vpop.permute.xlu0 %1503
  %1505 = vrot.lane.b32.xlu0 %v1500, 25
  %v1506 = vpop.permute.xlu0 %1505
  %v1507 = vrot.slane %v1504, 4
  %v1508 = vrot.slane %v1506, 4
  %v1509 = vsel %vm1490, %v1507, %v1508
  %v1510 = vsel %vm1492, %v1504, %v1509
  %v1511 = vsel %vm1492, %v1506, %v1508
  %1514 = vst [vmem:[#allocation5 + $0xc] sm:$0xff] %v1510
  %1515 = vst [vmem:[#allocation5 + $0x14] sm:$0xf] %v1511
  %v1516 = vld [vmem:[#allocation6 + $0x28] sm:$0xff]
  %v1517 = vld [vmem:[#allocation6 + $0x30] sm:$0xff]
  %1520 = vrot.lane.b32.xlu0 %v1516, 25
  %v1521 = vpop.permute.xlu0 %1520
  %1522 = vrot.lane.b32.xlu0 %v1517, 25
  %v1523 = vpop.permute.xlu0 %1522
  %v1524 = vrot.slane %v1521, 4
  %v1525 = vrot.slane %v1523, 4
  %v1526 = vsel %vm1490, %v1524, %v1525
  %v1527 = vsel %vm1492, %v1521, %v1526
  %v1528 = vsel %vm1492, %v1523, %v1525
  %1531 = vst [vmem:[#allocation5 + $0x18] sm:$0xff] %v1527
  %1532 = vst [vmem:[#allocation5 + $0x20] sm:$0xf] %v1528
  %v1533 = vld [vmem:[#allocation6 + $0x3c] sm:$0xff]
  %v1534 = vld [vmem:[#allocation6 + $0x44] sm:$0xff]
  %1537 = vrot.lane.b32.xlu0 %v1533, 25
  %v1538 = vpop.permute.xlu0 %1537
  %1539 = vrot.lane.b32.xlu0 %v1534, 25
  %v1540 = vpop.permute.xlu0 %1539
  %v1541 = vrot.slane %v1538, 4
  %v1542 = vrot.slane %v1540, 4
  %v1543 = vsel %vm1490, %v1541, %v1542
  %v1544 = vsel %vm1492, %v1538, %v1543
  %v1545 = vsel %vm1492, %v1540, %v1542
  %1548 = vst [vmem:[#allocation5 + $0x24] sm:$0xff] %v1544
  %1549 = vst [vmem:[#allocation5 + $0x2c] sm:$0xf] %v1545
  %v1550 = vld [vmem:[#allocation6 + $0x50] sm:$0xff]
  %v1551 = vld [vmem:[#allocation6 + $0x58] sm:$0xff]
  %1554 = vrot.lane.b32.xlu0 %v1550, 25
  %v1555 = vpop.permute.xlu0 %1554
  %1556 = vrot.lane.b32.xlu0 %v1551, 25
  %v1557 = vpop.permute.xlu0 %1556
  %v1558 = vrot.slane %v1555, 4
  %v1559 = vrot.slane %v1557, 4
  %v1560 = vsel %vm1490, %v1558, %v1559
  %v1561 = vsel %vm1492, %v1555, %v1560
  %v1562 = vsel %vm1492, %v1557, %v1559
  %1565 = vst [vmem:[#allocation5 + $0x30] sm:$0xff] %v1561
  %1566 = vst [vmem:[#allocation5 + $0x38] sm:$0xf] %v1562
  %v1567 = vld [vmem:[#allocation6 + $0x64] sm:$0xff]
  %v1568 = vld [vmem:[#allocation6 + $0x6c] sm:$0xff]
  %1571 = vrot.lane.b32.xlu0 %v1567, 25
  %v1572 = vpop.permute.xlu0 %1571
  %1573 = vrot.lane.b32.xlu0 %v1568, 25
  %v1574 = vpop.permute.xlu0 %1573
  %v1575 = vrot.slane %v1572, 4
  %v1576 = vrot.slane %v1574, 4
  %v1577 = vsel %vm1490, %v1575, %v1576
  %v1578 = vsel %vm1492, %v1572, %v1577
  %v1579 = vsel %vm1492, %v1574, %v1576
  %1582 = vst [vmem:[#allocation5 + $0x3c] sm:$0xff] %v1578
  %1583 = vst [vmem:[#allocation5 + $0x44] sm:$0xf] %v1579
  %v1584 = vld [vmem:[#allocation6 + $0x78] sm:$0xff]
  %v1585 = vld [vmem:[#allocation6 + $0x80] sm:$0xff]
  %1588 = vrot.lane.b32.xlu0 %v1584, 25
  %v1589 = vpop.permute.xlu0 %1588
  %1590 = vrot.lane.b32.xlu0 %v1585, 25
  %v1591 = vpop.permute.xlu0 %1590
  %v1592 = vrot.slane %v1589, 4
  %v1593 = vrot.slane %v1591, 4
  %v1594 = vsel %vm1490, %v1592, %v1593
  %v1595 = vsel %vm1492, %v1589, %v1594
  %v1596 = vsel %vm1492, %v1591, %v1593
  %1599 = vst [vmem:[#allocation5 + $0x48] sm:$0xff] %v1595
  %1600 = vst [vmem:[#allocation5 + $0x50] sm:$0xf] %v1596
  %v1601 = vld [vmem:[#allocation6 + $0x8c] sm:$0xff]
  %v1602 = vld [vmem:[#allocation6 + $0x94] sm:$0xff]
  %1605 = vrot.lane.b32.xlu0 %v1601, 25
  %v1606 = vpop.permute.xlu0 %1605
  %1607 = vrot.lane.b32.xlu0 %v1602, 25
  %v1608 = vpop.permute.xlu0 %1607
  %v1609 = vrot.slane %v1606, 4
  %v1610 = vrot.slane %v1608, 4
  %v1611 = vsel %vm1490, %v1609, %v1610
  %v1612 = vsel %vm1492, %v1606, %v1611
  %v1613 = vsel %vm1492, %v1608, %v1610
  %1616 = vst [vmem:[#allocation5 + $0x54] sm:$0xff] %v1612
  %1617 = vst [vmem:[#allocation5 + $0x5c] sm:$0xf] %v1613
  %v1618 = vld [vmem:[#allocation6] sm:$0xff]
  %v1619 = vld [vmem:[#allocation6 + $0x8] sm:$0xff]
  %1622 = vrot.lane.b32.xlu0 %v1618, 24
  %v1623 = vpop.permute.xlu0 %1622
  %1624 = vrot.lane.b32.xlu0 %v1619, 24
  %v1625 = vpop.permute.xlu0 %1624
  %v1626 = vrot.slane %v1623, 4
  %v1627 = vrot.slane %v1625, 4
  %v1628 = vsel %vm1490, %v1626, %v1627
  %vm1629 = vcmask 195584
  %v1630 = vsel %vm1629, %v1623, %v1628
  %v1631 = vsel %vm1629, %v1625, %v1627
  %1634 = vst [vmem:[#allocation5 + $0x60] sm:$0xff] %v1630
  %1635 = vst [vmem:[#allocation5 + $0x68] sm:$0xf] %v1631
  %v1636 = vld [vmem:[#allocation6 + $0x14] sm:$0xff]
  %v1637 = vld [vmem:[#allocation6 + $0x1c] sm:$0xff]
  %1640 = vrot.lane.b32.xlu0 %v1636, 24
  %v1641 = vpop.permute.xlu0 %1640
  %1642 = vrot.lane.b32.xlu0 %v1637, 24
  %v1643 = vpop.permute.xlu0 %1642
  %v1644 = vrot.slane %v1641, 4
  %v1645 = vrot.slane %v1643, 4
  %v1646 = vsel %vm1490, %v1644, %v1645
  %v1647 = vsel %vm1629, %v1641, %v1646
  %v1648 = vsel %vm1629, %v1643, %v1645
  %1651 = vst [vmem:[#allocation5 + $0x6c] sm:$0xff] %v1647
  %1652 = vst [vmem:[#allocation5 + $0x74] sm:$0xf] %v1648
  %v1653 = vld [vmem:[#allocation6 + $0x28] sm:$0xff]
  %v1654 = vld [vmem:[#allocation6 + $0x30] sm:$0xff]
  %1657 = vrot.lane.b32.xlu0 %v1653, 24
  %v1658 = vpop.permute.xlu0 %1657
  %1659 = vrot.lane.b32.xlu0 %v1654, 24
  %v1660 = vpop.permute.xlu0 %1659
  %v1661 = vrot.slane %v1658, 4
  %v1662 = vrot.slane %v1660, 4
  %v1663 = vsel %vm1490, %v1661, %v1662
  %v1664 = vsel %vm1629, %v1658, %v1663
  %v1665 = vsel %vm1629, %v1660, %v1662
  %1668 = vst [vmem:[#allocation5 + $0x78] sm:$0xff] %v1664
  %1669 = vst [vmem:[#allocation5 + $0x80] sm:$0xf] %v1665
  %v1670 = vld [vmem:[#allocation6 + $0x3c] sm:$0xff]
  %v1671 = vld [vmem:[#allocation6 + $0x44] sm:$0xff]
  %1674 = vrot.lane.b32.xlu0 %v1670, 24
  %v1675 = vpop.permute.xlu0 %1674
  %1676 = vrot.lane.b32.xlu0 %v1671, 24
  %v1677 = vpop.permute.xlu0 %1676
  %v1678 = vrot.slane %v1675, 4
  %v1679 = vrot.slane %v1677, 4
  %v1680 = vsel %vm1490, %v1678, %v1679
  %v1681 = vsel %vm1629, %v1675, %v1680
  %v1682 = vsel %vm1629, %v1677, %v1679
  %1685 = vst [vmem:[#allocation5 + $0x84] sm:$0xff] %v1681
  %1686 = vst [vmem:[#allocation5 + $0x8c] sm:$0xf] %v1682
  %v1687 = vld [vmem:[#allocation6 + $0x50] sm:$0xff]
  %v1688 = vld [vmem:[#allocation6 + $0x58] sm:$0xff]
  %1691 = vrot.lane.b32.xlu0 %v1687, 24
  %v1692 = vpop.permute.xlu0 %1691
  %1693 = vrot.lane.b32.xlu0 %v1688, 24
  %v1694 = vpop.permute.xlu0 %1693
  %v1695 = vrot.slane %v1692, 4
  %v1696 = vrot.slane %v1694, 4
  %v1697 = vsel %vm1490, %v1695, %v1696
  %v1698 = vsel %vm1629, %v1692, %v1697
  %v1699 = vsel %vm1629, %v1694, %v1696
  %1702 = vst [vmem:[#allocation5 + $0x90] sm:$0xff] %v1698
  %1703 = vst [vmem:[#allocation5 + $0x98] sm:$0xf] %v1699
  %v1704 = vld [vmem:[#allocation6 + $0x64] sm:$0xff]
  %v1705 = vld [vmem:[#allocation6 + $0x6c] sm:$0xff]
  %1708 = vrot.lane.b32.xlu0 %v1704, 24
  %v1709 = vpop.permute.xlu0 %1708
  %1710 = vrot.lane.b32.xlu0 %v1705, 24
  %v1711 = vpop.permute.xlu0 %1710
  %v1712 = vrot.slane %v1709, 4
  %v1713 = vrot.slane %v1711, 4
  %v1714 = vsel %vm1490, %v1712, %v1713
  %v1715 = vsel %vm1629, %v1709, %v1714
  %v1716 = vsel %vm1629, %v1711, %v1713
  %1719 = vst [vmem:[#allocation5 + $0x9c] sm:$0xff] %v1715
  %1720 = vst [vmem:[#allocation5 + $0xa4] sm:$0xf] %v1716
  %v1721 = vld [vmem:[#allocation6 + $0x78] sm:$0xff]
  %v1722 = vld [vmem:[#allocation6 + $0x80] sm:$0xff]
  %1725 = vrot.lane.b32.xlu0 %v1721, 24
  %v1726 = vpop.permute.xlu0 %1725
  %1727 = vrot.lane.b32.xlu0 %v1722, 24
  %v1728 = vpop.permute.xlu0 %1727
  %v1729 = vrot.slane %v1726, 4
  %v1730 = vrot.slane %v1728, 4
  %v1731 = vsel %vm1490, %v1729, %v1730
  %v1732 = vsel %vm1629, %v1726, %v1731
  %v1733 = vsel %vm1629, %v1728, %v1730
  %1736 = vst [vmem:[#allocation5 + $0xa8] sm:$0xff] %v1732
  %1737 = vst [vmem:[#allocation5 + $0xb0] sm:$0xf] %v1733
  %v1738 = vld [vmem:[#allocation6 + $0x8c] sm:$0xff]
  %v1739 = vld [vmem:[#allocation6 + $0x94] sm:$0xff]
  %1742 = vrot.lane.b32.xlu0 %v1738, 24
  %v1743 = vpop.permute.xlu0 %1742
  %1744 = vrot.lane.b32.xlu0 %v1739, 24
  %v1745 = vpop.permute.xlu0 %1744
  %v1746 = vrot.slane %v1743, 4
  %v1747 = vrot.slane %v1745, 4
  %v1748 = vsel %vm1490, %v1746, %v1747
  %v1749 = vsel %vm1629, %v1743, %v1748
  %v1750 = vsel %vm1629, %v1745, %v1747
  %1753 = vst [vmem:[#allocation5 + $0xb4] sm:$0xff] %v1749
  %1754 = vst [vmem:[#allocation5 + $0xbc] sm:$0xf] %v1750
  %v1755 = vld [vmem:[#allocation6] sm:$0xff]
  %v1756 = vld [vmem:[#allocation6 + $0x8] sm:$0xff]
  %1759 = vrot.lane.b32.xlu0 %v1755, 23
  %v1760 = vpop.permute.xlu0 %1759
  %1761 = vrot.lane.b32.xlu0 %v1756, 23
  %v1762 = vpop.permute.xlu0 %1761
  %v1763 = vrot.slane %v1760, 4
  %v1764 = vrot.slane %v1762, 4
  %v1765 = vsel %vm1490, %v1763, %v1764
  %vm1766 = vcmask 187392
  %v1767 = vsel %vm1766, %v1760, %v1765
  %v1768 = vsel %vm1766, %v1762, %v1764
  %1771 = vst [vmem:[#allocation5 + $0xc0] sm:$0xff] %v1767
  %1772 = vst [vmem:[#allocation5 + $0xc8] sm:$0xf] %v1768
  %v1773 = vld [vmem:[#allocation6 + $0x14] sm:$0xff]
  %v1774 = vld [vmem:[#allocation6 + $0x1c] sm:$0xff]
  %1777 = vrot.lane.b32.xlu0 %v1773, 23
  %v1778 = vpop.permute.xlu0 %1777
  %1779 = vrot.lane.b32.xlu0 %v1774, 23
  %v1780 = vpop.permute.xlu0 %1779
  %v1781 = vrot.slane %v1778, 4
  %v1782 = vrot.slane %v1780, 4
  %v1783 = vsel %vm1490, %v1781, %v1782
  %v1784 = vsel %vm1766, %v1778, %v1783
  %v1785 = vsel %vm1766, %v1780, %v1782
  %1788 = vst [vmem:[#allocation5 + $0xcc] sm:$0xff] %v1784
  %1789 = vst [vmem:[#allocation5 + $0xd4] sm:$0xf] %v1785
  %v1790 = vld [vmem:[#allocation6 + $0x28] sm:$0xff]
  %v1791 = vld [vmem:[#allocation6 + $0x30] sm:$0xff]
  %1794 = vrot.lane.b32.xlu0 %v1790, 23
  %v1795 = vpop.permute.xlu0 %1794
  %1796 = vrot.lane.b32.xlu0 %v1791, 23
  %v1797 = vpop.permute.xlu0 %1796
  %v1798 = vrot.slane %v1795, 4
  %v1799 = vrot.slane %v1797, 4
  %v1800 = vsel %vm1490, %v1798, %v1799
  %v1801 = vsel %vm1766, %v1795, %v1800
  %v1802 = vsel %vm1766, %v1797, %v1799
  %1805 = vst [vmem:[#allocation5 + $0xd8] sm:$0xff] %v1801
  %1806 = vst [vmem:[#allocation5 + $0xe0] sm:$0xf] %v1802
  %v1807 = vld [vmem:[#allocation6 + $0x3c] sm:$0xff]
  %v1808 = vld [vmem:[#allocation6 + $0x44] sm:$0xff]
  %1811 = vrot.lane.b32.xlu0 %v1807, 23
  %v1812 = vpop.permute.xlu0 %1811
  %1813 = vrot.lane.b32.xlu0 %v1808, 23
  %v1814 = vpop.permute.xlu0 %1813
  %v1815 = vrot.slane %v1812, 4
  %v1816 = vrot.slane %v1814, 4
  %v1817 = vsel %vm1490, %v1815, %v1816
  %v1818 = vsel %vm1766, %v1812, %v1817
  %v1819 = vsel %vm1766, %v1814, %v1816
  %1822 = vst [vmem:[#allocation5 + $0xe4] sm:$0xff] %v1818
  %1823 = vst [vmem:[#allocation5 + $0xec] sm:$0xf] %v1819
  %v1824 = vld [vmem:[#allocation6 + $0x50] sm:$0xff]
  %v1825 = vld [vmem:[#allocation6 + $0x58] sm:$0xff]
  %1828 = vrot.lane.b32.xlu0 %v1824, 23
  %v1829 = vpop.permute.xlu0 %1828
  %1830 = vrot.lane.b32.xlu0 %v1825, 23
  %v1831 = vpop.permute.xlu0 %1830
  %v1832 = vrot.slane %v1829, 4
  %v1833 = vrot.slane %v1831, 4
  %v1834 = vsel %vm1490, %v1832, %v1833
  %v1835 = vsel %vm1766, %v1829, %v1834
  %v1836 = vsel %vm1766, %v1831, %v1833
  %1839 = vst [vmem:[#allocation5 + $0xf0] sm:$0xff] %v1835
  %1840 = vst [vmem:[#allocation5 + $0xf8] sm:$0xf] %v1836
  %v1841 = vld [vmem:[#allocation6 + $0x64] sm:$0xff]
  %v1842 = vld [vmem:[#allocation6 + $0x6c] sm:$0xff]
  %1845 = vrot.lane.b32.xlu0 %v1841, 23
  %v1846 = vpop.permute.xlu0 %1845
  %1847 = vrot.lane.b32.xlu0 %v1842, 23
  %v1848 = vpop.permute.xlu0 %1847
  %v1849 = vrot.slane %v1846, 4
  %v1850 = vrot.slane %v1848, 4
  %v1851 = vsel %vm1490, %v1849, %v1850
  %v1852 = vsel %vm1766, %v1846, %v1851
  %v1853 = vsel %vm1766, %v1848, %v1850
  %1856 = vst [vmem:[#allocation5 + $0xfc] sm:$0xff] %v1852
  %1857 = vst [vmem:[#allocation5 + $0x104] sm:$0xf] %v1853
  %v1858 = vld [vmem:[#allocation6 + $0x78] sm:$0xff]
  %v1859 = vld [vmem:[#allocation6 + $0x80] sm:$0xff]
  %1862 = vrot.lane.b32.xlu0 %v1858, 23
  %v1863 = vpop.permute.xlu0 %1862
  %1864 = vrot.lane.b32.xlu0 %v1859, 23
  %v1865 = vpop.permute.xlu0 %1864
  %v1866 = vrot.slane %v1863, 4
  %v1867 = vrot.slane %v1865, 4
  %v1868 = vsel %vm1490, %v1866, %v1867
  %v1869 = vsel %vm1766, %v1863, %v1868
  %v1870 = vsel %vm1766, %v1865, %v1867
  %1873 = vst [vmem:[#allocation5 + $0x108] sm:$0xff] %v1869
  %1874 = vst [vmem:[#allocation5 + $0x110] sm:$0xf] %v1870
  %v1875 = vld [vmem:[#allocation6 + $0x8c] sm:$0xff]
  %v1876 = vld [vmem:[#allocation6 + $0x94] sm:$0xff]
  %1879 = vrot.lane.b32.xlu0 %v1875, 23
  %v1880 = vpop.permute.xlu0 %1879
  %1881 = vrot.lane.b32.xlu0 %v1876, 23
  %v1882 = vpop.permute.xlu0 %1881
  %v1883 = vrot.slane %v1880, 4
  %v1884 = vrot.slane %v1882, 4
  %v1885 = vsel %vm1490, %v1883, %v1884
  %v1886 = vsel %vm1766, %v1880, %v1885
  %v1887 = vsel %vm1766, %v1882, %v1884
  %1890 = vst [vmem:[#allocation5 + $0x114] sm:$0xff] %v1886
  %1891 = vst [vmem:[#allocation5 + $0x11c] sm:$0xf] %v1887
  %v1892 = vld [vmem:[#allocation6] sm:$0xff]
  %v1893 = vld [vmem:[#allocation6 + $0x8] sm:$0xff]
  %1896 = vrot.lane.b32.xlu0 %v1892, 1
  %v1897 = vpop.permute.xlu0 %1896
  %1898 = vrot.lane.b32.xlu0 %v1893, 1
  %v1899 = vpop.permute.xlu0 %1898
  %v1900 = vrot.slane %v1897, 4
  %v1901 = vrot.slane %v1899, 4
  %v1902 = vsel %vm1490, %v1900, %v1901
  %vm1903 = vcmask 7168
  %v1904 = vsel %vm1903, %v1897, %v1902
  %v1905 = vsel %vm1903, %v1899, %v1901
  %1908 = vst [vmem:[#allocation5 + $0x120] sm:$0xff] %v1904
  %1909 = vst [vmem:[#allocation5 + $0x128] sm:$0xf] %v1905
  %v1910 = vld [vmem:[#allocation6 + $0x14] sm:$0xff]
  %v1911 = vld [vmem:[#allocation6 + $0x1c] sm:$0xff]
  %1914 = vrot.lane.b32.xlu0 %v1910, 1
  %v1915 = vpop.permute.xlu0 %1914
  %1916 = vrot.lane.b32.xlu0 %v1911, 1
  %v1917 = vpop.permute.xlu0 %1916
  %v1918 = vrot.slane %v1915, 4
  %v1919 = vrot.slane %v1917, 4
  %v1920 = vsel %vm1490, %v1918, %v1919
  %v1921 = vsel %vm1903, %v1915, %v1920
  %v1922 = vsel %vm1903, %v1917, %v1919
  %1925 = vst [vmem:[#allocation5 + $0x12c] sm:$0xff] %v1921
  %1926 = vst [vmem:[#allocation5 + $0x134] sm:$0xf] %v1922
  %v1927 = vld [vmem:[#allocation6 + $0x28] sm:$0xff]
  %v1928 = vld [vmem:[#allocation6 + $0x30] sm:$0xff]
  %1931 = vrot.lane.b32.xlu0 %v1927, 1
  %v1932 = vpop.permute.xlu0 %1931
  %1933 = vrot.lane.b32.xlu0 %v1928, 1
  %v1934 = vpop.permute.xlu0 %1933
  %v1935 = vrot.slane %v1932, 4
  %v1936 = vrot.slane %v1934, 4
  %v1937 = vsel %vm1490, %v1935, %v1936
  %v1938 = vsel %vm1903, %v1932, %v1937
  %v1939 = vsel %vm1903, %v1934, %v1936
  %1942 = vst [vmem:[#allocation5 + $0x138] sm:$0xff] %v1938
  %1943 = vst [vmem:[#allocation5 + $0x140] sm:$0xf] %v1939
  %v1944 = vld [vmem:[#allocation6 + $0x3c] sm:$0xff]
  %v1945 = vld [vmem:[#allocation6 + $0x44] sm:$0xff]
  %1948 = vrot.lane.b32.xlu0 %v1944, 1
  %v1949 = vpop.permute.xlu0 %1948
  %1950 = vrot.lane.b32.xlu0 %v1945, 1
  %v1951 = vpop.permute.xlu0 %1950
  %v1952 = vrot.slane %v1949, 4
  %v1953 = vrot.slane %v1951, 4
  %v1954 = vsel %vm1490, %v1952, %v1953
  %v1955 = vsel %vm1903, %v1949, %v1954
  %v1956 = vsel %vm1903, %v1951, %v1953
  %1959 = vst [vmem:[#allocation5 + $0x144] sm:$0xff] %v1955
  %1960 = vst [vmem:[#allocation5 + $0x14c] sm:$0xf] %v1956
  %v1961 = vld [vmem:[#allocation6 + $0x50] sm:$0xff]
  %v1962 = vld [vmem:[#allocation6 + $0x58] sm:$0xff]
  %1965 = vrot.lane.b32.xlu0 %v1961, 1
  %v1966 = vpop.permute.xlu0 %1965
  %1967 = vrot.lane.b32.xlu0 %v1962, 1
  %v1968 = vpop.permute.xlu0 %1967
  %v1969 = vrot.slane %v1966, 4
  %v1970 = vrot.slane %v1968, 4
  %v1971 = vsel %vm1490, %v1969, %v1970
  %v1972 = vsel %vm1903, %v1966, %v1971
  %v1973 = vsel %vm1903, %v1968, %v1970
  %1976 = vst [vmem:[#allocation5 + $0x150] sm:$0xff] %v1972
  %1977 = vst [vmem:[#allocation5 + $0x158] sm:$0xf] %v1973
  %v1978 = vld [vmem:[#allocation6 + $0x64] sm:$0xff]
  %v1979 = vld [vmem:[#allocation6 + $0x6c] sm:$0xff]
  %1982 = vrot.lane.b32.xlu0 %v1978, 1
  %v1983 = vpop.permute.xlu0 %1982
  %1984 = vrot.lane.b32.xlu0 %v1979, 1
  %v1985 = vpop.permute.xlu0 %1984
  %v1986 = vrot.slane %v1983, 4
  %v1987 = vrot.slane %v1985, 4
  %v1988 = vsel %vm1490, %v1986, %v1987
  %v1989 = vsel %vm1903, %v1983, %v1988
  %v1990 = vsel %vm1903, %v1985, %v1987
  %1993 = vst [vmem:[#allocation5 + $0x15c] sm:$0xff] %v1989
  %1994 = vst [vmem:[#allocation5 + $0x164] sm:$0xf] %v1990
  %v1995 = vld [vmem:[#allocation6 + $0x78] sm:$0xff]
  %v1996 = vld [vmem:[#allocation6 + $0x80] sm:$0xff]
  %1999 = vrot.lane.b32.xlu0 %v1995, 1
  %v2000 = vpop.permute.xlu0 %1999
  %2001 = vrot.lane.b32.xlu0 %v1996, 1
  %v2002 = vpop.permute.xlu0 %2001
  %v2003 = vrot.slane %v2000, 4
  %v2004 = vrot.slane %v2002, 4
  %v2005 = vsel %vm1490, %v2003, %v2004
  %v2006 = vsel %vm1903, %v2000, %v2005
  %v2007 = vsel %vm1903, %v2002, %v2004
  %2010 = vst [vmem:[#allocation5 + $0x168] sm:$0xff] %v2006
  %2011 = vst [vmem:[#allocation5 + $0x170] sm:$0xf] %v2007
  %v2012 = vld [vmem:[#allocation6 + $0x8c] sm:$0xff]
  %v2013 = vld [vmem:[#allocation6 + $0x94] sm:$0xff]
  %2016 = vrot.lane.b32.xlu0 %v2012, 1
  %v2017 = vpop.permute.xlu0 %2016
  %2018 = vrot.lane.b32.xlu0 %v2013, 1
  %v2019 = vpop.permute.xlu0 %2018
  %v2020 = vrot.slane %v2017, 4
  %v2021 = vrot.slane %v2019, 4
  %v2022 = vsel %vm1490, %v2020, %v2021
  %v2023 = vsel %vm1903, %v2017, %v2022
  %v2024 = vsel %vm1903, %v2019, %v2021
  %2027 = vst [vmem:[#allocation5 + $0x174] sm:$0xff] %v2023
  %2028 = vst [vmem:[#allocation5 + $0x17c] sm:$0xf] %v2024
  %v2029 = vld [vmem:[#allocation6 + $0x4] sm:$0xff]
  %v2030 = vld [vmem:[#allocation6 + $0xc] sm:$0xf]
  %2031 = vst [vmem:[#allocation5 + $0x180] sm:$0xff] %v2029
  %2032 = vst [vmem:[#allocation5 + $0x188] sm:$0xf] %v2030
  %v2033 = vld [vmem:[#allocation6 + $0x18] sm:$0xff]
  %v2034 = vld [vmem:[#allocation6 + $0x20] sm:$0xf]
  %2035 = vst [vmem:[#allocation5 + $0x18c] sm:$0xff] %v2033
  %2036 = vst [vmem:[#allocation5 + $0x194] sm:$0xf] %v2034
  %v2037 = vld [vmem:[#allocation6 + $0x2c] sm:$0xff]
  %v2038 = vld [vmem:[#allocation6 + $0x34] sm:$0xf]
  %2039 = vst [vmem:[#allocation5 + $0x198] sm:$0xff] %v2037
  %2040 = vst [vmem:[#allocation5 + $0x1a0] sm:$0xf] %v2038
  %v2041 = vld [vmem:[#allocation6 + $0x40] sm:$0xff]
  %v2042 = vld [vmem:[#allocation6 + $0x48] sm:$0xf]
  %2043 = vst [vmem:[#allocation5 + $0x1a4] sm:$0xff] %v2041
  %2044 = vst [vmem:[#allocation5 + $0x1ac] sm:$0xf] %v2042
  %v2045 = vld [vmem:[#allocation6 + $0x54] sm:$0xff]
  %v2046 = vld [vmem:[#allocation6 + $0x5c] sm:$0xf]
  %2047 = vst [vmem:[#allocation5 + $0x1b0] sm:$0xff] %v2045
  %2048 = vst [vmem:[#allocation5 + $0x1b8] sm:$0xf] %v2046
  %v2049 = vld [vmem:[#allocation6 + $0x68] sm:$0xff]
  %v2050 = vld [vmem:[#allocation6 + $0x70] sm:$0xf]
  %2051 = vst [vmem:[#allocation5 + $0x1bc] sm:$0xff] %v2049
  %2052 = vst [vmem:[#allocation5 + $0x1c4] sm:$0xf] %v2050
  %v2053 = vld [vmem:[#allocation6 + $0x7c] sm:$0xff]
  %v2054 = vld [vmem:[#allocation6 + $0x84] sm:$0xf]
  %2055 = vst [vmem:[#allocation5 + $0x1c8] sm:$0xff] %v2053
  %2056 = vst [vmem:[#allocation5 + $0x1d0] sm:$0xf] %v2054
  %v2057 = vld [vmem:[#allocation6 + $0x90] sm:$0xff]
  %v2058 = vld [vmem:[#allocation6 + $0x98] sm:$0xf]
  %2059 = vst [vmem:[#allocation5 + $0x1d4] sm:$0xff] %v2057
  %2060 = vst [vmem:[#allocation5 + $0x1dc] sm:$0xf] %v2058
  %v2061 = vld [vmem:[#allocation6 + $0x4] sm:$0xff]
  %v2062 = vld [vmem:[#allocation6 + $0xc] sm:$0xff]
  %2065 = vrot.lane.b32.xlu0 %v2061, 127
  %v2066 = vpop.permute.xlu0 %2065
  %2067 = vrot.lane.b32.xlu0 %v2062, 127
  %v2068 = vpop.permute.xlu0 %2067
  %v2069 = vrot.slane %v2066, 4
  %v2070 = vrot.slane %v2068, 4
  %v2071 = vsel %vm1490, %v2069, %v2070
  %vm2072 = vcmask 1039360
  %v2073 = vsel %vm2072, %v2066, %v2071
  %v2074 = vsel %vm2072, %v2068, %v2070
  %2077 = vst [vmem:[#allocation5 + $0x1e0] sm:$0xff] %v2073
  %2078 = vst [vmem:[#allocation5 + $0x1e8] sm:$0xf] %v2074
  %v2079 = vld [vmem:[#allocation6 + $0x18] sm:$0xff]
  %v2080 = vld [vmem:[#allocation6 + $0x20] sm:$0xff]
  %2083 = vrot.lane.b32.xlu0 %v2079, 127
  %v2084 = vpop.permute.xlu0 %2083
  %2085 = vrot.lane.b32.xlu0 %v2080, 127
  %v2086 = vpop.permute.xlu0 %2085
  %v2087 = vrot.slane %v2084, 4
  %v2088 = vrot.slane %v2086, 4
  %v2089 = vsel %vm1490, %v2087, %v2088
  %v2090 = vsel %vm2072, %v2084, %v2089
  %v2091 = vsel %vm2072, %v2086, %v2088
  %2094 = vst [vmem:[#allocation5 + $0x1ec] sm:$0xff] %v2090
  %2095 = vst [vmem:[#allocation5 + $0x1f4] sm:$0xf] %v2091
  %v2096 = vld [vmem:[#allocation6 + $0x2c] sm:$0xff]
  %v2097 = vld [vmem:[#allocation6 + $0x34] sm:$0xff]
  %2100 = vrot.lane.b32.xlu0 %v2096, 127
  %v2101 = vpop.permute.xlu0 %2100
  %2102 = vrot.lane.b32.xlu0 %v2097, 127
  %v2103 = vpop.permute.xlu0 %2102
  %v2104 = vrot.slane %v2101, 4
  %v2105 = vrot.slane %v2103, 4
  %v2106 = vsel %vm1490, %v2104, %v2105
  %v2107 = vsel %vm2072, %v2101, %v2106
  %v2108 = vsel %vm2072, %v2103, %v2105
  %2111 = vst [vmem:[#allocation5 + $0x1f8] sm:$0xff] %v2107
  %2112 = vst [vmem:[#allocation5 + $0x200] sm:$0xf] %v2108
  %v2113 = vld [vmem:[#allocation6 + $0x40] sm:$0xff]
  %v2114 = vld [vmem:[#allocation6 + $0x48] sm:$0xff]
  %2117 = vrot.lane.b32.xlu0 %v2113, 127
  %v2118 = vpop.permute.xlu0 %2117
  %2119 = vrot.lane.b32.xlu0 %v2114, 127
  %v2120 = vpop.permute.xlu0 %2119
  %v2121 = vrot.slane %v2118, 4
  %v2122 = vrot.slane %v2120, 4
  %v2123 = vsel %vm1490, %v2121, %v2122
  %v2124 = vsel %vm2072, %v2118, %v2123
  %v2125 = vsel %vm2072, %v2120, %v2122
  %2128 = vst [vmem:[#allocation5 + $0x204] sm:$0xff] %v2124
  %2129 = vst [vmem:[#allocation5 + $0x20c] sm:$0xf] %v2125
  %v2130 = vld [vmem:[#allocation6 + $0x54] sm:$0xff]
  %v2131 = vld [vmem:[#allocation6 + $0x5c] sm:$0xff]
  %2134 = vrot.lane.b32.xlu0 %v2130, 127
  %v2135 = vpop.permute.xlu0 %2134
  %2136 = vrot.lane.b32.xlu0 %v2131, 127
  %v2137 = vpop.permute.xlu0 %2136
  %v2138 = vrot.slane %v2135, 4
  %v2139 = vrot.slane %v2137, 4
  %v2140 = vsel %vm1490, %v2138, %v2139
  %v2141 = vsel %vm2072, %v2135, %v2140
  %v2142 = vsel %vm2072, %v2137, %v2139
  %2145 = vst [vmem:[#allocation5 + $0x210] sm:$0xff] %v2141
  %2146 = vst [vmem:[#allocation5 + $0x218] sm:$0xf] %v2142
  %v2147 = vld [vmem:[#allocation6 + $0x68] sm:$0xff]
  %v2148 = vld [vmem:[#allocation6 + $0x70] sm:$0xff]
  %2151 = vrot.lane.b32.xlu0 %v2147, 127
  %v2152 = vpop.permute.xlu0 %2151
  %2153 = vrot.lane.b32.xlu0 %v2148, 127
  %v2154 = vpop.permute.xlu0 %2153
  %v2155 = vrot.slane %v2152, 4
  %v2156 = vrot.slane %v2154, 4
  %v2157 = vsel %vm1490, %v2155, %v2156
  %v2158 = vsel %vm2072, %v2152, %v2157
  %v2159 = vsel %vm2072, %v2154, %v2156
  %2162 = vst [vmem:[#allocation5 + $0x21c] sm:$0xff] %v2158
  %2163 = vst [vmem:[#allocation5 + $0x224] sm:$0xf] %v2159
  %v2164 = vld [vmem:[#allocation6 + $0x7c] sm:$0xff]
  %v2165 = vld [vmem:[#allocation6 + $0x84] sm:$0xff]
  %2168 = vrot.lane.b32.xlu0 %v2164, 127
  %v2169 = vpop.permute.xlu0 %2168
  %2170 = vrot.lane.b32.xlu0 %v2165, 127
  %v2171 = vpop.permute.xlu0 %2170
  %v2172 = vrot.slane %v2169, 4
  %v2173 = vrot.slane %v2171, 4
  %v2174 = vsel %vm1490, %v2172, %v2173
  %v2175 = vsel %vm2072, %v2169, %v2174
  %v2176 = vsel %vm2072, %v2171, %v2173
  %2179 = vst [vmem:[#allocation5 + $0x228] sm:$0xff] %v2175
  %2180 = vst [vmem:[#allocation5 + $0x230] sm:$0xf] %v2176
  %v2181 = vld [vmem:[#allocation6 + $0x90] sm:$0xff]
  %v2182 = vld [vmem:[#allocation6 + $0x98] sm:$0xff]
  %2185 = vrot.lane.b32.xlu0 %v2181, 127
  %v2186 = vpop.permute.xlu0 %2185
  %2187 = vrot.lane.b32.xlu0 %v2182, 127
  %v2188 = vpop.permute.xlu0 %2187
  %v2189 = vrot.slane %v2186, 4
  %v2190 = vrot.slane %v2188, 4
  %v2191 = vsel %vm1490, %v2189, %v2190
  %v2192 = vsel %vm2072, %v2186, %v2191
  %v2193 = vsel %vm2072, %v2188, %v2190
  %2196 = vst [vmem:[#allocation5 + $0x234] sm:$0xff] %v2192
  %2197 = vst [vmem:[#allocation5 + $0x23c] sm:$0xf] %v2193
  %v2198 = vld [vmem:[#allocation6 + $0x4] sm:$0xff]
  %v2199 = vld [vmem:[#allocation6 + $0xc] sm:$0xff]
  %2202 = vrot.lane.b32.xlu0 %v2198, 105
  %v2203 = vpop.permute.xlu0 %2202
  %2204 = vrot.lane.b32.xlu0 %v2199, 105
  %v2205 = vpop.permute.xlu0 %2204
  %v2206 = vrot.slane %v2203, 4
  %v2207 = vrot.slane %v2205, 4
  %v2208 = vsel %vm1490, %v2206, %v2207
  %vm2209 = vcmask 859136
  %v2210 = vsel %vm2209, %v2203, %v2208
  %v2211 = vsel %vm2209, %v2205, %v2207
  %2214 = vst [vmem:[#allocation5 + $0x240] sm:$0xff] %v2210
  %2215 = vst [vmem:[#allocation5 + $0x248] sm:$0xf] %v2211
  %v2216 = vld [vmem:[#allocation6 + $0x18] sm:$0xff]
  %v2217 = vld [vmem:[#allocation6 + $0x20] sm:$0xff]
  %2220 = vrot.lane.b32.xlu0 %v2216, 105
  %v2221 = vpop.permute.xlu0 %2220
  %2222 = vrot.lane.b32.xlu0 %v2217, 105
  %v2223 = vpop.permute.xlu0 %2222
  %v2224 = vrot.slane %v2221, 4
  %v2225 = vrot.slane %v2223, 4
  %v2226 = vsel %vm1490, %v2224, %v2225
  %v2227 = vsel %vm2209, %v2221, %v2226
  %v2228 = vsel %vm2209, %v2223, %v2225
  %2231 = vst [vmem:[#allocation5 + $0x24c] sm:$0xff] %v2227
  %2232 = vst [vmem:[#allocation5 + $0x254] sm:$0xf] %v2228
  %v2233 = vld [vmem:[#allocation6 + $0x2c] sm:$0xff]
  %v2234 = vld [vmem:[#allocation6 + $0x34] sm:$0xff]
  %2237 = vrot.lane.b32.xlu0 %v2233, 105
  %v2238 = vpop.permute.xlu0 %2237
  %2239 = vrot.lane.b32.xlu0 %v2234, 105
  %v2240 = vpop.permute.xlu0 %2239
  %v2241 = vrot.slane %v2238, 4
  %v2242 = vrot.slane %v2240, 4
  %v2243 = vsel %vm1490, %v2241, %v2242
  %v2244 = vsel %vm2209, %v2238, %v2243
  %v2245 = vsel %vm2209, %v2240, %v2242
  %2248 = vst [vmem:[#allocation5 + $0x258] sm:$0xff] %v2244
  %2249 = vst [vmem:[#allocation5 + $0x260] sm:$0xf] %v2245
  %v2250 = vld [vmem:[#allocation6 + $0x40] sm:$0xff]
  %v2251 = vld [vmem:[#allocation6 + $0x48] sm:$0xff]
  %2254 = vrot.lane.b32.xlu0 %v2250, 105
  %v2255 = vpop.permute.xlu0 %2254
  %2256 = vrot.lane.b32.xlu0 %v2251, 105
  %v2257 = vpop.permute.xlu0 %2256
  %v2258 = vrot.slane %v2255, 4
  %v2259 = vrot.slane %v2257, 4
  %v2260 = vsel %vm1490, %v2258, %v2259
  %v2261 = vsel %vm2209, %v2255, %v2260
  %v2262 = vsel %vm2209, %v2257, %v2259
  %2265 = vst [vmem:[#allocation5 + $0x264] sm:$0xff] %v2261
  %2266 = vst [vmem:[#allocation5 + $0x26c] sm:$0xf] %v2262
  %v2267 = vld [vmem:[#allocation6 + $0x54] sm:$0xff]
  %v2268 = vld [vmem:[#allocation6 + $0x5c] sm:$0xff]
  %2271 = vrot.lane.b32.xlu0 %v2267, 105
  %v2272 = vpop.permute.xlu0 %2271
  %2273 = vrot.lane.b32.xlu0 %v2268, 105
  %v2274 = vpop.permute.xlu0 %2273
  %v2275 = vrot.slane %v2272, 4
  %v2276 = vrot.slane %v2274, 4
  %v2277 = vsel %vm1490, %v2275, %v2276
  %v2278 = vsel %vm2209, %v2272, %v2277
  %v2279 = vsel %vm2209, %v2274, %v2276
  %2282 = vst [vmem:[#allocation5 + $0x270] sm:$0xff] %v2278
  %2283 = vst [vmem:[#allocation5 + $0x278] sm:$0xf] %v2279
  %v2284 = vld [vmem:[#allocation6 + $0x68] sm:$0xff]
  %v2285 = vld [vmem:[#allocation6 + $0x70] sm:$0xff]
  %2288 = vrot.lane.b32.xlu0 %v2284, 105
  %v2289 = vpop.permute.xlu0 %2288
  %2290 = vrot.lane.b32.xlu0 %v2285, 105
  %v2291 = vpop.permute.xlu0 %2290
  %v2292 = vrot.slane %v2289, 4
  %v2293 = vrot.slane %v2291, 4
  %v2294 = vsel %vm1490, %v2292, %v2293
  %v2295 = vsel %vm2209, %v2289, %v2294
  %v2296 = vsel %vm2209, %v2291, %v2293
  %2299 = vst [vmem:[#allocation5 + $0x27c] sm:$0xff] %v2295
  %2300 = vst [vmem:[#allocation5 + $0x284] sm:$0xf] %v2296
  %v2301 = vld [vmem:[#allocation6 + $0x7c] sm:$0xff]
  %v2302 = vld [vmem:[#allocation6 + $0x84] sm:$0xff]
  %2305 = vrot.lane.b32.xlu0 %v2301, 105
  %v2306 = vpop.permute.xlu0 %2305
  %2307 = vrot.lane.b32.xlu0 %v2302, 105
  %v2308 = vpop.permute.xlu0 %2307
  %v2309 = vrot.slane %v2306, 4
  %v2310 = vrot.slane %v2308, 4
  %v2311 = vsel %vm1490, %v2309, %v2310
  %v2312 = vsel %vm2209, %v2306, %v2311
  %v2313 = vsel %vm2209, %v2308, %v2310
  %2316 = vst [vmem:[#allocation5 + $0x288] sm:$0xff] %v2312
  %2317 = vst [vmem:[#allocation5 + $0x290] sm:$0xf] %v2313
  %v2318 = vld [vmem:[#allocation6 + $0x90] sm:$0xff]
  %v2319 = vld [vmem:[#allocation6 + $0x98] sm:$0xff]
  %2322 = vrot.lane.b32.xlu0 %v2318, 105
  %v2323 = vpop.permute.xlu0 %2322
  %2324 = vrot.lane.b32.xlu0 %v2319, 105
  %v2325 = vpop.permute.xlu0 %2324
  %v2326 = vrot.slane %v2323, 4
  %v2327 = vrot.slane %v2325, 4
  %v2328 = vsel %vm1490, %v2326, %v2327
  %v2329 = vsel %vm2209, %v2323, %v2328
  %v2330 = vsel %vm2209, %v2325, %v2327
  %2333 = vst [vmem:[#allocation5 + $0x294] sm:$0xff] %v2329
  %2334 = vst [vmem:[#allocation5 + $0x29c] sm:$0xf] %v2330
  %v2335 = vld [vmem:[#allocation6 + $0x4] sm:$0xff]
  %v2336 = vld [vmem:[#allocation6 + $0xc] sm:$0xff]
  %2339 = vrot.lane.b32.xlu0 %v2335, 104
  %v2340 = vpop.permute.xlu0 %2339
  %2341 = vrot.lane.b32.xlu0 %v2336, 104
  %v2342 = vpop.permute.xlu0 %2341
  %v2343 = vrot.slane %v2340, 4
  %v2344 = vrot.slane %v2342, 4
  %v2345 = vsel %vm1490, %v2343, %v2344
  %vm2346 = vcmask 850944
  %v2347 = vsel %vm2346, %v2340, %v2345
  %v2348 = vsel %vm2346, %v2342, %v2344
  %2351 = vst [vmem:[#allocation5 + $0x2a0] sm:$0xff] %v2347
  %2352 = vst [vmem:[#allocation5 + $0x2a8] sm:$0xf] %v2348
  %v2353 = vld [vmem:[#allocation6 + $0x18] sm:$0xff]
  %v2354 = vld [vmem:[#allocation6 + $0x20] sm:$0xff]
  %2357 = vrot.lane.b32.xlu0 %v2353, 104
  %v2358 = vpop.permute.xlu0 %2357
  %2359 = vrot.lane.b32.xlu0 %v2354, 104
  %v2360 = vpop.permute.xlu0 %2359
  %v2361 = vrot.slane %v2358, 4
  %v2362 = vrot.slane %v2360, 4
  %v2363 = vsel %vm1490, %v2361, %v2362
  %v2364 = vsel %vm2346, %v2358, %v2363
  %v2365 = vsel %vm2346, %v2360, %v2362
  %2368 = vst [vmem:[#allocation5 + $0x2ac] sm:$0xff] %v2364
  %2369 = vst [vmem:[#allocation5 + $0x2b4] sm:$0xf] %v2365
  %v2370 = vld [vmem:[#allocation6 + $0x2c] sm:$0xff]
  %v2371 = vld [vmem:[#allocation6 + $0x34] sm:$0xff]
  %2374 = vrot.lane.b32.xlu0 %v2370, 104
  %v2375 = vpop.permute.xlu0 %2374
  %2376 = vrot.lane.b32.xlu0 %v2371, 104
  %v2377 = vpop.permute.xlu0 %2376
  %v2378 = vrot.slane %v2375, 4
  %v2379 = vrot.slane %v2377, 4
  %v2380 = vsel %vm1490, %v2378, %v2379
  %v2381 = vsel %vm2346, %v2375, %v2380
  %v2382 = vsel %vm2346, %v2377, %v2379
  %2385 = vst [vmem:[#allocation5 + $0x2b8] sm:$0xff] %v2381
  %2386 = vst [vmem:[#allocation5 + $0x2c0] sm:$0xf] %v2382
  %v2387 = vld [vmem:[#allocation6 + $0x40] sm:$0xff]
  %v2388 = vld [vmem:[#allocation6 + $0x48] sm:$0xff]
  %2391 = vrot.lane.b32.xlu0 %v2387, 104
  %v2392 = vpop.permute.xlu0 %2391
  %2393 = vrot.lane.b32.xlu0 %v2388, 104
  %v2394 = vpop.permute.xlu0 %2393
  %v2395 = vrot.slane %v2392, 4
  %v2396 = vrot.slane %v2394, 4
  %v2397 = vsel %vm1490, %v2395, %v2396
  %v2398 = vsel %vm2346, %v2392, %v2397
  %v2399 = vsel %vm2346, %v2394, %v2396
  %2402 = vst [vmem:[#allocation5 + $0x2c4] sm:$0xff] %v2398
  %2403 = vst [vmem:[#allocation5 + $0x2cc] sm:$0xf] %v2399
  %v2404 = vld [vmem:[#allocation6 + $0x54] sm:$0xff]
  %v2405 = vld [vmem:[#allocation6 + $0x5c] sm:$0xff]
  %2408 = vrot.lane.b32.xlu0 %v2404, 104
  %v2409 = vpop.permute.xlu0 %2408
  %2410 = vrot.lane.b32.xlu0 %v2405, 104
  %v2411 = vpop.permute.xlu0 %2410
  %v2412 = vrot.slane %v2409, 4
  %v2413 = vrot.slane %v2411, 4
  %v2414 = vsel %vm1490, %v2412, %v2413
  %v2415 = vsel %vm2346, %v2409, %v2414
  %v2416 = vsel %vm2346, %v2411, %v2413
  %2419 = vst [vmem:[#allocation5 + $0x2d0] sm:$0xff] %v2415
  %2420 = vst [vmem:[#allocation5 + $0x2d8] sm:$0xf] %v2416
  %v2421 = vld [vmem:[#allocation6 + $0x68] sm:$0xff]
  %v2422 = vld [vmem:[#allocation6 + $0x70] sm:$0xff]
  %2425 = vrot.lane.b32.xlu0 %v2421, 104
  %v2426 = vpop.permute.xlu0 %2425
  %2427 = vrot.lane.b32.xlu0 %v2422, 104
  %v2428 = vpop.permute.xlu0 %2427
  %v2429 = vrot.slane %v2426, 4
  %v2430 = vrot.slane %v2428, 4
  %v2431 = vsel %vm1490, %v2429, %v2430
  %v2432 = vsel %vm2346, %v2426, %v2431
  %v2433 = vsel %vm2346, %v2428, %v2430
  %2436 = vst [vmem:[#allocation5 + $0x2dc] sm:$0xff] %v2432
  %2437 = vst [vmem:[#allocation5 + $0x2e4] sm:$0xf] %v2433
  %v2438 = vld [vmem:[#allocation6 + $0x7c] sm:$0xff]
  %v2439 = vld [vmem:[#allocation6 + $0x84] sm:$0xff]
  %2442 = vrot.lane.b32.xlu0 %v2438, 104
  %v2443 = vpop.permute.xlu0 %2442
  %2444 = vrot.lane.b32.xlu0 %v2439, 104
  %v2445 = vpop.permute.xlu0 %2444
  %v2446 = vrot.slane %v2443, 4
  %v2447 = vrot.slane %v2445, 4
  %v2448 = vsel %vm1490, %v2446, %v2447
  %v2449 = vsel %vm2346, %v2443, %v2448
  %v2450 = vsel %vm2346, %v2445, %v2447
  %2453 = vst [vmem:[#allocation5 + $0x2e8] sm:$0xff] %v2449
  %2454 = vst [vmem:[#allocation5 + $0x2f0] sm:$0xf] %v2450
  %v2455 = vld [vmem:[#allocation6 + $0x90] sm:$0xff]
  %v2456 = vld [vmem:[#allocation6 + $0x98] sm:$0xff]
  %2459 = vrot.lane.b32.xlu0 %v2455, 104
  %v2460 = vpop.permute.xlu0 %2459
  %2461 = vrot.lane.b32.xlu0 %v2456, 104
  %v2462 = vpop.permute.xlu0 %2461
  %v2463 = vrot.slane %v2460, 4
  %v2464 = vrot.slane %v2462, 4
  %v2465 = vsel %vm1490, %v2463, %v2464
  %v2466 = vsel %vm2346, %v2460, %v2465
  %v2467 = vsel %vm2346, %v2462, %v2464
  %2470 = vst [vmem:[#allocation5 + $0x2f4] sm:$0xff] %v2466
  %2471 = vst [vmem:[#allocation5 + $0x2fc] sm:$0xf] %v2467
  %v2472 = vld [vmem:[#allocation6 + $0x4] sm:$0xff]
  %v2473 = vld [vmem:[#allocation6 + $0xc] sm:$0xff]
  %2476 = vrot.lane.b32.xlu0 %v2472, 103
  %v2477 = vpop.permute.xlu0 %2476
  %2478 = vrot.lane.b32.xlu0 %v2473, 103
  %v2479 = vpop.permute.xlu0 %2478
  %v2480 = vrot.slane %v2477, 4
  %v2481 = vrot.slane %v2479, 4
  %v2482 = vsel %vm1490, %v2480, %v2481
  %vm2483 = vcmask 842752
  %v2484 = vsel %vm2483, %v2477, %v2482
  %v2485 = vsel %vm2483, %v2479, %v2481
  %2488 = vst [vmem:[#allocation5 + $0x300] sm:$0xff] %v2484
  %2489 = vst [vmem:[#allocation5 + $0x308] sm:$0xf] %v2485
  %v2490 = vld [vmem:[#allocation6 + $0x18] sm:$0xff]
  %v2491 = vld [vmem:[#allocation6 + $0x20] sm:$0xff]
  %2494 = vrot.lane.b32.xlu0 %v2490, 103
  %v2495 = vpop.permute.xlu0 %2494
  %2496 = vrot.lane.b32.xlu0 %v2491, 103
  %v2497 = vpop.permute.xlu0 %2496
  %v2498 = vrot.slane %v2495, 4
  %v2499 = vrot.slane %v2497, 4
  %v2500 = vsel %vm1490, %v2498, %v2499
  %v2501 = vsel %vm2483, %v2495, %v2500
  %v2502 = vsel %vm2483, %v2497, %v2499
  %2505 = vst [vmem:[#allocation5 + $0x30c] sm:$0xff] %v2501
  %2506 = vst [vmem:[#allocation5 + $0x314] sm:$0xf] %v2502
  %v2507 = vld [vmem:[#allocation6 + $0x2c] sm:$0xff]
  %v2508 = vld [vmem:[#allocation6 + $0x34] sm:$0xff]
  %2511 = vrot.lane.b32.xlu0 %v2507, 103
  %v2512 = vpop.permute.xlu0 %2511
  %2513 = vrot.lane.b32.xlu0 %v2508, 103
  %v2514 = vpop.permute.xlu0 %2513
  %v2515 = vrot.slane %v2512, 4
  %v2516 = vrot.slane %v2514, 4
  %v2517 = vsel %vm1490, %v2515, %v2516
  %v2518 = vsel %vm2483, %v2512, %v2517
  %v2519 = vsel %vm2483, %v2514, %v2516
  %2522 = vst [vmem:[#allocation5 + $0x318] sm:$0xff] %v2518
  %2523 = vst [vmem:[#allocation5 + $0x320] sm:$0xf] %v2519
  %v2524 = vld [vmem:[#allocation6 + $0x40] sm:$0xff]
  %v2525 = vld [vmem:[#allocation6 + $0x48] sm:$0xff]
  %2528 = vrot.lane.b32.xlu0 %v2524, 103
  %v2529 = vpop.permute.xlu0 %2528
  %2530 = vrot.lane.b32.xlu0 %v2525, 103
  %v2531 = vpop.permute.xlu0 %2530
  %v2532 = vrot.slane %v2529, 4
  %v2533 = vrot.slane %v2531, 4
  %v2534 = vsel %vm1490, %v2532, %v2533
  %v2535 = vsel %vm2483, %v2529, %v2534
  %v2536 = vsel %vm2483, %v2531, %v2533
  %2539 = vst [vmem:[#allocation5 + $0x324] sm:$0xff] %v2535
  %2540 = vst [vmem:[#allocation5 + $0x32c] sm:$0xf] %v2536
  %v2541 = vld [vmem:[#allocation6 + $0x54] sm:$0xff]
  %v2542 = vld [vmem:[#allocation6 + $0x5c] sm:$0xff]
  %2545 = vrot.lane.b32.xlu0 %v2541, 103
  %v2546 = vpop.permute.xlu0 %2545
  %2547 = vrot.lane.b32.xlu0 %v2542, 103
  %v2548 = vpop.permute.xlu0 %2547
  %v2549 = vrot.slane %v2546, 4
  %v2550 = vrot.slane %v2548, 4
  %v2551 = vsel %vm1490, %v2549, %v2550
  %v2552 = vsel %vm2483, %v2546, %v2551
  %v2553 = vsel %vm2483, %v2548, %v2550
  %2556 = vst [vmem:[#allocation5 + $0x330] sm:$0xff] %v2552
  %2557 = vst [vmem:[#allocation5 + $0x338] sm:$0xf] %v2553
  %v2558 = vld [vmem:[#allocation6 + $0x68] sm:$0xff]
  %v2559 = vld [vmem:[#allocation6 + $0x70] sm:$0xff]
  %2562 = vrot.lane.b32.xlu0 %v2558, 103
  %v2563 = vpop.permute.xlu0 %2562
  %2564 = vrot.lane.b32.xlu0 %v2559, 103
  %v2565 = vpop.permute.xlu0 %2564
  %v2566 = vrot.slane %v2563, 4
  %v2567 = vrot.slane %v2565, 4
  %v2568 = vsel %vm1490, %v2566, %v2567
  %v2569 = vsel %vm2483, %v2563, %v2568
  %v2570 = vsel %vm2483, %v2565, %v2567
  %2573 = vst [vmem:[#allocation5 + $0x33c] sm:$0xff] %v2569
  %2574 = vst [vmem:[#allocation5 + $0x344] sm:$0xf] %v2570
  %v2575 = vld [vmem:[#allocation6 + $0x7c] sm:$0xff]
  %v2576 = vld [vmem:[#allocation6 + $0x84] sm:$0xff]
  %2579 = vrot.lane.b32.xlu0 %v2575, 103
  %v2580 = vpop.permute.xlu0 %2579
  %2581 = vrot.lane.b32.xlu0 %v2576, 103
  %v2582 = vpop.permute.xlu0 %2581
  %v2583 = vrot.slane %v2580, 4
  %v2584 = vrot.slane %v2582, 4
  %v2585 = vsel %vm1490, %v2583, %v2584
  %v2586 = vsel %vm2483, %v2580, %v2585
  %v2587 = vsel %vm2483, %v2582, %v2584
  %2590 = vst [vmem:[#allocation5 + $0x348] sm:$0xff] %v2586
  %2591 = vst [vmem:[#allocation5 + $0x350] sm:$0xf] %v2587
  %v2592 = vld [vmem:[#allocation6 + $0x90] sm:$0xff]
  %v2593 = vld [vmem:[#allocation6 + $0x98] sm:$0xff]
  %2596 = vrot.lane.b32.xlu0 %v2592, 103
  %v2597 = vpop.permute.xlu0 %2596
  %2598 = vrot.lane.b32.xlu0 %v2593, 103
  %v2599 = vpop.permute.xlu0 %2598
  %v2600 = vrot.slane %v2597, 4
  %v2601 = vrot.slane %v2599, 4
  %v2602 = vsel %vm1490, %v2600, %v2601
  %v2603 = vsel %vm2483, %v2597, %v2602
  %v2604 = vsel %vm2483, %v2599, %v2601
  %2607 = vst [vmem:[#allocation5 + $0x354] sm:$0xff] %v2603
  %2608 = vst [vmem:[#allocation5 + $0x35c] sm:$0xf] %v2604
  %v2609 = vld [vmem:[%s3] sm:$0xf]
  %v2610 = vld [vmem:[#allocation5] sm:$0xff]
  %v2611 = vld [vmem:[#allocation5 + $0x8] sm:$0xff]
  %v2612 = vld [vmem:[#allocation5 + $0x10] sm:$0xff]
  %v2613 = vld [vmem:[#allocation5 + $0x18] sm:$0xff]
  %v2614 = vld [vmem:[#allocation5 + $0x20] sm:$0xff]
  %v2615 = vld [vmem:[#allocation5 + $0x28] sm:$0xff]
  %v2616 = vld [vmem:[#allocation5 + $0x30] sm:$0xff]
  %v2617 = vld [vmem:[#allocation5 + $0x38] sm:$0xff]
  %v2618 = vld [vmem:[#allocation5 + $0x40] sm:$0xff]
  %v2619 = vld [vmem:[#allocation5 + $0x48] sm:$0xff]
  %v2620 = vld [vmem:[#allocation5 + $0x50] sm:$0xff]
  %v2621 = vld [vmem:[#allocation5 + $0x58] sm:$0xff]
  %v2622 = vld [vmem:[#allocation5 + $0x60] sm:$0xff]
  %v2623 = vld [vmem:[#allocation5 + $0x68] sm:$0xff]
  %v2624 = vld [vmem:[#allocation5 + $0x70] sm:$0xff]
  %v2625 = vld [vmem:[#allocation5 + $0x78] sm:$0xff]
  %v2626 = vld [vmem:[#allocation5 + $0x80] sm:$0xff]
  %v2627 = vld [vmem:[#allocation5 + $0x88] sm:$0xff]
  %v2628 = vld [vmem:[#allocation5 + $0x90] sm:$0xff]
  %v2629 = vld [vmem:[#allocation5 + $0x98] sm:$0xff]
  %v2630 = vld [vmem:[#allocation5 + $0xa0] sm:$0xff]
  %v2631 = vld [vmem:[#allocation5 + $0xa8] sm:$0xff]
  %v2632 = vld [vmem:[#allocation5 + $0xb0] sm:$0xff]
  %v2633 = vld [vmem:[#allocation5 + $0xb8] sm:$0xff]
  %v2634 = vld [vmem:[#allocation5 + $0xc0] sm:$0xff]
  %v2635 = vld [vmem:[#allocation5 + $0xc8] sm:$0xff]
  %v2636 = vld [vmem:[#allocation5 + $0xd0] sm:$0xff]
  %v2637 = vld [vmem:[#allocation5 + $0xd8] sm:$0xff]
  %v2638 = vld [vmem:[#allocation5 + $0xe0] sm:$0xff]
  %v2639 = vld [vmem:[#allocation5 + $0xe8] sm:$0xff]
  %v2640 = vld [vmem:[#allocation5 + $0xf0] sm:$0xff]
  %v2641 = vld [vmem:[#allocation5 + $0xf8] sm:$0xff]
  %v2642 = vld [vmem:[#allocation5 + $0x100] sm:$0xff]
  %v2643 = vld [vmem:[#allocation5 + $0x108] sm:$0xff]
  %v2644 = vld [vmem:[#allocation5 + $0x110] sm:$0xff]
  %v2645 = vld [vmem:[#allocation5 + $0x118] sm:$0xff]
  %v2646 = vld [vmem:[#allocation5 + $0x120] sm:$0xff]
  %v2647 = vld [vmem:[#allocation5 + $0x128] sm:$0xff]
  %v2648 = vld [vmem:[#allocation5 + $0x130] sm:$0xff]
  %v2649 = vld [vmem:[#allocation5 + $0x138] sm:$0xff]
  %v2650 = vld [vmem:[#allocation5 + $0x140] sm:$0xff]
  %v2651 = vld [vmem:[#allocation5 + $0x148] sm:$0xff]
  %v2652 = vld [vmem:[#allocation5 + $0x150] sm:$0xff]
  %v2653 = vld [vmem:[#allocation5 + $0x158] sm:$0xff]
  %v2654 = vld [vmem:[#allocation5 + $0x160] sm:$0xff]
  %v2655 = vld [vmem:[#allocation5 + $0x168] sm:$0xff]
  %v2656 = vld [vmem:[#allocation5 + $0x170] sm:$0xff]
  %v2657 = vld [vmem:[#allocation5 + $0x178] sm:$0xff]
  %v2658 = vld [vmem:[#allocation5 + $0x180] sm:$0xff]
  %v2659 = vld [vmem:[#allocation5 + $0x188] sm:$0xff]
  %v2660 = vld [vmem:[#allocation5 + $0x190] sm:$0xff]
  %v2661 = vld [vmem:[#allocation5 + $0x198] sm:$0xff]
  %v2662 = vld [vmem:[#allocation5 + $0x1a0] sm:$0xff]
  %v2663 = vld [vmem:[#allocation5 + $0x1a8] sm:$0xff]
  %v2664 = vld [vmem:[#allocation5 + $0x1b0] sm:$0xff]
  %v2665 = vld [vmem:[#allocation5 + $0x1b8] sm:$0xff]
  %v2666 = vld [vmem:[#allocation5 + $0x1c0] sm:$0xff]
  %v2667 = vld [vmem:[#allocation5 + $0x1c8] sm:$0xff]
  %v2668 = vld [vmem:[#allocation5 + $0x1d0] sm:$0xff]
  %v2669 = vld [vmem:[#allocation5 + $0x1d8] sm:$0xff]
  %v2670 = vld [vmem:[#allocation5 + $0x1e0] sm:$0xff]
  %v2671 = vld [vmem:[#allocation5 + $0x1e8] sm:$0xff]
  %v2672 = vld [vmem:[#allocation5 + $0x1f0] sm:$0xff]
  %v2673 = vld [vmem:[#allocation5 + $0x1f8] sm:$0xff]
  %v2674 = vld [vmem:[#allocation5 + $0x200] sm:$0xff]
  %v2675 = vld [vmem:[#allocation5 + $0x208] sm:$0xff]
  %v2676 = vld [vmem:[#allocation5 + $0x210] sm:$0xff]
  %v2677 = vld [vmem:[#allocation5 + $0x218] sm:$0xff]
  %v2678 = vld [vmem:[#allocation5 + $0x220] sm:$0xff]
  %v2679 = vld [vmem:[#allocation5 + $0x228] sm:$0xff]
  %v2680 = vld [vmem:[#allocation5 + $0x230] sm:$0xff]
  %v2681 = vld [vmem:[#allocation5 + $0x238] sm:$0xff]
  %v2682 = vld [vmem:[#allocation5 + $0x240] sm:$0xff]
  %v2683 = vld [vmem:[#allocation5 + $0x248] sm:$0xff]
  %v2684 = vld [vmem:[#allocation5 + $0x250] sm:$0xff]
  %v2685 = vld [vmem:[#allocation5 + $0x258] sm:$0xff]
  %v2686 = vld [vmem:[#allocation5 + $0x260] sm:$0xff]
  %v2687 = vld [vmem:[#allocation5 + $0x268] sm:$0xff]
  %v2688 = vld [vmem:[#allocation5 + $0x270] sm:$0xff]
  %v2689 = vld [vmem:[#allocation5 + $0x278] sm:$0xff]
  %v2690 = vld [vmem:[#allocation5 + $0x280] sm:$0xff]
  %v2691 = vld [vmem:[#allocation5 + $0x288] sm:$0xff]
  %v2692 = vld [vmem:[#allocation5 + $0x290] sm:$0xff]
  %v2693 = vld [vmem:[#allocation5 + $0x298] sm:$0xff]
  %v2694 = vld [vmem:[#allocation5 + $0x2a0] sm:$0xff]
  %v2695 = vld [vmem:[#allocation5 + $0x2a8] sm:$0xff]
  %v2696 = vld [vmem:[#allocation5 + $0x2b0] sm:$0xff]
  %v2697 = vld [vmem:[#allocation5 + $0x2b8] sm:$0xff]
  %v2698 = vld [vmem:[#allocation5 + $0x2c0] sm:$0xff]
  %v2699 = vld [vmem:[#allocation5 + $0x2c8] sm:$0xff]
  %v2700 = vld [vmem:[#allocation5 + $0x2d0] sm:$0xff]
  %v2701 = vld [vmem:[#allocation5 + $0x2d8] sm:$0xff]
  %v2702 = vld [vmem:[#allocation5 + $0x2e0] sm:$0xff]
  %v2703 = vld [vmem:[#allocation5 + $0x2e8] sm:$0xff]
  %v2704 = vld [vmem:[#allocation5 + $0x2f0] sm:$0xff]
  %v2705 = vld [vmem:[#allocation5 + $0x2f8] sm:$0xff]
  %v2706 = vld [vmem:[#allocation5 + $0x300] sm:$0xff]
  %v2707 = vld [vmem:[#allocation5 + $0x308] sm:$0xff]
  %v2708 = vld [vmem:[#allocation5 + $0x310] sm:$0xff]
  %v2709 = vld [vmem:[#allocation5 + $0x318] sm:$0xff]
  %v2710 = vld [vmem:[#allocation5 + $0x320] sm:$0xff]
  %v2711 = vld [vmem:[#allocation5 + $0x328] sm:$0xff]
  %v2712 = vld [vmem:[#allocation5 + $0x330] sm:$0xff]
  %v2713 = vld [vmem:[#allocation5 + $0x338] sm:$0xff]
  %v2714 = vld [vmem:[#allocation5 + $0x340] sm:$0xff]
  %v2715 = vld [vmem:[#allocation5 + $0x348] sm:$0xff]
  %v2716 = vld [vmem:[#allocation5 + $0x350] sm:$0xff]
  %v2717 = vld [vmem:[#allocation5 + $0x358] sm:$0xff]
  %v2718 = vld [vmem:[%s4] sm:$0xff]
  %2720 = vset.pattern.permute.xlu0 0
  %2721 = vperm.xlu0 %2720, %v2718
  %v2722 = vpop.permute.xlu0 %2721
  %v2832 = vunpack.c.l.b16 %v2610
  %v2833 = vunpack.c.h.b16 %v2610
  %v2834 = vunpack.c.l.b16 %v2611
  %v2835 = vunpack.c.h.b16 %v2611
  %v2836 = vunpack.c.l.b16 %v2612
  %v2837 = vunpack.c.h.b16 %v2612
  %v2838 = vunpack.c.l.b16 %v2613
  %v2839 = vunpack.c.h.b16 %v2613
  %v2840 = vunpack.c.l.b16 %v2614
  %v2841 = vunpack.c.h.b16 %v2614
  %v2842 = vunpack.c.l.b16 %v2615
  %v2843 = vunpack.c.h.b16 %v2615
  %v2844 = vunpack.c.l.b16 %v2616
  %v2845 = vunpack.c.h.b16 %v2616
  %v2846 = vunpack.c.l.b16 %v2617
  %v2847 = vunpack.c.h.b16 %v2617
  %v2848 = vunpack.c.l.b16 %v2618
  %v2849 = vunpack.c.h.b16 %v2618
  %v2850 = vunpack.c.l.b16 %v2619
  %v2851 = vunpack.c.h.b16 %v2619
  %v2852 = vunpack.c.l.b16 %v2620
  %v2853 = vunpack.c.h.b16 %v2620
  %v2854 = vunpack.c.l.b16 %v2621
  %v2855 = vunpack.c.h.b16 %v2621
  %v2856 = vunpack.c.l.b16 %v2622
  %v2857 = vunpack.c.h.b16 %v2622
  %v2858 = vunpack.c.l.b16 %v2623
  %v2859 = vunpack.c.h.b16 %v2623
  %v2860 = vunpack.c.l.b16 %v2624
  %v2861 = vunpack.c.h.b16 %v2624
  %v2862 = vunpack.c.l.b16 %v2625
  %v2863 = vunpack.c.h.b16 %v2625
  %v2864 = vunpack.c.l.b16 %v2626
  %v2865 = vunpack.c.h.b16 %v2626
  %v2866 = vunpack.c.l.b16 %v2627
  %v2867 = vunpack.c.h.b16 %v2627
  %v2868 = vunpack.c.l.b16 %v2628
  %v2869 = vunpack.c.h.b16 %v2628
  %v2870 = vunpack.c.l.b16 %v2629
  %v2871 = vunpack.c.h.b16 %v2629
  %v2872 = vunpack.c.l.b16 %v2630
  %v2873 = vunpack.c.h.b16 %v2630
  %v2874 = vunpack.c.l.b16 %v2631
  %v2875 = vunpack.c.h.b16 %v2631
  %v2876 = vunpack.c.l.b16 %v2632
  %v2877 = vunpack.c.h.b16 %v2632
  %v2878 = vunpack.c.l.b16 %v2633
  %v2879 = vunpack.c.h.b16 %v2633
  %v2880 = vunpack.c.l.b16 %v2634
  %v2881 = vunpack.c.h.b16 %v2634
  %v2882 = vunpack.c.l.b16 %v2635
  %v2883 = vunpack.c.h.b16 %v2635
  %v2884 = vunpack.c.l.b16 %v2636
  %v2885 = vunpack.c.h.b16 %v2636
  %v2886 = vunpack.c.l.b16 %v2637
  %v2887 = vunpack.c.h.b16 %v2637
  %v2888 = vunpack.c.l.b16 %v2638
  %v2889 = vunpack.c.h.b16 %v2638
  %v2890 = vunpack.c.l.b16 %v2639
  %v2891 = vunpack.c.h.b16 %v2639
  %v2892 = vunpack.c.l.b16 %v2640
  %v2893 = vunpack.c.h.b16 %v2640
  %v2894 = vunpack.c.l.b16 %v2641
  %v2895 = vunpack.c.h.b16 %v2641
  %v2896 = vunpack.c.l.b16 %v2642
  %v2897 = vunpack.c.h.b16 %v2642
  %v2898 = vunpack.c.l.b16 %v2643
  %v2899 = vunpack.c.h.b16 %v2643
  %v2900 = vunpack.c.l.b16 %v2644
  %v2901 = vunpack.c.h.b16 %v2644
  %v2902 = vunpack.c.l.b16 %v2645
  %v2903 = vunpack.c.h.b16 %v2645
  %v2904 = vunpack.c.l.b16 %v2646
  %v2905 = vunpack.c.h.b16 %v2646
  %v2906 = vunpack.c.l.b16 %v2647
  %v2907 = vunpack.c.h.b16 %v2647
  %v2908 = vunpack.c.l.b16 %v2648
  %v2909 = vunpack.c.h.b16 %v2648
  %v2910 = vunpack.c.l.b16 %v2649
  %v2911 = vunpack.c.h.b16 %v2649
  %v2912 = vunpack.c.l.b16 %v2650
  %v2913 = vunpack.c.h.b16 %v2650
  %v2914 = vunpack.c.l.b16 %v2651
  %v2915 = vunpack.c.h.b16 %v2651
  %v2916 = vunpack.c.l.b16 %v2652
  %v2917 = vunpack.c.h.b16 %v2652
  %v2918 = vunpack.c.l.b16 %v2653
  %v2919 = vunpack.c.h.b16 %v2653
  %v2920 = vunpack.c.l.b16 %v2654
  %v2921 = vunpack.c.h.b16 %v2654
  %v2922 = vunpack.c.l.b16 %v2655
  %v2923 = vunpack.c.h.b16 %v2655
  %v2924 = vunpack.c.l.b16 %v2656
  %v2925 = vunpack.c.h.b16 %v2656
  %v2926 = vunpack.c.l.b16 %v2657
  %v2927 = vunpack.c.h.b16 %v2657
  %v2928 = vunpack.c.l.b16 %v2658
  %v2929 = vunpack.c.h.b16 %v2658
  %v2930 = vunpack.c.l.b16 %v2659
  %v2931 = vunpack.c.h.b16 %v2659
  %v2932 = vunpack.c.l.b16 %v2660
  %v2933 = vunpack.c.h.b16 %v2660
  %v2934 = vunpack.c.l.b16 %v2661
  %v2935 = vunpack.c.h.b16 %v2661
  %v2936 = vunpack.c.l.b16 %v2662
  %v2937 = vunpack.c.h.b16 %v2662
  %v2938 = vunpack.c.l.b16 %v2663
  %v2939 = vunpack.c.h.b16 %v2663
  %v2940 = vunpack.c.l.b16 %v2664
  %v2941 = vunpack.c.h.b16 %v2664
  %v2942 = vunpack.c.l.b16 %v2665
  %v2943 = vunpack.c.h.b16 %v2665
  %v2944 = vunpack.c.l.b16 %v2666
  %v2945 = vunpack.c.h.b16 %v2666
  %v2946 = vunpack.c.l.b16 %v2667
  %v2947 = vunpack.c.h.b16 %v2667
  %v2948 = vunpack.c.l.b16 %v2668
  %v2949 = vunpack.c.h.b16 %v2668
  %v2950 = vunpack.c.l.b16 %v2669
  %v2951 = vunpack.c.h.b16 %v2669
  %v2952 = vunpack.c.l.b16 %v2670
  %v2953 = vunpack.c.h.b16 %v2670
  %v2954 = vunpack.c.l.b16 %v2671
  %v2955 = vunpack.c.h.b16 %v2671
  %v2956 = vunpack.c.l.b16 %v2672
  %v2957 = vunpack.c.h.b16 %v2672
  %v2958 = vunpack.c.l.b16 %v2673
  %v2959 = vunpack.c.h.b16 %v2673
  %v2960 = vunpack.c.l.b16 %v2674
  %v2961 = vunpack.c.h.b16 %v2674
  %v2962 = vunpack.c.l.b16 %v2675
  %v2963 = vunpack.c.h.b16 %v2675
  %v2964 = vunpack.c.l.b16 %v2676
  %v2965 = vunpack.c.h.b16 %v2676
  %v2966 = vunpack.c.l.b16 %v2677
  %v2967 = vunpack.c.h.b16 %v2677
  %v2968 = vunpack.c.l.b16 %v2678
  %v2969 = vunpack.c.h.b16 %v2678
  %v2970 = vunpack.c.l.b16 %v2679
  %v2971 = vunpack.c.h.b16 %v2679
  %v2972 = vunpack.c.l.b16 %v2680
  %v2973 = vunpack.c.h.b16 %v2680
  %v2974 = vunpack.c.l.b16 %v2681
  %v2975 = vunpack.c.h.b16 %v2681
  %v2976 = vunpack.c.l.b16 %v2682
  %v2977 = vunpack.c.h.b16 %v2682
  %v2978 = vunpack.c.l.b16 %v2683
  %v2979 = vunpack.c.h.b16 %v2683
  %v2980 = vunpack.c.l.b16 %v2684
  %v2981 = vunpack.c.h.b16 %v2684
  %v2982 = vunpack.c.l.b16 %v2685
  %v2983 = vunpack.c.h.b16 %v2685
  %v2984 = vunpack.c.l.b16 %v2686
  %v2985 = vunpack.c.h.b16 %v2686
  %v2986 = vunpack.c.l.b16 %v2687
  %v2987 = vunpack.c.h.b16 %v2687
  %v2988 = vunpack.c.l.b16 %v2688
  %v2989 = vunpack.c.h.b16 %v2688
  %v2990 = vunpack.c.l.b16 %v2689
  %v2991 = vunpack.c.h.b16 %v2689
  %v2992 = vunpack.c.l.b16 %v2690
  %v2993 = vunpack.c.h.b16 %v2690
  %v2994 = vunpack.c.l.b16 %v2691
  %v2995 = vunpack.c.h.b16 %v2691
  %v2996 = vunpack.c.l.b16 %v2692
  %v2997 = vunpack.c.h.b16 %v2692
  %v2998 = vunpack.c.l.b16 %v2693
  %v2999 = vunpack.c.h.b16 %v2693
  %v3000 = vunpack.c.l.b16 %v2694
  %v3001 = vunpack.c.h.b16 %v2694
  %v3002 = vunpack.c.l.b16 %v2695
  %v3003 = vunpack.c.h.b16 %v2695
  %v3004 = vunpack.c.l.b16 %v2696
  %v3005 = vunpack.c.h.b16 %v2696
  %v3006 = vunpack.c.l.b16 %v2697
  %v3007 = vunpack.c.h.b16 %v2697
  %v3008 = vunpack.c.l.b16 %v2698
  %v3009 = vunpack.c.h.b16 %v2698
  %v3010 = vunpack.c.l.b16 %v2699
  %v3011 = vunpack.c.h.b16 %v2699
  %v3012 = vunpack.c.l.b16 %v2700
  %v3013 = vunpack.c.h.b16 %v2700
  %v3014 = vunpack.c.l.b16 %v2701
  %v3015 = vunpack.c.h.b16 %v2701
  %v3016 = vunpack.c.l.b16 %v2702
  %v3017 = vunpack.c.h.b16 %v2702
  %v3018 = vunpack.c.l.b16 %v2703
  %v3019 = vunpack.c.h.b16 %v2703
  %v3020 = vunpack.c.l.b16 %v2704
  %v3021 = vunpack.c.h.b16 %v2704
  %v3022 = vunpack.c.l.b16 %v2705
  %v3023 = vunpack.c.h.b16 %v2705
  %v3024 = vunpack.c.l.b16 %v2706
  %v3025 = vunpack.c.h.b16 %v2706
  %v3026 = vunpack.c.l.b16 %v2707
  %v3027 = vunpack.c.h.b16 %v2707
  %v3028 = vunpack.c.l.b16 %v2708
  %v3029 = vunpack.c.h.b16 %v2708
  %v3030 = vunpack.c.l.b16 %v2709
  %v3031 = vunpack.c.h.b16 %v2709
  %v3032 = vunpack.c.l.b16 %v2710
  %v3033 = vunpack.c.h.b16 %v2710
  %v3034 = vunpack.c.l.b16 %v2711
  %v3035 = vunpack.c.h.b16 %v2711
  %v3036 = vunpack.c.l.b16 %v2712
  %v3037 = vunpack.c.h.b16 %v2712
  %v3038 = vunpack.c.l.b16 %v2713
  %v3039 = vunpack.c.h.b16 %v2713
  %v3040 = vunpack.c.l.b16 %v2714
  %v3041 = vunpack.c.h.b16 %v2714
  %v3042 = vunpack.c.l.b16 %v2715
  %v3043 = vunpack.c.h.b16 %v2715
  %v3044 = vunpack.c.l.b16 %v2716
  %v3045 = vunpack.c.h.b16 %v2716
  %v3046 = vunpack.c.l.b16 %v2717
  %v3047 = vunpack.c.h.b16 %v2717
  %v3048 = vpack.c.b16 %v2856, %v2832
  %v3049 = vpack.c.b16 %v2857, %v2833
  %v3050 = vpack.c.b16 %v2858, %v2834
  %v3051 = vpack.c.b16 %v2859, %v2835
  %v3052 = vpack.c.b16 %v2860, %v2836
  %v3053 = vpack.c.b16 %v2861, %v2837
  %v3054 = vpack.c.b16 %v2862, %v2838
  %v3055 = vpack.c.b16 %v2863, %v2839
  %v3056 = vpack.c.b16 %v2864, %v2840
  %v3057 = vpack.c.b16 %v2865, %v2841
  %v3058 = vpack.c.b16 %v2866, %v2842
  %v3059 = vpack.c.b16 %v2867, %v2843
  %v3060 = vpack.c.b16 %v2868, %v2844
  %v3061 = vpack.c.b16 %v2869, %v2845
  %v3062 = vpack.c.b16 %v2870, %v2846
  %v3063 = vpack.c.b16 %v2871, %v2847
  %v3064 = vpack.c.b16 %v2872, %v2848
  %v3065 = vpack.c.b16 %v2873, %v2849
  %v3066 = vpack.c.b16 %v2874, %v2850
  %v3067 = vpack.c.b16 %v2875, %v2851
  %v3068 = vpack.c.b16 %v2876, %v2852
  %v3069 = vpack.c.b16 %v2877, %v2853
  %v3070 = vpack.c.b16 %v2878, %v2854
  %v3071 = vpack.c.b16 %v2879, %v2855
  %v3072 = vpack.c.b16 %v2904, %v2880
  %v3073 = vpack.c.b16 %v2905, %v2881
  %v3074 = vpack.c.b16 %v2906, %v2882
  %v3075 = vpack.c.b16 %v2907, %v2883
  %v3076 = vpack.c.b16 %v2908, %v2884
  %v3077 = vpack.c.b16 %v2909, %v2885
  %v3078 = vpack.c.b16 %v2910, %v2886
  %v3079 = vpack.c.b16 %v2911, %v2887
  %v3080 = vpack.c.b16 %v2912, %v2888
  %v3081 = vpack.c.b16 %v2913, %v2889
  %v3082 = vpack.c.b16 %v2914, %v2890
  %v3083 = vpack.c.b16 %v2915, %v2891
  %v3084 = vpack.c.b16 %v2916, %v2892
  %v3085 = vpack.c.b16 %v2917, %v2893
  %v3086 = vpack.c.b16 %v2918, %v2894
  %v3087 = vpack.c.b16 %v2919, %v2895
  %v3088 = vpack.c.b16 %v2920, %v2896
  %v3089 = vpack.c.b16 %v2921, %v2897
  %v3090 = vpack.c.b16 %v2922, %v2898
  %v3091 = vpack.c.b16 %v2923, %v2899
  %v3092 = vpack.c.b16 %v2924, %v2900
  %v3093 = vpack.c.b16 %v2925, %v2901
  %v3094 = vpack.c.b16 %v2926, %v2902
  %v3095 = vpack.c.b16 %v2927, %v2903
  %v3096 = vpack.c.b16 %v2952, %v2928
  %v3097 = vpack.c.b16 %v2953, %v2929
  %v3098 = vpack.c.b16 %v2954, %v2930
  %v3099 = vpack.c.b16 %v2955, %v2931
  %v3100 = vpack.c.b16 %v2956, %v2932
  %v3101 = vpack.c.b16 %v2957, %v2933
  %v3102 = vpack.c.b16 %v2958, %v2934
  %v3103 = vpack.c.b16 %v2959, %v2935
  %v3104 = vpack.c.b16 %v2960, %v2936
  %v3105 = vpack.c.b16 %v2961, %v2937
  %v3106 = vpack.c.b16 %v2962, %v2938
  %v3107 = vpack.c.b16 %v2963, %v2939
  %v3108 = vpack.c.b16 %v2964, %v2940
  %v3109 = vpack.c.b16 %v2965, %v2941
  %v3110 = vpack.c.b16 %v2966, %v2942
  %v3111 = vpack.c.b16 %v2967, %v2943
  %v3112 = vpack.c.b16 %v2968, %v2944
  %v3113 = vpack.c.b16 %v2969, %v2945
  %v3114 = vpack.c.b16 %v2970, %v2946
  %v3115 = vpack.c.b16 %v2971, %v2947
  %v3116 = vpack.c.b16 %v2972, %v2948
  %v3117 = vpack.c.b16 %v2973, %v2949
  %v3118 = vpack.c.b16 %v2974, %v2950
  %v3119 = vpack.c.b16 %v2975, %v2951
  %v3120 = vpack.c.b16 %v3000, %v2976
  %v3121 = vpack.c.b16 %v3001, %v2977
  %v3122 = vpack.c.b16 %v3002, %v2978
  %v3123 = vpack.c.b16 %v3003, %v2979
  %v3124 = vpack.c.b16 %v3004, %v2980
  %v3125 = vpack.c.b16 %v3005, %v2981
  %v3126 = vpack.c.b16 %v3006, %v2982
  %v3127 = vpack.c.b16 %v3007, %v2983
  %v3128 = vpack.c.b16 %v3008, %v2984
  %v3129 = vpack.c.b16 %v3009, %v2985
  %v3130 = vpack.c.b16 %v3010, %v2986
  %v3131 = vpack.c.b16 %v3011, %v2987
  %v3132 = vpack.c.b16 %v3012, %v2988
  %v3133 = vpack.c.b16 %v3013, %v2989
  %v3134 = vpack.c.b16 %v3014, %v2990
  %v3135 = vpack.c.b16 %v3015, %v2991
  %v3136 = vpack.c.b16 %v3016, %v2992
  %v3137 = vpack.c.b16 %v3017, %v2993
  %v3138 = vpack.c.b16 %v3018, %v2994
  %v3139 = vpack.c.b16 %v3019, %v2995
  %v3140 = vpack.c.b16 %v3020, %v2996
  %v3141 = vpack.c.b16 %v3021, %v2997
  %v3142 = vpack.c.b16 %v3022, %v2998
  %v3143 = vpack.c.b16 %v3023, %v2999
  %v3144 = vpack.c.b16 %v3024, %v3024
  %v3145 = vpack.c.b16 %v3025, %v3025
  %v3146 = vpack.c.b16 %v3026, %v3026
  %v3147 = vpack.c.b16 %v3027, %v3027
  %v3148 = vpack.c.b16 %v3028, %v3028
  %v3149 = vpack.c.b16 %v3029, %v3029
  %v3150 = vpack.c.b16 %v3030, %v3030
  %v3151 = vpack.c.b16 %v3031, %v3031
  %v3152 = vpack.c.b16 %v3032, %v3032
  %v3153 = vpack.c.b16 %v3033, %v3033
  %v3154 = vpack.c.b16 %v3034, %v3034
  %v3155 = vpack.c.b16 %v3035, %v3035
  %v3156 = vpack.c.b16 %v3036, %v3036
  %v3157 = vpack.c.b16 %v3037, %v3037
  %v3158 = vpack.c.b16 %v3038, %v3038
  %v3159 = vpack.c.b16 %v3039, %v3039
  %v3160 = vpack.c.b16 %v3040, %v3040
  %v3161 = vpack.c.b16 %v3041, %v3041
  %v3162 = vpack.c.b16 %v3042, %v3042
  %v3163 = vpack.c.b16 %v3043, %v3043
  %v3164 = vpack.c.b16 %v3044, %v3044
  %v3165 = vpack.c.b16 %v3045, %v3045
  %v3166 = vpack.c.b16 %v3046, %v3046
  %v3167 = vpack.c.b16 %v3047, %v3047
  %vm3264 = vcmask 588800
  %v3266 = vsel %vm3264, %v2609, 0
  %vm3268 = vcmask 1043456
  %v3270 = vsel %vm3268, %v3144, 0
  %v3273 = vsel %vm3268, %v3145, 0
  %v3276 = vsel %vm3268, %v3146, 0
  %v3279 = vsel %vm3268, %v3147, 0
  %v3282 = vsel %vm3268, %v3148, 0
  %v3285 = vsel %vm3268, %v3149, 0
  %v3288 = vsel %vm3268, %v3150, 0
  %v3291 = vsel %vm3268, %v3151, 0
  %v3294 = vsel %vm3268, %v3152, 0
  %v3297 = vsel %vm3268, %v3153, 0
  %v3300 = vsel %vm3268, %v3154, 0
  %v3303 = vsel %vm3268, %v3155, 0
  %v3306 = vsel %vm3268, %v3156, 0
  %v3309 = vsel %vm3268, %v3157, 0
  %v3312 = vsel %vm3268, %v3158, 0
  %v3315 = vsel %vm3268, %v3159, 0
  %v3318 = vsel %vm3268, %v3160, 0
  %v3321 = vsel %vm3268, %v3161, 0
  %v3324 = vsel %vm3268, %v3162, 0
  %v3327 = vsel %vm3268, %v3163, 0
  %v3330 = vsel %vm3268, %v3164, 0
  %v3333 = vsel %vm3268, %v3165, 0
  %v3336 = vsel %vm3268, %v3166, 0
  %v3339 = vsel %vm3268, %v3167, 0
  %3341 = vmatprep.subr.bf16.mxu0 0
  %3342 = vmatpush1.bf16.msra.mxu0 0
  %3343 = vmatprep.subr.bf16.mxu0 0
  %3344 = vmatpush1.bf16.msra.mxu0 0
  %3345 = vmatprep.subr.bf16.mxu0 0
  %3346 = vmatpush1.bf16.msra.mxu0 0
  %3347 = vmatprep.subr.bf16.mxu0 %v3273
  %3348 = vmatpush1.bf16.msra.mxu0 %v3270
  %3349 = vmatprep.subr.bf16.mxu0 %v3121
  %3350 = vmatpush1.bf16.msra.mxu0 %v3120
  %3351 = vmatprep.subr.bf16.mxu0 %v3097
  %3352 = vmatpush1.bf16.msra.mxu0 %v3096
  %3353 = vmatprep.subr.bf16.mxu0 %v3073
  %3354 = vmatpush1.bf16.msra.mxu0 %v3072
  %3355 = vmatprep.subr.bf16.mxu0 %v3049
  %3356 = vmatpush1.bf16.msra.mxu0 %v3048
  %3357 = vmatprep.subr.bf16.mxu0 0
  %3358 = vmatpush2.bf16.msra.mxu0 0
  %3359 = vmatprep.subr.bf16.mxu0 0
  %3360 = vmatpush2.bf16.msra.mxu0 0
  %3361 = vmatprep.subr.bf16.mxu0 0
  %3362 = vmatpush2.bf16.msra.mxu0 0
  %3363 = vmatprep.subr.bf16.mxu0 0
  %3364 = vmatpush2.bf16.msra.mxu0 0
  %3365 = vmatprep.subr.bf16.mxu0 0
  %3366 = vmatpush2.bf16.msra.mxu0 0
  %3367 = vmatprep.subr.bf16.mxu0 0
  %3368 = vmatpush2.bf16.msra.mxu0 0
  %3369 = vmatprep.subr.bf16.mxu0 0
  %3370 = vmatpush2.bf16.msra.mxu0 0
  %3371 = vmatprep.subr.bf16.mxu0 0
  %3372 = vmatpush2.bf16.msra.mxu0 0
  %3373 = vmatprep.mubr.bf16.mxu0 0
  %3374 = vmatmul.mubr.bf16.gmra.mxu0 %v3266
  %v3375 = vpop.f32.mrf.mxu0
  %v3376 = vadd.f32 %v2722, %v3375
  %v3377 = vpop.f32.mrf.mxu0
  %v3378 = vadd.f32 %v2722, %v3377
  %v3379 = vpop.f32.mrf.mxu0
  %v3380 = vpop.f32.mrf.mxu0
  %3381 = vdwg.mxu0
  %3382 = vmatprep.subr.bf16.mxu0 0
  %3383 = vmatpush1.bf16.msra.mxu0 0
  %3384 = vmatprep.subr.bf16.mxu0 0
  %3385 = vmatpush1.bf16.msra.mxu0 0
  %3386 = vmatprep.subr.bf16.mxu0 0
  %3387 = vmatpush1.bf16.msra.mxu0 0
  %3388 = vmatprep.subr.bf16.mxu0 %v3279
  %3389 = vmatpush1.bf16.msra.mxu0 %v3276
  %3390 = vmatprep.subr.bf16.mxu0 %v3123
  %3391 = vmatpush1.bf16.msra.mxu0 %v3122
  %3392 = vmatprep.subr.bf16.mxu0 %v3099
  %3393 = vmatpush1.bf16.msra.mxu0 %v3098
  %3394 = vmatprep.subr.bf16.mxu0 %v3075
  %3395 = vmatpush1.bf16.msra.mxu0 %v3074
  %3396 = vmatprep.subr.bf16.mxu0 %v3051
  %3397 = vmatpush1.bf16.msra.mxu0 %v3050
  %3398 = vmatprep.subr.bf16.mxu0 0
  %3399 = vmatpush2.bf16.msra.mxu0 0
  %3400 = vmatprep.subr.bf16.mxu0 0
  %3401 = vmatpush2.bf16.msra.mxu0 0
  %3402 = vmatprep.subr.bf16.mxu0 0
  %3403 = vmatpush2.bf16.msra.mxu0 0
  %3404 = vmatprep.subr.bf16.mxu0 0
  %3405 = vmatpush2.bf16.msra.mxu0 0
  %3406 = vmatprep.subr.bf16.mxu0 0
  %3407 = vmatpush2.bf16.msra.mxu0 0
  %3408 = vmatprep.subr.bf16.mxu0 0
  %3409 = vmatpush2.bf16.msra.mxu0 0
  %3410 = vmatprep.subr.bf16.mxu0 0
  %3411 = vmatpush2.bf16.msra.mxu0 0
  %3412 = vmatprep.subr.bf16.mxu0 0
  %3413 = vmatpush2.bf16.msra.mxu0 0
  %3414 = vmatprep.mubr.bf16.mxu0 0
  %3415 = vmatmul.mubr.bf16.gmra.mxu0 %v3266
  %v3416 = vpop.f32.mrf.mxu0
  %v3417 = vadd.f32 %v2722, %v3416
  %v3418 = vpop.f32.mrf.mxu0
  %v3419 = vadd.f32 %v2722, %v3418
  %v3420 = vpop.f32.mrf.mxu0
  %v3421 = vpop.f32.mrf.mxu0
  %3422 = vdwg.mxu0
  %3423 = vmatprep.subr.bf16.mxu0 0
  %3424 = vmatpush1.bf16.msra.mxu0 0
  %3425 = vmatprep.subr.bf16.mxu0 0
  %3426 = vmatpush1.bf16.msra.mxu0 0
  %3427 = vmatprep.subr.bf16.mxu0 0
  %3428 = vmatpush1.bf16.msra.mxu0 0
  %3429 = vmatprep.subr.bf16.mxu0 %v3285
  %3430 = vmatpush1.bf16.msra.mxu0 %v3282
  %3431 = vmatprep.subr.bf16.mxu0 %v3125
  %3432 = vmatpush1.bf16.msra.mxu0 %v3124
  %3433 = vmatprep.subr.bf16.mxu0 %v3101
  %3434 = vmatpush1.bf16.msra.mxu0 %v3100
  %3435 = vmatprep.subr.bf16.mxu0 %v3077
  %3436 = vmatpush1.bf16.msra.mxu0 %v3076
  %3437 = vmatprep.subr.bf16.mxu0 %v3053
  %3438 = vmatpush1.bf16.msra.mxu0 %v3052
  %3439 = vmatprep.subr.bf16.mxu0 0
  %3440 = vmatpush2.bf16.msra.mxu0 0
  %3441 = vmatprep.subr.bf16.mxu0 0
  %3442 = vmatpush2.bf16.msra.mxu0 0
  %3443 = vmatprep.subr.bf16.mxu0 0
  %3444 = vmatpush2.bf16.msra.mxu0 0
  %3445 = vmatprep.subr.bf16.mxu0 0
  %3446 = vmatpush2.bf16.msra.mxu0 0
  %3447 = vmatprep.subr.bf16.mxu0 0
  %3448 = vmatpush2.bf16.msra.mxu0 0
  %3449 = vmatprep.subr.bf16.mxu0 0
  %3450 = vmatpush2.bf16.msra.mxu0 0
  %3451 = vmatprep.subr.bf16.mxu0 0
  %3452 = vmatpush2.bf16.msra.mxu0 0
  %3453 = vmatprep.subr.bf16.mxu0 0
  %3454 = vmatpush2.bf16.msra.mxu0 0
  %3455 = vmatprep.mubr.bf16.mxu0 0
  %3456 = vmatmul.mubr.bf16.gmra.mxu0 %v3266
  %v3457 = vpop.f32.mrf.mxu0
  %v3458 = vadd.f32 %v2722, %v3457
  %v3459 = vpop.f32.mrf.mxu0
  %v3460 = vadd.f32 %v2722, %v3459
  %v3461 = vpop.f32.mrf.mxu0
  %v3462 = vpop.f32.mrf.mxu0
  %3463 = vdwg.mxu0
  %3464 = vmatprep.subr.bf16.mxu0 0
  %3465 = vmatpush1.bf16.msra.mxu0 0
  %3466 = vmatprep.subr.bf16.mxu0 0
  %3467 = vmatpush1.bf16.msra.mxu0 0
  %3468 = vmatprep.subr.bf16.mxu0 0
  %3469 = vmatpush1.bf16.msra.mxu0 0
  %3470 = vmatprep.subr.bf16.mxu0 %v3291
  %3471 = vmatpush1.bf16.msra.mxu0 %v3288
  %3472 = vmatprep.subr.bf16.mxu0 %v3127
  %3473 = vmatpush1.bf16.msra.mxu0 %v3126
  %3474 = vmatprep.subr.bf16.mxu0 %v3103
  %3475 = vmatpush1.bf16.msra.mxu0 %v3102
  %3476 = vmatprep.subr.bf16.mxu0 %v3079
  %3477 = vmatpush1.bf16.msra.mxu0 %v3078
  %3478 = vmatprep.subr.bf16.mxu0 %v3055
  %3479 = vmatpush1.bf16.msra.mxu0 %v3054
  %3480 = vmatprep.subr.bf16.mxu0 0
  %3481 = vmatpush2.bf16.msra.mxu0 0
  %3482 = vmatprep.subr.bf16.mxu0 0
  %3483 = vmatpush2.bf16.msra.mxu0 0
  %3484 = vmatprep.subr.bf16.mxu0 0
  %3485 = vmatpush2.bf16.msra.mxu0 0
  %3486 = vmatprep.subr.bf16.mxu0 0
  %3487 = vmatpush2.bf16.msra.mxu0 0
  %3488 = vmatprep.subr.bf16.mxu0 0
  %3489 = vmatpush2.bf16.msra.mxu0 0
  %3490 = vmatprep.subr.bf16.mxu0 0
  %3491 = vmatpush2.bf16.msra.mxu0 0
  %3492 = vmatprep.subr.bf16.mxu0 0
  %3493 = vmatpush2.bf16.msra.mxu0 0
  %3494 = vmatprep.subr.bf16.mxu0 0
  %3495 = vmatpush2.bf16.msra.mxu0 0
  %3496 = vmatprep.mubr.bf16.mxu0 0
  %3497 = vmatmul.mubr.bf16.gmra.mxu0 %v3266
  %v3498 = vpop.f32.mrf.mxu0
  %v3499 = vadd.f32 %v2722, %v3498
  %v3500 = vpop.f32.mrf.mxu0
  %v3501 = vadd.f32 %v2722, %v3500
  %v3502 = vpop.f32.mrf.mxu0
  %v3503 = vpop.f32.mrf.mxu0
  %3504 = vdwg.mxu0
  %3505 = vmatprep.subr.bf16.mxu0 0
  %3506 = vmatpush1.bf16.msra.mxu0 0
  %3507 = vmatprep.subr.bf16.mxu0 0
  %3508 = vmatpush1.bf16.msra.mxu0 0
  %3509 = vmatprep.subr.bf16.mxu0 0
  %3510 = vmatpush1.bf16.msra.mxu0 0
  %3511 = vmatprep.subr.bf16.mxu0 %v3297
  %3512 = vmatpush1.bf16.msra.mxu0 %v3294
  %3513 = vmatprep.subr.bf16.mxu0 %v3129
  %3514 = vmatpush1.bf16.msra.mxu0 %v3128
  %3515 = vmatprep.subr.bf16.mxu0 %v3105
  %3516 = vmatpush1.bf16.msra.mxu0 %v3104
  %3517 = vmatprep.subr.bf16.mxu0 %v3081
  %3518 = vmatpush1.bf16.msra.mxu0 %v3080
  %3519 = vmatprep.subr.bf16.mxu0 %v3057
  %3520 = vmatpush1.bf16.msra.mxu0 %v3056
  %3521 = vmatprep.subr.bf16.mxu0 0
  %3522 = vmatpush2.bf16.msra.mxu0 0
  %3523 = vmatprep.subr.bf16.mxu0 0
  %3524 = vmatpush2.bf16.msra.mxu0 0
  %3525 = vmatprep.subr.bf16.mxu0 0
  %3526 = vmatpush2.bf16.msra.mxu0 0
  %3527 = vmatprep.subr.bf16.mxu0 0
  %3528 = vmatpush2.bf16.msra.mxu0 0
  %3529 = vmatprep.subr.bf16.mxu0 0
  %3530 = vmatpush2.bf16.msra.mxu0 0
  %3531 = vmatprep.subr.bf16.mxu0 0
  %3532 = vmatpush2.bf16.msra.mxu0 0
  %3533 = vmatprep.subr.bf16.mxu0 0
  %3534 = vmatpush2.bf16.msra.mxu0 0
  %3535 = vmatprep.subr.bf16.mxu0 0
  %3536 = vmatpush2.bf16.msra.mxu0 0
  %3537 = vmatprep.mubr.bf16.mxu0 0
  %3538 = vmatmul.mubr.bf16.gmra.mxu0 %v3266
  %v3539 = vpop.f32.mrf.mxu0
  %v3540 = vadd.f32 %v2722, %v3539
  %v3541 = vpop.f32.mrf.mxu0
  %v3542 = vadd.f32 %v2722, %v3541
  %v3543 = vpop.f32.mrf.mxu0
  %v3544 = vpop.f32.mrf.mxu0
  %3545 = vdwg.mxu0
  %3546 = vmatprep.subr.bf16.mxu0 0
  %3547 = vmatpush1.bf16.msra.mxu0 0
  %3548 = vmatprep.subr.bf16.mxu0 0
  %3549 = vmatpush1.bf16.msra.mxu0 0
  %3550 = vmatprep.subr.bf16.mxu0 0
  %3551 = vmatpush1.bf16.msra.mxu0 0
  %3552 = vmatprep.subr.bf16.mxu0 %v3303
  %3553 = vmatpush1.bf16.msra.mxu0 %v3300
  %3554 = vmatprep.subr.bf16.mxu0 %v3131
  %3555 = vmatpush1.bf16.msra.mxu0 %v3130
  %3556 = vmatprep.subr.bf16.mxu0 %v3107
  %3557 = vmatpush1.bf16.msra.mxu0 %v3106
  %3558 = vmatprep.subr.bf16.mxu0 %v3083
  %3559 = vmatpush1.bf16.msra.mxu0 %v3082
  %3560 = vmatprep.subr.bf16.mxu0 %v3059
  %3561 = vmatpush1.bf16.msra.mxu0 %v3058
  %3562 = vmatprep.subr.bf16.mxu0 0
  %3563 = vmatpush2.bf16.msra.mxu0 0
  %3564 = vmatprep.subr.bf16.mxu0 0
  %3565 = vmatpush2.bf16.msra.mxu0 0
  %3566 = vmatprep.subr.bf16.mxu0 0
  %3567 = vmatpush2.bf16.msra.mxu0 0
  %3568 = vmatprep.subr.bf16.mxu0 0
  %3569 = vmatpush2.bf16.msra.mxu0 0
  %3570 = vmatprep.subr.bf16.mxu0 0
  %3571 = vmatpush2.bf16.msra.mxu0 0
  %3572 = vmatprep.subr.bf16.mxu0 0
  %3573 = vmatpush2.bf16.msra.mxu0 0
  %3574 = vmatprep.subr.bf16.mxu0 0
  %3575 = vmatpush2.bf16.msra.mxu0 0
  %3576 = vmatprep.subr.bf16.mxu0 0
  %3577 = vmatpush2.bf16.msra.mxu0 0
  %3578 = vmatprep.mubr.bf16.mxu0 0
  %3579 = vmatmul.mubr.bf16.gmra.mxu0 %v3266
  %v3580 = vpop.f32.mrf.mxu0
  %v3581 = vadd.f32 %v2722, %v3580
  %v3582 = vpop.f32.mrf.mxu0
  %v3583 = vadd.f32 %v2722, %v3582
  %v3584 = vpop.f32.mrf.mxu0
  %v3585 = vpop.f32.mrf.mxu0
  %3586 = vdwg.mxu0
  %3587 = vmatprep.subr.bf16.mxu0 0
  %3588 = vmatpush1.bf16.msra.mxu0 0
  %3589 = vmatprep.subr.bf16.mxu0 0
  %3590 = vmatpush1.bf16.msra.mxu0 0
  %3591 = vmatprep.subr.bf16.mxu0 0
  %3592 = vmatpush1.bf16.msra.mxu0 0
  %3593 = vmatprep.subr.bf16.mxu0 %v3309
  %3594 = vmatpush1.bf16.msra.mxu0 %v3306
  %3595 = vmatprep.subr.bf16.mxu0 %v3133
  %3596 = vmatpush1.bf16.msra.mxu0 %v3132
  %3597 = vmatprep.subr.bf16.mxu0 %v3109
  %3598 = vmatpush1.bf16.msra.mxu0 %v3108
  %3599 = vmatprep.subr.bf16.mxu0 %v3085
  %3600 = vmatpush1.bf16.msra.mxu0 %v3084
  %3601 = vmatprep.subr.bf16.mxu0 %v3061
  %3602 = vmatpush1.bf16.msra.mxu0 %v3060
  %3603 = vmatprep.subr.bf16.mxu0 0
  %3604 = vmatpush2.bf16.msra.mxu0 0
  %3605 = vmatprep.subr.bf16.mxu0 0
  %3606 = vmatpush2.bf16.msra.mxu0 0
  %3607 = vmatprep.subr.bf16.mxu0 0
  %3608 = vmatpush2.bf16.msra.mxu0 0
  %3609 = vmatprep.subr.bf16.mxu0 0
  %3610 = vmatpush2.bf16.msra.mxu0 0
  %3611 = vmatprep.subr.bf16.mxu0 0
  %3612 = vmatpush2.bf16.msra.mxu0 0
  %3613 = vmatprep.subr.bf16.mxu0 0
  %3614 = vmatpush2.bf16.msra.mxu0 0
  %3615 = vmatprep.subr.bf16.mxu0 0
  %3616 = vmatpush2.bf16.msra.mxu0 0
  %3617 = vmatprep.subr.bf16.mxu0 0
  %3618 = vmatpush2.bf16.msra.mxu0 0
  %3619 = vmatprep.mubr.bf16.mxu0 0
  %3620 = vmatmul.mubr.bf16.gmra.mxu0 %v3266
  %v3621 = vpop.f32.mrf.mxu0
  %v3622 = vadd.f32 %v2722, %v3621
  %v3623 = vpop.f32.mrf.mxu0
  %v3624 = vadd.f32 %v2722, %v3623
  %v3625 = vpop.f32.mrf.mxu0
  %v3626 = vpop.f32.mrf.mxu0
  %3627 = vdwg.mxu0
  %3628 = vmatprep.subr.bf16.mxu0 0
  %3629 = vmatpush1.bf16.msra.mxu0 0
  %3630 = vmatprep.subr.bf16.mxu0 0
  %3631 = vmatpush1.bf16.msra.mxu0 0
  %3632 = vmatprep.subr.bf16.mxu0 0
  %3633 = vmatpush1.bf16.msra.mxu0 0
  %3634 = vmatprep.subr.bf16.mxu0 %v3315
  %3635 = vmatpush1.bf16.msra.mxu0 %v3312
  %3636 = vmatprep.subr.bf16.mxu0 %v3135
  %3637 = vmatpush1.bf16.msra.mxu0 %v3134
  %3638 = vmatprep.subr.bf16.mxu0 %v3111
  %3639 = vmatpush1.bf16.msra.mxu0 %v3110
  %3640 = vmatprep.subr.bf16.mxu0 %v3087
  %3641 = vmatpush1.bf16.msra.mxu0 %v3086
  %3642 = vmatprep.subr.bf16.mxu0 %v3063
  %3643 = vmatpush1.bf16.msra.mxu0 %v3062
  %3644 = vmatprep.subr.bf16.mxu0 0
  %3645 = vmatpush2.bf16.msra.mxu0 0
  %3646 = vmatprep.subr.bf16.mxu0 0
  %3647 = vmatpush2.bf16.msra.mxu0 0
  %3648 = vmatprep.subr.bf16.mxu0 0
  %3649 = vmatpush2.bf16.msra.mxu0 0
  %3650 = vmatprep.subr.bf16.mxu0 0
  %3651 = vmatpush2.bf16.msra.mxu0 0
  %3652 = vmatprep.subr.bf16.mxu0 0
  %3653 = vmatpush2.bf16.msra.mxu0 0
  %3654 = vmatprep.subr.bf16.mxu0 0
  %3655 = vmatpush2.bf16.msra.mxu0 0
  %3656 = vmatprep.subr.bf16.mxu0 0
  %3657 = vmatpush2.bf16.msra.mxu0 0
  %3658 = vmatprep.subr.bf16.mxu0 0
  %3659 = vmatpush2.bf16.msra.mxu0 0
  %3660 = vmatprep.mubr.bf16.mxu0 0
  %3661 = vmatmul.mubr.bf16.gmra.mxu0 %v3266
  %v3662 = vpop.f32.mrf.mxu0
  %v3663 = vadd.f32 %v2722, %v3662
  %v3664 = vpop.f32.mrf.mxu0
  %v3665 = vadd.f32 %v2722, %v3664
  %v3666 = vpop.f32.mrf.mxu0
  %v3667 = vpop.f32.mrf.mxu0
  %3668 = vdwg.mxu0
  %3669 = vmatprep.subr.bf16.mxu0 0
  %3670 = vmatpush1.bf16.msra.mxu0 0
  %3671 = vmatprep.subr.bf16.mxu0 0
  %3672 = vmatpush1.bf16.msra.mxu0 0
  %3673 = vmatprep.subr.bf16.mxu0 0
  %3674 = vmatpush1.bf16.msra.mxu0 0
  %3675 = vmatprep.subr.bf16.mxu0 %v3321
  %3676 = vmatpush1.bf16.msra.mxu0 %v3318
  %3677 = vmatprep.subr.bf16.mxu0 %v3137
  %3678 = vmatpush1.bf16.msra.mxu0 %v3136
  %3679 = vmatprep.subr.bf16.mxu0 %v3113
  %3680 = vmatpush1.bf16.msra.mxu0 %v3112
  %3681 = vmatprep.subr.bf16.mxu0 %v3089
  %3682 = vmatpush1.bf16.msra.mxu0 %v3088
  %3683 = vmatprep.subr.bf16.mxu0 %v3065
  %3684 = vmatpush1.bf16.msra.mxu0 %v3064
  %3685 = vmatprep.subr.bf16.mxu0 0
  %3686 = vmatpush2.bf16.msra.mxu0 0
  %3687 = vmatprep.subr.bf16.mxu0 0
  %3688 = vmatpush2.bf16.msra.mxu0 0
  %3689 = vmatprep.subr.bf16.mxu0 0
  %3690 = vmatpush2.bf16.msra.mxu0 0
  %3691 = vmatprep.subr.bf16.mxu0 0
  %3692 = vmatpush2.bf16.msra.mxu0 0
  %3693 = vmatprep.subr.bf16.mxu0 0
  %3694 = vmatpush2.bf16.msra.mxu0 0
  %3695 = vmatprep.subr.bf16.mxu0 0
  %3696 = vmatpush2.bf16.msra.mxu0 0
  %3697 = vmatprep.subr.bf16.mxu0 0
  %3698 = vmatpush2.bf16.msra.mxu0 0
  %3699 = vmatprep.subr.bf16.mxu0 0
  %3700 = vmatpush2.bf16.msra.mxu0 0
  %3701 = vmatprep.mubr.bf16.mxu0 0
  %3702 = vmatmul.mubr.bf16.gmra.mxu0 %v3266
  %v3703 = vpop.f32.mrf.mxu0
  %v3704 = vadd.f32 %v2722, %v3703
  %v3705 = vpop.f32.mrf.mxu0
  %v3706 = vadd.f32 %v2722, %v3705
  %v3707 = vpop.f32.mrf.mxu0
  %v3708 = vpop.f32.mrf.mxu0
  %3709 = vdwg.mxu0
  %3710 = vmatprep.subr.bf16.mxu0 0
  %3711 = vmatpush1.bf16.msra.mxu0 0
  %3712 = vmatprep.subr.bf16.mxu0 0
  %3713 = vmatpush1.bf16.msra.mxu0 0
  %3714 = vmatprep.subr.bf16.mxu0 0
  %3715 = vmatpush1.bf16.msra.mxu0 0
  %3716 = vmatprep.subr.bf16.mxu0 %v3327
  %3717 = vmatpush1.bf16.msra.mxu0 %v3324
  %3718 = vmatprep.subr.bf16.mxu0 %v3139
  %3719 = vmatpush1.bf16.msra.mxu0 %v3138
  %3720 = vmatprep.subr.bf16.mxu0 %v3115
  %3721 = vmatpush1.bf16.msra.mxu0 %v3114
  %3722 = vmatprep.subr.bf16.mxu0 %v3091
  %3723 = vmatpush1.bf16.msra.mxu0 %v3090
  %3724 = vmatprep.subr.bf16.mxu0 %v3067
  %3725 = vmatpush1.bf16.msra.mxu0 %v3066
  %3726 = vmatprep.subr.bf16.mxu0 0
  %3727 = vmatpush2.bf16.msra.mxu0 0
  %3728 = vmatprep.subr.bf16.mxu0 0
  %3729 = vmatpush2.bf16.msra.mxu0 0
  %3730 = vmatprep.subr.bf16.mxu0 0
  %3731 = vmatpush2.bf16.msra.mxu0 0
  %3732 = vmatprep.subr.bf16.mxu0 0
  %3733 = vmatpush2.bf16.msra.mxu0 0
  %3734 = vmatprep.subr.bf16.mxu0 0
  %3735 = vmatpush2.bf16.msra.mxu0 0
  %3736 = vmatprep.subr.bf16.mxu0 0
  %3737 = vmatpush2.bf16.msra.mxu0 0
  %3738 = vmatprep.subr.bf16.mxu0 0
  %3739 = vmatpush2.bf16.msra.mxu0 0
  %3740 = vmatprep.subr.bf16.mxu0 0
  %3741 = vmatpush2.bf16.msra.mxu0 0
  %3742 = vmatprep.mubr.bf16.mxu0 0
  %3743 = vmatmul.mubr.bf16.gmra.mxu0 %v3266
  %v3744 = vpop.f32.mrf.mxu0
  %v3745 = vadd.f32 %v2722, %v3744
  %v3746 = vpop.f32.mrf.mxu0
  %v3747 = vadd.f32 %v2722, %v3746
  %v3748 = vpop.f32.mrf.mxu0
  %v3749 = vpop.f32.mrf.mxu0
  %3750 = vdwg.mxu0
  %3751 = vmatprep.subr.bf16.mxu0 0
  %3752 = vmatpush1.bf16.msra.mxu0 0
  %3753 = vmatprep.subr.bf16.mxu0 0
  %3754 = vmatpush1.bf16.msra.mxu0 0
  %3755 = vmatprep.subr.bf16.mxu0 0
  %3756 = vmatpush1.bf16.msra.mxu0 0
  %3757 = vmatprep.subr.bf16.mxu0 %v3333
  %3758 = vmatpush1.bf16.msra.mxu0 %v3330
  %3759 = vmatprep.subr.bf16.mxu0 %v3141
  %3760 = vmatpush1.bf16.msra.mxu0 %v3140
  %3761 = vmatprep.subr.bf16.mxu0 %v3117
  %3762 = vmatpush1.bf16.msra.mxu0 %v3116
  %3763 = vmatprep.subr.bf16.mxu0 %v3093
  %3764 = vmatpush1.bf16.msra.mxu0 %v3092
  %3765 = vmatprep.subr.bf16.mxu0 %v3069
  %3766 = vmatpush1.bf16.msra.mxu0 %v3068
  %3767 = vmatprep.subr.bf16.mxu0 0
  %3768 = vmatpush2.bf16.msra.mxu0 0
  %3769 = vmatprep.subr.bf16.mxu0 0
  %3770 = vmatpush2.bf16.msra.mxu0 0
  %3771 = vmatprep.subr.bf16.mxu0 0
  %3772 = vmatpush2.bf16.msra.mxu0 0
  %3773 = vmatprep.subr.bf16.mxu0 0
  %3774 = vmatpush2.bf16.msra.mxu0 0
  %3775 = vmatprep.subr.bf16.mxu0 0
  %3776 = vmatpush2.bf16.msra.mxu0 0
  %3777 = vmatprep.subr.bf16.mxu0 0
  %3778 = vmatpush2.bf16.msra.mxu0 0
  %3779 = vmatprep.subr.bf16.mxu0 0
  %3780 = vmatpush2.bf16.msra.mxu0 0
  %3781 = vmatprep.subr.bf16.mxu0 0
  %3782 = vmatpush2.bf16.msra.mxu0 0
  %3783 = vmatprep.mubr.bf16.mxu0 0
  %3784 = vmatmul.mubr.bf16.gmra.mxu0 %v3266
  %v3785 = vpop.f32.mrf.mxu0
  %v3786 = vadd.f32 %v2722, %v3785
  %v3787 = vpop.f32.mrf.mxu0
  %v3788 = vadd.f32 %v2722, %v3787
  %v3789 = vpop.f32.mrf.mxu0
  %v3790 = vpop.f32.mrf.mxu0
  %3791 = vdwg.mxu0
  %3792 = vmatprep.subr.bf16.mxu0 0
  %3793 = vmatpush1.bf16.msra.mxu0 0
  %3794 = vmatprep.subr.bf16.mxu0 0
  %3795 = vmatpush1.bf16.msra.mxu0 0
  %3796 = vmatprep.subr.bf16.mxu0 0
  %3797 = vmatpush1.bf16.msra.mxu0 0
  %3798 = vmatprep.subr.bf16.mxu0 %v3339
  %3799 = vmatpush1.bf16.msra.mxu0 %v3336
  %3800 = vmatprep.subr.bf16.mxu0 %v3143
  %3801 = vmatpush1.bf16.msra.mxu0 %v3142
  %3802 = vmatprep.subr.bf16.mxu0 %v3119
  %3803 = vmatpush1.bf16.msra.mxu0 %v3118
  %3804 = vmatprep.subr.bf16.mxu0 %v3095
  %3805 = vmatpush1.bf16.msra.mxu0 %v3094
  %3806 = vmatprep.subr.bf16.mxu0 %v3071
  %3807 = vmatpush1.bf16.msra.mxu0 %v3070
  %3808 = vmatprep.subr.bf16.mxu0 0
  %3809 = vmatpush2.bf16.msra.mxu0 0
  %3810 = vmatprep.subr.bf16.mxu0 0
  %3811 = vmatpush2.bf16.msra.mxu0 0
  %3812 = vmatprep.subr.bf16.mxu0 0
  %3813 = vmatpush2.bf16.msra.mxu0 0
  %3814 = vmatprep.subr.bf16.mxu0 0
  %3815 = vmatpush2.bf16.msra.mxu0 0
  %3816 = vmatprep.subr.bf16.mxu0 0
  %3817 = vmatpush2.bf16.msra.mxu0 0
  %3818 = vmatprep.subr.bf16.mxu0 0
  %3819 = vmatpush2.bf16.msra.mxu0 0
  %3820 = vmatprep.subr.bf16.mxu0 0
  %3821 = vmatpush2.bf16.msra.mxu0 0
  %3822 = vmatprep.subr.bf16.mxu0 0
  %3823 = vmatpush2.bf16.msra.mxu0 0
  %3824 = vmatprep.mubr.bf16.mxu0 0
  %3825 = vmatmul.mubr.bf16.gmra.mxu0 %v3266
  %v3826 = vpop.f32.mrf.mxu0
  %v3827 = vadd.f32 %v2722, %v3826
  %v3828 = vpop.f32.mrf.mxu0
  %v3829 = vadd.f32 %v2722, %v3828
  %v3830 = vpop.f32.mrf.mxu0
  %v3831 = vpop.f32.mrf.mxu0
  %3832 = vdwg.mxu0
  %3833 = vst [vmem:[#allocation3] sm:$0xff] %v3376
  %3834 = vst [vmem:[#allocation3 + $0x8] sm:$0xff] %v3378
  %3835 = vst [vmem:[#allocation3 + $0x10] sm:$0xff] %v3417
  %3836 = vst [vmem:[#allocation3 + $0x18] sm:$0xff] %v3419
  %3837 = vst [vmem:[#allocation3 + $0x20] sm:$0xff] %v3458
  %3838 = vst [vmem:[#allocation3 + $0x28] sm:$0xff] %v3460
  %3839 = vst [vmem:[#allocation3 + $0x30] sm:$0xff] %v3499
  %3840 = vst [vmem:[#allocation3 + $0x38] sm:$0xff] %v3501
  %3841 = vst [vmem:[#allocation3 + $0x40] sm:$0xff] %v3540
  %3842 = vst [vmem:[#allocation3 + $0x48] sm:$0xff] %v3542
  %3843 = vst [vmem:[#allocation3 + $0x50] sm:$0xff] %v3581
  %3844 = vst [vmem:[#allocation3 + $0x58] sm:$0xff] %v3583
  %3845 = vst [vmem:[#allocation3 + $0x60] sm:$0xff] %v3622
  %3846 = vst [vmem:[#allocation3 + $0x68] sm:$0xff] %v3624
  %3847 = vst [vmem:[#allocation3 + $0x70] sm:$0xff] %v3663
  %3848 = vst [vmem:[#allocation3 + $0x78] sm:$0xff] %v3665
  %3849 = vst [vmem:[#allocation3 + $0x80] sm:$0xff] %v3704
  %3850 = vst [vmem:[#allocation3 + $0x88] sm:$0xff] %v3706
  %3851 = vst [vmem:[#allocation3 + $0x90] sm:$0xff] %v3745
  %3852 = vst [vmem:[#allocation3 + $0x98] sm:$0xff] %v3747
  %3853 = vst [vmem:[#allocation3 + $0xa0] sm:$0xff] %v3786
  %3854 = vst [vmem:[#allocation3 + $0xa8] sm:$0xff] %v3788
  %3855 = vst [vmem:[#allocation3 + $0xb0] sm:$0xff] %v3827
  %3856 = vst [vmem:[#allocation3 + $0xb8] sm:$0xff] %v3829
  %v3857 = vld [vmem:[#allocation3] sm:$0xff]
  %v3858 = vld [vmem:[#allocation3 + $0x8] sm:$0xff]
  %v3859 = vld [vmem:[#allocation3 + $0x10] sm:$0xff]
  %v3860 = vld [vmem:[#allocation3 + $0x18] sm:$0xff]
  %v3861 = vld [vmem:[#allocation3 + $0x20] sm:$0xff]
  %v3862 = vld [vmem:[#allocation3 + $0x28] sm:$0xff]
  %v3863 = vld [vmem:[#allocation8] sm:$0xff]
  %v3864 = vld [vmem:[#allocation8 + $0x8] sm:$0xff]
  %v3865 = vld [vmem:[#allocation8 + $0x10] sm:$0xff]
  %v3866 = vld [vmem:[#allocation8 + $0x18] sm:$0xff]
  %v3867 = vld [vmem:[#allocation8 + $0x20] sm:$0xff]
  %v3868 = vld [vmem:[#allocation8 + $0x28] sm:$0xff]
  %v3869 = vsub.f32 %v3857, %v3863
  %v3870 = vsub.f32 %v3858, %v3864
  %v3871 = vsub.f32 %v3859, %v3865
  %v3872 = vsub.f32 %v3860, %v3866
  %v3873 = vsub.f32 %v3861, %v3867
  %v3874 = vsub.f32 %v3862, %v3868
  %v3875 = vmul.f32 %v3869, 0.5
  %v3876 = vmul.f32 %v3870, 0.5
  %v3877 = vmul.f32 %v3871, 0.5
  %v3878 = vmul.f32 %v3872, 0.5
  %v3879 = vmul.f32 %v3873, 0.5
  %v3880 = vmul.f32 %v3874, 0.5
  %v3881 = vadd.f32 %v3863, %v3875
  %v3882 = vadd.f32 %v3864, %v3876
  %v3883 = vadd.f32 %v3865, %v3877
  %v3884 = vadd.f32 %v3866, %v3878
  %v3885 = vadd.f32 %v3867, %v3879
  %v3886 = vadd.f32 %v3868, %v3880
  %vm3887 = vcmp.ge.f32.partialorder %v3881, 1.0
  %vm3888 = vcmp.ge.f32.partialorder %v3882, 1.0
  %vm3889 = vcmp.ge.f32.partialorder %v3883, 1.0
  %vm3890 = vcmp.ge.f32.partialorder %v3884, 1.0
  %vm3891 = vcmp.ge.f32.partialorder %v3885, 1.0
  %vm3892 = vcmp.ge.f32.partialorder %v3886, 1.0
  %v3893 = vsel %vm3887, 1, 0
  %v3894 = vsel %vm3888, 1, 0
  %v3895 = vsel %vm3889, 1, 0
  %v3896 = vsel %vm3890, 1, 0
  %v3897 = vsel %vm3891, 1, 0
  %v3898 = vsel %vm3892, 1, 0
  %v3899 = vcvt.s32.f32 %v3893
  %v3900 = vcvt.s32.f32 %v3894
  %v3901 = vcvt.s32.f32 %v3895
  %v3902 = vcvt.s32.f32 %v3896
  %v3903 = vcvt.s32.f32 %v3897
  %v3904 = vcvt.s32.f32 %v3898
  %v3905 = vsub.f32 1.0, %v3899
  %v3906 = vsub.f32 1.0, %v3900
  %v3907 = vsub.f32 1.0, %v3901
  %v3908 = vsub.f32 1.0, %v3902
  %v3909 = vsub.f32 1.0, %v3903
  %v3910 = vsub.f32 1.0, %v3904
  %v3911 = vmul.f32 %v3881, %v3905
  %v3912 = vmul.f32 %v3882, %v3906
  %v3913 = vmul.f32 %v3883, %v3907
  %v3914 = vmul.f32 %v3884, %v3908
  %v3915 = vmul.f32 %v3885, %v3909
  %v3916 = vmul.f32 %v3886, %v3910
  %3917 = vst [vmem:[#allocation8] sm:$0xff] %v3911
  %3918 = vst [vmem:[#allocation8 + $0x8] sm:$0xff] %v3912
  %3919 = vst [vmem:[#allocation8 + $0x10] sm:$0xff] %v3913
  %3920 = vst [vmem:[#allocation8 + $0x18] sm:$0xff] %v3914
  %3921 = vst [vmem:[#allocation8 + $0x20] sm:$0xff] %v3915
  %3922 = vst [vmem:[#allocation8 + $0x28] sm:$0xff] %v3916
  %v3923 = vld [vmem:[#allocation4] sm:$0xff]
  %v3924 = vld [vmem:[#allocation4 + $0x8] sm:$0xff]
  %v3925 = vld [vmem:[#allocation4 + $0x10] sm:$0xff]
  %v3926 = vld [vmem:[#allocation4 + $0x18] sm:$0xff]
  %v3927 = vld [vmem:[#allocation4 + $0x20] sm:$0xff]
  %v3928 = vld [vmem:[#allocation4 + $0x28] sm:$0xff]
  %v3929 = vsub.f32 1.0, %v3923
  %v3930 = vsub.f32 1.0, %v3924
  %v3931 = vsub.f32 1.0, %v3925
  %v3932 = vsub.f32 1.0, %v3926
  %v3933 = vsub.f32 1.0, %v3927
  %v3934 = vsub.f32 1.0, %v3928
  %v3935 = vmul.f32 %v3929, %v3905
  %v3936 = vmul.f32 %v3930, %v3906
  %v3937 = vmul.f32 %v3931, %v3907
  %v3938 = vmul.f32 %v3932, %v3908
  %v3939 = vmul.f32 %v3933, %v3909
  %v3940 = vmul.f32 %v3934, %v3910
  %v3941 = vsub.f32 1.0, %v3935
  %v3942 = vsub.f32 1.0, %v3936
  %v3943 = vsub.f32 1.0, %v3937
  %v3944 = vsub.f32 1.0, %v3938
  %v3945 = vsub.f32 1.0, %v3939
  %v3946 = vsub.f32 1.0, %v3940
  %3947 = vst [vmem:[%s6] sm:$0xff] %v3941
  %3948 = vst [vmem:[%s6 + $0x8] sm:$0xff] %v3942
  %3949 = vst [vmem:[%s6 + $0x10] sm:$0xff] %v3943
  %3950 = vst [vmem:[%s6 + $0x18] sm:$0xff] %v3944
  %3951 = vst [vmem:[%s6 + $0x20] sm:$0xff] %v3945
  %3952 = vst [vmem:[%s6 + $0x28] sm:$0xff] %v3946
  %v3953 = vld [vmem:[#allocation3 + $0x30] sm:$0xff]
  %v3954 = vld [vmem:[#allocation3 + $0x38] sm:$0xff]
  %v3955 = vld [vmem:[#allocation3 + $0x40] sm:$0xff]
  %v3956 = vld [vmem:[#allocation3 + $0x48] sm:$0xff]
  %v3957 = vld [vmem:[#allocation3 + $0x50] sm:$0xff]
  %v3958 = vld [vmem:[#allocation3 + $0x58] sm:$0xff]
  %v3959 = vld [vmem:[#allocation8] sm:$0xff]
  %v3960 = vld [vmem:[#allocation8 + $0x8] sm:$0xff]
  %v3961 = vld [vmem:[#allocation8 + $0x10] sm:$0xff]
  %v3962 = vld [vmem:[#allocation8 + $0x18] sm:$0xff]
  %v3963 = vld [vmem:[#allocation8 + $0x20] sm:$0xff]
  %v3964 = vld [vmem:[#allocation8 + $0x28] sm:$0xff]
  %v3965 = vsub.f32 %v3953, %v3959
  %v3966 = vsub.f32 %v3954, %v3960
  %v3967 = vsub.f32 %v3955, %v3961
  %v3968 = vsub.f32 %v3956, %v3962
  %v3969 = vsub.f32 %v3957, %v3963
  %v3970 = vsub.f32 %v3958, %v3964
  %v3971 = vmul.f32 %v3965, 0.5
  %v3972 = vmul.f32 %v3966, 0.5
  %v3973 = vmul.f32 %v3967, 0.5
  %v3974 = vmul.f32 %v3968, 0.5
  %v3975 = vmul.f32 %v3969, 0.5
  %v3976 = vmul.f32 %v3970, 0.5
  %v3977 = vadd.f32 %v3959, %v3971
  %v3978 = vadd.f32 %v3960, %v3972
  %v3979 = vadd.f32 %v3961, %v3973
  %v3980 = vadd.f32 %v3962, %v3974
  %v3981 = vadd.f32 %v3963, %v3975
  %v3982 = vadd.f32 %v3964, %v3976
  %vm3983 = vcmp.ge.f32.partialorder %v3977, 1.0
  %vm3984 = vcmp.ge.f32.partialorder %v3978, 1.0
  %vm3985 = vcmp.ge.f32.partialorder %v3979, 1.0
  %vm3986 = vcmp.ge.f32.partialorder %v3980, 1.0
  %vm3987 = vcmp.ge.f32.partialorder %v3981, 1.0
  %vm3988 = vcmp.ge.f32.partialorder %v3982, 1.0
  %v3989 = vsel %vm3983, 1, 0
  %v3990 = vsel %vm3984, 1, 0
  %v3991 = vsel %vm3985, 1, 0
  %v3992 = vsel %vm3986, 1, 0
  %v3993 = vsel %vm3987, 1, 0
  %v3994 = vsel %vm3988, 1, 0
  %v3995 = vcvt.s32.f32 %v3989
  %v3996 = vcvt.s32.f32 %v3990
  %v3997 = vcvt.s32.f32 %v3991
  %v3998 = vcvt.s32.f32 %v3992
  %v3999 = vcvt.s32.f32 %v3993
  %v4000 = vcvt.s32.f32 %v3994
  %v4001 = vsub.f32 1.0, %v3995
  %v4002 = vsub.f32 1.0, %v3996
  %v4003 = vsub.f32 1.0, %v3997
  %v4004 = vsub.f32 1.0, %v3998
  %v4005 = vsub.f32 1.0, %v3999
  %v4006 = vsub.f32 1.0, %v4000
  %v4007 = vmul.f32 %v3977, %v4001
  %v4008 = vmul.f32 %v3978, %v4002
  %v4009 = vmul.f32 %v3979, %v4003
  %v4010 = vmul.f32 %v3980, %v4004
  %v4011 = vmul.f32 %v3981, %v4005
  %v4012 = vmul.f32 %v3982, %v4006
  %4013 = vst [vmem:[#allocation8] sm:$0xff] %v4007
  %4014 = vst [vmem:[#allocation8 + $0x8] sm:$0xff] %v4008
  %4015 = vst [vmem:[#allocation8 + $0x10] sm:$0xff] %v4009
  %4016 = vst [vmem:[#allocation8 + $0x18] sm:$0xff] %v4010
  %4017 = vst [vmem:[#allocation8 + $0x20] sm:$0xff] %v4011
  %4018 = vst [vmem:[#allocation8 + $0x28] sm:$0xff] %v4012
  %v4019 = vld [vmem:[#allocation4 + $0x30] sm:$0xff]
  %v4020 = vld [vmem:[#allocation4 + $0x38] sm:$0xff]
  %v4021 = vld [vmem:[#allocation4 + $0x40] sm:$0xff]
  %v4022 = vld [vmem:[#allocation4 + $0x48] sm:$0xff]
  %v4023 = vld [vmem:[#allocation4 + $0x50] sm:$0xff]
  %v4024 = vld [vmem:[#allocation4 + $0x58] sm:$0xff]
  %v4025 = vsub.f32 1.0, %v4019
  %v4026 = vsub.f32 1.0, %v4020
  %v4027 = vsub.f32 1.0, %v4021
  %v4028 = vsub.f32 1.0, %v4022
  %v4029 = vsub.f32 1.0, %v4023
  %v4030 = vsub.f32 1.0, %v4024
  %v4031 = vmul.f32 %v4025, %v4001
  %v4032 = vmul.f32 %v4026, %v4002
  %v4033 = vmul.f32 %v4027, %v4003
  %v4034 = vmul.f32 %v4028, %v4004
  %v4035 = vmul.f32 %v4029, %v4005
  %v4036 = vmul.f32 %v4030, %v4006
  %v4037 = vsub.f32 1.0, %v4031
  %v4038 = vsub.f32 1.0, %v4032
  %v4039 = vsub.f32 1.0, %v4033
  %v4040 = vsub.f32 1.0, %v4034
  %v4041 = vsub.f32 1.0, %v4035
  %v4042 = vsub.f32 1.0, %v4036
  %s4043 = scalar_lea.vmem %s6, 48
  %4044 = vst [vmem:[%s4043] sm:$0xff] %v4037
  %4045 = vst [vmem:[%s4043 + $0x8] sm:$0xff] %v4038
  %4046 = vst [vmem:[%s4043 + $0x10] sm:$0xff] %v4039
  %4047 = vst [vmem:[%s4043 + $0x18] sm:$0xff] %v4040
  %4048 = vst [vmem:[%s4043 + $0x20] sm:$0xff] %v4041
  %4049 = vst [vmem:[%s4043 + $0x28] sm:$0xff] %v4042
  %v4050 = vld [vmem:[#allocation3 + $0x60] sm:$0xff]
  %v4051 = vld [vmem:[#allocation3 + $0x68] sm:$0xff]
  %v4052 = vld [vmem:[#allocation3 + $0x70] sm:$0xff]
  %v4053 = vld [vmem:[#allocation3 + $0x78] sm:$0xff]
  %v4054 = vld [vmem:[#allocation3 + $0x80] sm:$0xff]
  %v4055 = vld [vmem:[#allocation3 + $0x88] sm:$0xff]
  %v4056 = vld [vmem:[#allocation8] sm:$0xff]
  %v4057 = vld [vmem:[#allocation8 + $0x8] sm:$0xff]
  %v4058 = vld [vmem:[#allocation8 + $0x10] sm:$0xff]
  %v4059 = vld [vmem:[#allocation8 + $0x18] sm:$0xff]
  %v4060 = vld [vmem:[#allocation8 + $0x20] sm:$0xff]
  %v4061 = vld [vmem:[#allocation8 + $0x28] sm:$0xff]
  %v4062 = vsub.f32 %v4050, %v4056
  %v4063 = vsub.f32 %v4051, %v4057
  %v4064 = vsub.f32 %v4052, %v4058
  %v4065 = vsub.f32 %v4053, %v4059
  %v4066 = vsub.f32 %v4054, %v4060
  %v4067 = vsub.f32 %v4055, %v4061
  %v4068 = vmul.f32 %v4062, 0.5
  %v4069 = vmul.f32 %v4063, 0.5
  %v4070 = vmul.f32 %v4064, 0.5
  %v4071 = vmul.f32 %v4065, 0.5
  %v4072 = vmul.f32 %v4066, 0.5
  %v4073 = vmul.f32 %v4067, 0.5
  %v4074 = vadd.f32 %v4056, %v4068
  %v4075 = vadd.f32 %v4057, %v4069
  %v4076 = vadd.f32 %v4058, %v4070
  %v4077 = vadd.f32 %v4059, %v4071
  %v4078 = vadd.f32 %v4060, %v4072
  %v4079 = vadd.f32 %v4061, %v4073
  %vm4080 = vcmp.ge.f32.partialorder %v4074, 1.0
  %vm4081 = vcmp.ge.f32.partialorder %v4075, 1.0
  %vm4082 = vcmp.ge.f32.partialorder %v4076, 1.0
  %vm4083 = vcmp.ge.f32.partialorder %v4077, 1.0
  %vm4084 = vcmp.ge.f32.partialorder %v4078, 1.0
  %vm4085 = vcmp.ge.f32.partialorder %v4079, 1.0
  %v4086 = vsel %vm4080, 1, 0
  %v4087 = vsel %vm4081, 1, 0
  %v4088 = vsel %vm4082, 1, 0
  %v4089 = vsel %vm4083, 1, 0
  %v4090 = vsel %vm4084, 1, 0
  %v4091 = vsel %vm4085, 1, 0
  %v4092 = vcvt.s32.f32 %v4086
  %v4093 = vcvt.s32.f32 %v4087
  %v4094 = vcvt.s32.f32 %v4088
  %v4095 = vcvt.s32.f32 %v4089
  %v4096 = vcvt.s32.f32 %v4090
  %v4097 = vcvt.s32.f32 %v4091
  %v4098 = vsub.f32 1.0, %v4092
  %v4099 = vsub.f32 1.0, %v4093
  %v4100 = vsub.f32 1.0, %v4094
  %v4101 = vsub.f32 1.0, %v4095
  %v4102 = vsub.f32 1.0, %v4096
  %v4103 = vsub.f32 1.0, %v4097
  %v4104 = vmul.f32 %v4074, %v4098
  %v4105 = vmul.f32 %v4075, %v4099
  %v4106 = vmul.f32 %v4076, %v4100
  %v4107 = vmul.f32 %v4077, %v4101
  %v4108 = vmul.f32 %v4078, %v4102
  %v4109 = vmul.f32 %v4079, %v4103
  %4110 = vst [vmem:[#allocation8] sm:$0xff] %v4104
  %4111 = vst [vmem:[#allocation8 + $0x8] sm:$0xff] %v4105
  %4112 = vst [vmem:[#allocation8 + $0x10] sm:$0xff] %v4106
  %4113 = vst [vmem:[#allocation8 + $0x18] sm:$0xff] %v4107
  %4114 = vst [vmem:[#allocation8 + $0x20] sm:$0xff] %v4108
  %4115 = vst [vmem:[#allocation8 + $0x28] sm:$0xff] %v4109
  %v4116 = vld [vmem:[#allocation4 + $0x60] sm:$0xff]
  %v4117 = vld [vmem:[#allocation4 + $0x68] sm:$0xff]
  %v4118 = vld [vmem:[#allocation4 + $0x70] sm:$0xff]
  %v4119 = vld [vmem:[#allocation4 + $0x78] sm:$0xff]
  %v4120 = vld [vmem:[#allocation4 + $0x80] sm:$0xff]
  %v4121 = vld [vmem:[#allocation4 + $0x88] sm:$0xff]
  %v4122 = vsub.f32 1.0, %v4116
  %v4123 = vsub.f32 1.0, %v4117
  %v4124 = vsub.f32 1.0, %v4118
  %v4125 = vsub.f32 1.0, %v4119
  %v4126 = vsub.f32 1.0, %v4120
  %v4127 = vsub.f32 1.0, %v4121
  %v4128 = vmul.f32 %v4122, %v4098
  %v4129 = vmul.f32 %v4123, %v4099
  %v4130 = vmul.f32 %v4124, %v4100
  %v4131 = vmul.f32 %v4125, %v4101
  %v4132 = vmul.f32 %v4126, %v4102
  %v4133 = vmul.f32 %v4127, %v4103
  %v4134 = vsub.f32 1.0, %v4128
  %v4135 = vsub.f32 1.0, %v4129
  %v4136 = vsub.f32 1.0, %v4130
  %v4137 = vsub.f32 1.0, %v4131
  %v4138 = vsub.f32 1.0, %v4132
  %v4139 = vsub.f32 1.0, %v4133
  %s4140 = scalar_lea.vmem %s6, 96
  %4141 = vst [vmem:[%s4140] sm:$0xff] %v4134
  %4142 = vst [vmem:[%s4140 + $0x8] sm:$0xff] %v4135
  %4143 = vst [vmem:[%s4140 + $0x10] sm:$0xff] %v4136
  %4144 = vst [vmem:[%s4140 + $0x18] sm:$0xff] %v4137
  %4145 = vst [vmem:[%s4140 + $0x20] sm:$0xff] %v4138
  %4146 = vst [vmem:[%s4140 + $0x28] sm:$0xff] %v4139
  %v4147 = vld [vmem:[#allocation3 + $0x90] sm:$0xff]
  %v4148 = vld [vmem:[#allocation3 + $0x98] sm:$0xff]
  %v4149 = vld [vmem:[#allocation3 + $0xa0] sm:$0xff]
  %v4150 = vld [vmem:[#allocation3 + $0xa8] sm:$0xff]
  %v4151 = vld [vmem:[#allocation3 + $0xb0] sm:$0xff]
  %v4152 = vld [vmem:[#allocation3 + $0xb8] sm:$0xff]
  %v4153 = vld [vmem:[#allocation8] sm:$0xff]
  %v4154 = vld [vmem:[#allocation8 + $0x8] sm:$0xff]
  %v4155 = vld [vmem:[#allocation8 + $0x10] sm:$0xff]
  %v4156 = vld [vmem:[#allocation8 + $0x18] sm:$0xff]
  %v4157 = vld [vmem:[#allocation8 + $0x20] sm:$0xff]
  %v4158 = vld [vmem:[#allocation8 + $0x28] sm:$0xff]
  %v4159 = vsub.f32 %v4147, %v4153
  %v4160 = vsub.f32 %v4148, %v4154
  %v4161 = vsub.f32 %v4149, %v4155
  %v4162 = vsub.f32 %v4150, %v4156
  %v4163 = vsub.f32 %v4151, %v4157
  %v4164 = vsub.f32 %v4152, %v4158
  %v4165 = vmul.f32 %v4159, 0.5
  %v4166 = vmul.f32 %v4160, 0.5
  %v4167 = vmul.f32 %v4161, 0.5
  %v4168 = vmul.f32 %v4162, 0.5
  %v4169 = vmul.f32 %v4163, 0.5
  %v4170 = vmul.f32 %v4164, 0.5
  %v4171 = vadd.f32 %v4153, %v4165
  %v4172 = vadd.f32 %v4154, %v4166
  %v4173 = vadd.f32 %v4155, %v4167
  %v4174 = vadd.f32 %v4156, %v4168
  %v4175 = vadd.f32 %v4157, %v4169
  %v4176 = vadd.f32 %v4158, %v4170
  %vm4177 = vcmp.ge.f32.partialorder %v4171, 1.0
  %vm4178 = vcmp.ge.f32.partialorder %v4172, 1.0
  %vm4179 = vcmp.ge.f32.partialorder %v4173, 1.0
  %vm4180 = vcmp.ge.f32.partialorder %v4174, 1.0
  %vm4181 = vcmp.ge.f32.partialorder %v4175, 1.0
  %vm4182 = vcmp.ge.f32.partialorder %v4176, 1.0
  %v4183 = vsel %vm4177, 1, 0
  %v4184 = vsel %vm4178, 1, 0
  %v4185 = vsel %vm4179, 1, 0
  %v4186 = vsel %vm4180, 1, 0
  %v4187 = vsel %vm4181, 1, 0
  %v4188 = vsel %vm4182, 1, 0
  %v4189 = vcvt.s32.f32 %v4183
  %v4190 = vcvt.s32.f32 %v4184
  %v4191 = vcvt.s32.f32 %v4185
  %v4192 = vcvt.s32.f32 %v4186
  %v4193 = vcvt.s32.f32 %v4187
  %v4194 = vcvt.s32.f32 %v4188
  %v4195 = vsub.f32 1.0, %v4189
  %v4196 = vsub.f32 1.0, %v4190
  %v4197 = vsub.f32 1.0, %v4191
  %v4198 = vsub.f32 1.0, %v4192
  %v4199 = vsub.f32 1.0, %v4193
  %v4200 = vsub.f32 1.0, %v4194
  %v4201 = vmul.f32 %v4171, %v4195
  %v4202 = vmul.f32 %v4172, %v4196
  %v4203 = vmul.f32 %v4173, %v4197
  %v4204 = vmul.f32 %v4174, %v4198
  %v4205 = vmul.f32 %v4175, %v4199
  %v4206 = vmul.f32 %v4176, %v4200
  %4207 = vst [vmem:[#allocation8] sm:$0xff] %v4201
  %4208 = vst [vmem:[#allocation8 + $0x8] sm:$0xff] %v4202
  %4209 = vst [vmem:[#allocation8 + $0x10] sm:$0xff] %v4203
  %4210 = vst [vmem:[#allocation8 + $0x18] sm:$0xff] %v4204
  %4211 = vst [vmem:[#allocation8 + $0x20] sm:$0xff] %v4205
  %4212 = vst [vmem:[#allocation8 + $0x28] sm:$0xff] %v4206
  %v4213 = vld [vmem:[#allocation4 + $0x90] sm:$0xff]
  %v4214 = vld [vmem:[#allocation4 + $0x98] sm:$0xff]
  %v4215 = vld [vmem:[#allocation4 + $0xa0] sm:$0xff]
  %v4216 = vld [vmem:[#allocation4 + $0xa8] sm:$0xff]
  %v4217 = vld [vmem:[#allocation4 + $0xb0] sm:$0xff]
  %v4218 = vld [vmem:[#allocation4 + $0xb8] sm:$0xff]
  %v4219 = vsub.f32 1.0, %v4213
  %v4220 = vsub.f32 1.0, %v4214
  %v4221 = vsub.f32 1.0, %v4215
  %v4222 = vsub.f32 1.0, %v4216
  %v4223 = vsub.f32 1.0, %v4217
  %v4224 = vsub.f32 1.0, %v4218
  %v4225 = vmul.f32 %v4219, %v4195
  %v4226 = vmul.f32 %v4220, %v4196
  %v4227 = vmul.f32 %v4221, %v4197
  %v4228 = vmul.f32 %v4222, %v4198
  %v4229 = vmul.f32 %v4223, %v4199
  %v4230 = vmul.f32 %v4224, %v4200
  %v4231 = vsub.f32 1.0, %v4225
  %v4232 = vsub.f32 1.0, %v4226
  %v4233 = vsub.f32 1.0, %v4227
  %v4234 = vsub.f32 1.0, %v4228
  %v4235 = vsub.f32 1.0, %v4229
  %v4236 = vsub.f32 1.0, %v4230
  %s4237 = scalar_lea.vmem %s6, 144
  %4238 = vst [vmem:[%s4237] sm:$0xff] %v4231
  %4239 = vst [vmem:[%s4237 + $0x8] sm:$0xff] %v4232
  %4240 = vst [vmem:[%s4237 + $0x10] sm:$0xff] %v4233
  %4241 = vst [vmem:[%s4237 + $0x18] sm:$0xff] %v4234
  %4242 = vst [vmem:[%s4237 + $0x20] sm:$0xff] %v4235
  %4243 = vst [vmem:[%s4237 + $0x28] sm:$0xff] %v4236
  // Predicated region
  $region26: #{unit_forward.1} parent=0 // pred_check
    _
  $region27: #{unit_forward.1} parent=0 // pred_check_branch
    %4245 = sbr.rel (0) target = $region29
  $region28: #{unit_forward.1} parent=0 // pred_region
    _
  $region29: #{unit_forward.1} parent=0 // pred_fallthru
    _
  // Predicated region
  $region30: #{unit_forward.1} parent=0 // pred_check
    _
  $region31: #{unit_forward.1} parent=0 // pred_check_branch
    %4247 = sbr.rel (0) target = $region33
  $region32: #{unit_forward.1} parent=0 // pred_region
    _
  $region33: #{unit_forward.1} parent=0 // pred_fallthru
    _

</llo_original>
